<compile_context>
chip_gen: v7x
topology: tpu7x:2x2x1
jax: 0.10.0
libtpu: 0.0.40
codegen_flags: <defaults>
</compile_context>

<pallas_src>
import numpy as np
import jax
import jax.numpy as jnp
from jax import lax
from jax.experimental import pallas as pl
from jax.experimental.pallas import tpu as pltpu

HIDDEN = 100   # hard-coded in the PyTorch module (nn.LSTM(embedding_dim, 100))
HP = 128       # lane-padded hidden size (multiple of 128)
SUB = 16       # bf16 packed-sublane tile; batch padded/tiled to multiples of this


# ---------------------------------------------------------------------------
# Pallas kernel: per-chunk input projection + bidirectional LSTM recurrence
# (carried state across the time-chunk grid axis) + fc head on the last chunk
# ---------------------------------------------------------------------------
def lstm_encoder_kernel(maxlen_ref,            # (nb,)          i32  SMEM (scalar prefetch)
                        lens_ref,              # (Bt, 1)        i32
                        ef_ref,                # (Tt, Bt, E)    bf16 fwd-order embedding chunk
                        eb_ref,                # (Tt, Bt, E)    bf16 time-flipped embedding chunk
                        wih_f_ref, wih_b_ref,  # (E, 4*HP)      bf16 fused input-gate weights
                        bih_f_ref, bih_b_ref,  # (1, 4*HP)      f32  fused biases (b_ih + b_hh)
                        whh_f_ref, whh_b_ref,  # (HP, 4*HP)     bf16 fused recurrent weights
                        wfc_ref,               # (2*HP, 2*HP)   bf16 lane-padded fc weight
                        bfc_ref,               # (1, 2*HP)      f32
                        out_ref,               # (Bt, 2*HP)     f32
                        h_f, c_f, h_b, c_b,    # (Bt, HP)       bf16 / f32 carried state
                        xw_f, xw_b):           # (Tt*Bt, 4*HP)  f32  per-chunk projections
    b = pl.program_id(0)
    k = pl.program_id(1)
    nk = pl.num_programs(1)
    Tt, Bt, E = ef_ref.shape
    Hp = h_f.shape[-1]
    Tpad = nk * Tt

    # zero the carried state at the first time chunk of each batch tile
    @pl.when(k == 0)
    def _init():
        h_f[...] = jnp.zeros_like(h_f)
        c_f[...] = jnp.zeros_like(c_f)
        h_b[...] = jnp.zeros_like(h_b)
        c_b[...] = jnp.zeros_like(c_b)

    max_len = maxlen_ref[b]
    chunk_start = k * Tt
    fwd_dead = chunk_start >= max_len                 # all fwd steps masked in this chunk
    bwd_dead = (Tpad - chunk_start - Tt) >= max_len   # all bwd steps masked in this chunk

    @pl.when(jnp.logical_not(jnp.logical_and(fwd_dead, bwd_dead)))
    def _chunk():
        lens = lens_ref[...]                                      # (Bt, 1) i32

        # per-chunk hoisted input projections (off the sequential chain).
        # reshape merges leading dims only (Bt is a multiple of the bf16
        # sublane tile, so it is tile-aligned).
        ef = ef_ref[...].reshape(Tt * Bt, E)
        eb = eb_ref[...].reshape(Tt * Bt, E)
        xw_f[...] = jnp.dot(ef, wih_f_ref[...],
                            preferred_element_type=jnp.float32) + bih_f_ref[...]
        xw_b[...] = jnp.dot(eb, wih_b_ref[...],
                            preferred_element_type=jnp.float32) + bih_b_ref[...]

        def cell(gates, c):
            # gate order along lanes: i | f | g | o, each HP wide (static slices)
            i_g = jax.nn.sigmoid(gates[:, 0 * Hp:1 * Hp])
            f_g = jax.nn.sigmoid(gates[:, 1 * Hp:2 * Hp])
            g_g = jnp.tanh(gates[:, 2 * Hp:3 * Hp])
            o_g = jax.nn.sigmoid(gates[:, 3 * Hp:4 * Hp])
            c_new = f_g * c + i_g * g_g
            h_new = o_g * jnp.tanh(c_new)
            return h_new, c_new

        # Interleaved fwd/bwd recurrence over the chunk: only the (Bt,HP)@(HP,4HP)
        # recurrent matmul + gate nonlinearities remain on the sequential chain.
        def step(tt, carry):
            t = chunk_start + tt                 # global forward time index
            s = Tpad - 1 - t                     # global backward time index
            row = pl.multiple_of(tt * Bt, 8)
            g_f = xw_f[pl.ds(row, Bt), :] + jnp.dot(
                h_f[...], whh_f_ref[...], preferred_element_type=jnp.float32)
            g_b = xw_b[pl.ds(row, Bt), :] + jnp.dot(
                h_b[...], whh_b_ref[...], preferred_element_type=jnp.float32)
            hf_new, cf_new = cell(g_f, c_f[...])
            hb_new, cb_new = cell(g_b, c_b[...])
            m_f = lens > t                       # fwd: hold state past the valid length
            m_b = lens > s                       # bwd: stay zero until the last valid token
            h_f[...] = jnp.where(m_f, hf_new.astype(h_f.dtype), h_f[...])
            c_f[...] = jnp.where(m_f, cf_new, c_f[...])
            h_b[...] = jnp.where(m_b, hb_new.astype(h_b.dtype), h_b[...])
            c_b[...] = jnp.where(m_b, cb_new, c_b[...])
            return carry

        lax.fori_loop(0, Tt, step, 0, unroll=min(Tt, 8))

    # hn.transpose(0,1).reshape(bs,-1) == [h_fwd | h_bwd]; lane-aligned at HP
    @pl.when(k == nk - 1)
    def _finalize():
        hcat = jnp.concatenate([h_f[...], h_b[...]], axis=-1)     # (Bt, 2*HP) bf16
        out_ref[...] = (jnp.dot(hcat, wfc_ref[...],
                                preferred_element_type=jnp.float32)
                        + bfc_ref[...])


# ---------------------------------------------------------------------------
# Weight fusion / lane padding helpers (wrapper-side glue)
# ---------------------------------------------------------------------------
def _fused_gate_weight(w, Hp):
    # (4, in_dim, H) -> (in_dim, 4*Hp); each gate block at lane offset g*Hp
    G, In, H = w.shape
    out = jnp.zeros((In, G * Hp), w.dtype)
    for g in range(G):
        out = out.at[:, g * Hp:g * Hp + H].set(w[g])
    return out


def _fused_gate_bias(b, Hp):
    # (4, 1, H) -> (1, 4*Hp); padded lanes stay 0 so padded state stays 0
    G, _, H = b.shape
    out = jnp.zeros((1, G * Hp), b.dtype)
    for g in range(G):
        out = out.at[:, g * Hp:g * Hp + H].set(b[g])
    return out


def _padded_recurrent_weight(w, Hp):
    # (4, H, H) -> (Hp, 4*Hp); zero rows for padded state lanes
    G, H, _ = w.shape
    out = jnp.zeros((Hp, G * Hp), w.dtype)
    for g in range(G):
        out = out.at[:H, g * Hp:g * Hp + H].set(w[g])
    return out


def _padded_fc(w_fc, b_fc, H, Hp):
    # (2H, 2H) -> (2Hp, 2Hp): fwd rows at offset 0, bwd rows at offset Hp
    wp = jnp.zeros((2 * Hp, 2 * Hp), w_fc.dtype)
    wp = wp.at[0:H, 0:2 * H].set(w_fc[0:H])
    wp = wp.at[Hp:Hp + H, 0:2 * H].set(w_fc[H:2 * H])
    bp = jnp.zeros((1, 2 * Hp), b_fc.dtype)
    bp = bp.at[:, 0:2 * H].set(b_fc)
    return wp, bp


def _round_up(a, m):
    return (a + m - 1) // m * m


def _dual_tensorcore():
    # v4 (megacore) and v7x (2 TC/chip) benefit from >=2 programs on the
    # 'parallel' batch axis; v5e/v6e are single-TC (don't over-split).
    try:
        kind = jax.devices()[0].device_kind.lower()
    except Exception:
        return False
    return ("v4" in kind) or ("v7" in kind) or ("7x" in kind)


# ---------------------------------------------------------------------------
# Wrapper (padding, embedding gather, tile selection, pallas_call)
# ---------------------------------------------------------------------------
def lstm_encoder_forward(x_list, params, pad_len, compute_dtype=jnp.bfloat16,
                         batch_tile=None, time_tile=None):
    B = len(x_list)
    T = pad_len
    H, Hp = HIDDEN, HP
    E = params["embedding"].shape[1]

    # same padding / truncation / length logic as the PyTorch forward
    seq, lens = [], []
    for s in x_list:
        s = list(s)
        if len(s) > T:
            seq.append(s[:T]); lens.append(T)
        else:
            seq.append(s + [-1] * (T - len(s))); lens.append(len(s))
    encodes = np.asarray(seq, dtype=np.int32)                       # (B, T)
    lens_np = np.asarray(lens, dtype=np.int32)                      # (B,)

    # ---- batch tiling (multiples of SUB=16; pad rows get lens=0 -> masked) ----
    if batch_tile is None:
        Bp_min = _round_up(B, SUB)
        if _dual_tensorcore() and Bp_min >= 2 * SUB:
            Bt = _round_up(pl.cdiv(Bp_min, 2), SUB)   # feed both TensorCores
        else:
            Bt = min(Bp_min, 256)                      # single-TC: one big tile
    else:
        Bt = _round_up(max(batch_tile, SUB), SUB)
    Bp = _round_up(max(B, Bt), Bt)
    nb = Bp // Bt

    # ---- time tiling (bound VMEM: per-chunk xw scratch + 2x double-buffered
    #      bf16 embedding chunks; conservative so it also fits v7x 64 MiB) ----
    if time_tile is None:
        budget = 24 * 1024 * 1024
        per_step = Bt * (2 * 4 * Hp * 4 + 2 * 2 * E * 2)
        Tt = max(8, min(T, budget // max(per_step, 1)))
        Tt = min(Tt, 256)
    else:
        Tt = max(1, int(time_tile))
    Tt = min(Tt, T)
    Tp = _round_up(T, Tt)
    nk = Tp // Tt

    # padded batch tensors
    enc_p = np.zeros((Bp, T), dtype=np.int32)
    enc_p[:B] = encodes
    lens_p = np.zeros((Bp, 1), dtype=np.int32)
    lens_p[:B, 0] = lens_np
    tile_maxlen = lens_p.reshape(nb, Bt).max(axis=1).astype(np.int32)   # (nb,)

    lens_d = jnp.asarray(lens_p)
    tile_maxlen_d = jnp.asarray(tile_maxlen)

    # time-major embedding gather, bf16, time-padded to Tp
    emb_f = jnp.take(params["embedding"], jnp.asarray(enc_p).T + 1, axis=0)  # (T, Bp, E)
    emb_f = emb_f.astype(compute_dtype)
    if Tp > T:
        emb_f = jnp.concatenate(
            [emb_f, jnp.zeros((Tp - T, Bp, E), compute_dtype)], axis=0)
    # backward direction streamed in the same (forward) pipeline order
    emb_b = jnp.flip(emb_f, axis=0)

    # fused / lane-padded / bf16 weights
    wih_f = _fused_gate_weight(params["w_ih_f"], Hp).astype(compute_dtype)
    wih_b = _fused_gate_weight(params["w_ih_b"], Hp).astype(compute_dtype)
    bih_f = _fused_gate_bias(params["b_f"], Hp)                     # f32
    bih_b = _fused_gate_bias(params["b_b"], Hp)                     # f32
    whh_f = _padded_recurrent_weight(params["w_hh_f"], Hp).astype(compute_dtype)
    whh_b = _padded_recurrent_weight(params["w_hh_b"], Hp).astype(compute_dtype)
    wfc, bfc = _padded_fc(params["w_fc"], params["b_fc"], H, Hp)
    wfc = wfc.astype(compute_dtype)

    G4 = 4 * Hp

    out = pl.pallas_call(
        lstm_encoder_kernel,
        out_shape=jax.ShapeDtypeStruct((Bp, 2 * Hp), jnp.float32),
        grid_spec=pltpu.PrefetchScalarGridSpec(
            num_scalar_prefetch=1,                        # per-batch-tile max_len -> SMEM
            grid=(nb, nk),                                # (batch 'parallel', time 'arbitrary')
            in_specs=[
                pl.BlockSpec((Bt, 1), lambda b, k, ml: (b, 0)),          # lens
                pl.BlockSpec((Tt, Bt, E), lambda b, k, ml: (k, b, 0)),   # emb fwd chunk
                pl.BlockSpec((Tt, Bt, E), lambda b, k, ml: (k, b, 0)),   # emb bwd chunk (pre-flipped)
                pl.BlockSpec((E, G4), lambda b, k, ml: (0, 0)),          # wih_f
                pl.BlockSpec((E, G4), lambda b, k, ml: (0, 0)),          # wih_b
                pl.BlockSpec((1, G4), lambda b, k, ml: (0, 0)),          # bih_f
                pl.BlockSpec((1, G4), lambda b, k, ml: (0, 0)),          # bih_b
                pl.BlockSpec((Hp, G4), lambda b, k, ml: (0, 0)),         # whh_f
                pl.BlockSpec((Hp, G4), lambda b, k, ml: (0, 0)),         # whh_b
                pl.BlockSpec((2 * Hp, 2 * Hp), lambda b, k, ml: (0, 0)), # w_fc
                pl.BlockSpec((1, 2 * Hp), lambda b, k, ml: (0, 0)),      # b_fc
            ],
            out_specs=pl.BlockSpec((Bt, 2 * Hp), lambda b, k, ml: (b, 0)),
            scratch_shapes=[
                pltpu.VMEM((Bt, Hp), compute_dtype),      # h_f (bf16: no cast on the chain)
                pltpu.VMEM((Bt, Hp), jnp.float32),        # c_f
                pltpu.VMEM((Bt, Hp), compute_dtype),      # h_b
                pltpu.VMEM((Bt, Hp), jnp.float32),        # c_b
                pltpu.VMEM((Tt * Bt, G4), jnp.float32),   # per-chunk xw_f
                pltpu.VMEM((Tt * Bt, G4), jnp.float32),   # per-chunk xw_b
            ],
        ),
        compiler_params=pltpu.CompilerParams(
            dimension_semantics=("parallel", "arbitrary"),
            vmem_limit_bytes=48 * 1024 * 1024,
        ),
    )(tile_maxlen_d, lens_d, emb_f, emb_b, wih_f, wih_b, bih_f, bih_b,
      whh_f, whh_b, wfc, bfc)

    return out[:B, :2 * H]    # drop batch/lane padding -> (B, 200)


# ---------------------------------------------------------------------------
# Deterministic synthetic parameters (shapes from the module's __init__)
# ---------------------------------------------------------------------------
def init_params(key, vocab_size, embedding_dim):
    H, E = HIDDEN, embedding_dim
    ks = jax.random.split(key, 9)
    s_lstm = 1.0 / np.sqrt(H)
    s_fc = 1.0 / np.sqrt(2 * H)

    def u(k, shape, s):
        return jax.random.uniform(k, shape, jnp.float32, -s, s)

    return {
        "embedding": jax.random.normal(ks[0], (vocab_size, E), jnp.float32),
        # per-gate (i, f, g, o) weights, pre-transposed to (in_dim, H)
        "w_ih_f": u(ks[1], (4, E, H), s_lstm),
        "w_hh_f": u(ks[2], (4, H, H), s_lstm),
        "b_f":    u(ks[3], (4, 1, H), s_lstm),   # b_ih + b_hh combined
        "w_ih_b": u(ks[4], (4, E, H), s_lstm),
        "w_hh_b": u(ks[5], (4, H, H), s_lstm),
        "b_b":    u(ks[6], (4, 1, H), s_lstm),
        "w_fc":   u(ks[7], (2 * H, 2 * H), s_fc),
        "b_fc":   u(ks[8], (1, 2 * H), s_fc),
    }


# ---------------------------------------------------------------------------
# Pure numpy reference (mimics pack_padded_sequence exactly)
# ---------------------------------------------------------------------------
def reference_forward(x_list, params, pad_len):
    p = {k: np.asarray(v, dtype=np.float64) for k, v in params.items()}
    H = HIDDEN

    def sigmoid(v):
        return 1.0 / (1.0 + np.exp(-v))

    outs = []
    for s in x_list:
        toks = list(s)[:pad_len]
        L = len(toks)
        xe = p["embedding"][np.asarray(toks, dtype=np.int64) + 1]   # (L, E)

        def run(wih, whh, b, order):
            h = np.zeros(H); c = np.zeros(H)
            for t in order:
                xt = xe[t]
                gi = sigmoid(xt @ wih[0] + h @ whh[0] + b[0, 0])
                gf = sigmoid(xt @ wih[1] + h @ whh[1] + b[1, 0])
                gg = np.tanh(xt @ wih[2] + h @ whh[2] + b[2, 0])
                go = sigmoid(xt @ wih[3] + h @ whh[3] + b[3, 0])
                c = gf * c + gi * gg
                h = go * np.tanh(c)
            return h

        hf = run(p["w_ih_f"], p["w_hh_f"], p["b_f"], range(L))
        hb = run(p["w_ih_b"], p["w_hh_b"], p["b_b"], range(L - 1, -1, -1))
        outs.append(np.concatenate([hf, hb]))
    hcat = np.stack(outs)                                           # (B, 2H)
    return hcat @ p["w_fc"] + p["b_fc"][0]


if __name__ == "__main__":
    vocab_size = 50
    embedding_dim = 32
    pad_len = 8

    key = jax.random.PRNGKey(0)
    params = init_params(key, vocab_size, embedding_dim)

    # variable-length token sequences: shorter / equal / longer than pad_len
    x = [
        [3, 7, 1, 9, 2],                                # length 5  (< pad_len)
        [6, 2, 9, 4, 1, 8, 3, 7],                       # length 8  (== pad_len)
        [4, 8, 15, 16, 23, 42, 5, 11, 13, 17, 19, 21],  # length 12 (> pad_len, truncated)
    ]

    ref = reference_forward(x, params, pad_len)

    # multi-chunk path: 2 time chunks of 4 steps, state carried across chunks
    out = jax.block_until_ready(lstm_encoder_forward(x, params, pad_len, time_tile=4))
    np.testing.assert_allclose(np.asarray(out), ref, rtol=2e-2, atol=2e-2)

    # default tile selection (single time chunk at this toy size)
    out2 = jax.block_until_ready(lstm_encoder_forward(x, params, pad_len))
    np.testing.assert_allclose(np.asarray(out2), ref, rtol=2e-2, atol=2e-2)

    # TODO(synk): nn.Dropout(0.2) is declared in __init__ but never applied in forward, so it is omitted.
    print("KERNEL_OK")
</pallas_src>

<mosaic_0001>
module attributes {stable_mosaic.version = 11 : i64} {
  func.func @lstm_encoder_kernel(%arg0: i32, %arg1: i32, %arg2: memref<1xi32, #tpu.memory_space<smem>>, %arg3: memref<16x1xi32, #tpu.memory_space<vmem>>, %arg4: memref<4x16x32xbf16, #tpu.memory_space<vmem>>, %arg5: memref<4x16x32xbf16, #tpu.memory_space<vmem>>, %arg6: memref<32x512xbf16, #tpu.memory_space<vmem>>, %arg7: memref<32x512xbf16, #tpu.memory_space<vmem>>, %arg8: memref<1x512xf32, #tpu.memory_space<vmem>>, %arg9: memref<1x512xf32, #tpu.memory_space<vmem>>, %arg10: memref<128x512xbf16, #tpu.memory_space<vmem>>, %arg11: memref<128x512xbf16, #tpu.memory_space<vmem>>, %arg12: memref<256x256xbf16, #tpu.memory_space<vmem>>, %arg13: memref<1x256xf32, #tpu.memory_space<vmem>>, %arg14: memref<16x256xf32, #tpu.memory_space<vmem>>, %arg15: memref<16x128xbf16, #tpu.memory_space<vmem>>, %arg16: memref<16x128xf32, #tpu.memory_space<vmem>>, %arg17: memref<16x128xbf16, #tpu.memory_space<vmem>>, %arg18: memref<16x128xf32, #tpu.memory_space<vmem>>, %arg19: memref<64x512xf32, #tpu.memory_space<vmem>>, %arg20: memref<64x512xf32, #tpu.memory_space<vmem>>) attributes {dimension_semantics = [#tpu.dimension_semantics<parallel>, #tpu.dimension_semantics<arbitrary>], iteration_bounds = array<i64: 1, 2>, scalar_prefetch = 1 : i64, scratch_operands = 6 : i64, tpu.core_type = #tpu.core_type<tc>, window_params = [{transform_indices = @transform_0, window_bounds = array<i64: 16, 1>}, {transform_indices = @transform_1, window_bounds = array<i64: 4, 16, 32>}, {transform_indices = @transform_2, window_bounds = array<i64: 4, 16, 32>}, {pipeline_mode = #tpu.pipeline_mode<synchronous>, transform_indices = @transform_3, window_bounds = array<i64: 32, 512>}, {pipeline_mode = #tpu.pipeline_mode<synchronous>, transform_indices = @transform_4, window_bounds = array<i64: 32, 512>}, {pipeline_mode = #tpu.pipeline_mode<synchronous>, transform_indices = @transform_5, window_bounds = array<i64: 1, 512>}, {pipeline_mode = #tpu.pipeline_mode<synchronous>, transform_indices = @transform_6, window_bounds = array<i64: 1, 512>}, {pipeline_mode = #tpu.pipeline_mode<synchronous>, transform_indices = @transform_7, window_bounds = array<i64: 128, 512>}, {pipeline_mode = #tpu.pipeline_mode<synchronous>, transform_indices = @transform_8, window_bounds = array<i64: 128, 512>}, {pipeline_mode = #tpu.pipeline_mode<synchronous>, transform_indices = @transform_9, window_bounds = array<i64: 256, 256>}, {pipeline_mode = #tpu.pipeline_mode<synchronous>, transform_indices = @transform_10, window_bounds = array<i64: 1, 256>}, {transform_indices = @transform_11, window_bounds = array<i64: 16, 256>}]} {
    %c0_i32 = arith.constant 0 : i32
    %0 = arith.cmpi eq, %arg1, %c0_i32 : i32
    %1 = arith.extui %0 : i1 to i32
    %c0_i32_0 = arith.constant 0 : i32
    %2 = arith.cmpi ne, %1, %c0_i32_0 : i32
    scf.if %2 {
      %cst = arith.constant 0.000000e+00 : bf16
      %17 = vector.broadcast %cst : bf16 to vector<16x128xbf16>
      %c0 = arith.constant 0 : index
      %c0_4 = arith.constant 0 : index
      %18 = vector.load %arg15[%c0, %c0_4] : memref<16x128xbf16, #tpu.memory_space<vmem>>, vector<16x128xbf16>
      tpu.vector_store %arg15[%c0, %c0_4], %17 {strides = array<i32>} : memref<16x128xbf16, #tpu.memory_space<vmem>>, vector<16x128xbf16>,
      %cst_5 = arith.constant 0.000000e+00 : f32
      %19 = vector.broadcast %cst_5 : f32 to vector<16x128xf32>
      %c0_6 = arith.constant 0 : index
      %c0_7 = arith.constant 0 : index
      %20 = vector.load %arg16[%c0_6, %c0_7] : memref<16x128xf32, #tpu.memory_space<vmem>>, vector<16x128xf32>
      tpu.vector_store %arg16[%c0_6, %c0_7], %19 {strides = array<i32>} : memref<16x128xf32, #tpu.memory_space<vmem>>, vector<16x128xf32>,
      %cst_8 = arith.constant 0.000000e+00 : bf16
      %21 = vector.broadcast %cst_8 : bf16 to vector<16x128xbf16>
      %c0_9 = arith.constant 0 : index
      %c0_10 = arith.constant 0 : index
      %22 = vector.load %arg17[%c0_9, %c0_10] : memref<16x128xbf16, #tpu.memory_space<vmem>>, vector<16x128xbf16>
      tpu.vector_store %arg17[%c0_9, %c0_10], %21 {strides = array<i32>} : memref<16x128xbf16, #tpu.memory_space<vmem>>, vector<16x128xbf16>,
      %cst_11 = arith.constant 0.000000e+00 : f32
      %23 = vector.broadcast %cst_11 : f32 to vector<16x128xf32>
      %c0_12 = arith.constant 0 : index
      %c0_13 = arith.constant 0 : index
      %24 = vector.load %arg18[%c0_12, %c0_13] : memref<16x128xf32, #tpu.memory_space<vmem>>, vector<16x128xf32>
      tpu.vector_store %arg18[%c0_12, %c0_13], %23 {strides = array<i32>} : memref<16x128xf32, #tpu.memory_space<vmem>>, vector<16x128xf32>,
    } else {
    }
    %3 = arith.index_cast %arg0 : i32 to index
    %4 = memref.load %arg2[%3] : memref<1xi32, #tpu.memory_space<smem>>
    %c4_i32 = arith.constant 4 : i32
    %5 = arith.muli %arg1, %c4_i32 : i32
    %6 = arith.cmpi sge, %5, %4 : i32
    %c8_i32 = arith.constant 8 : i32
    %7 = arith.subi %c8_i32, %5 : i32
    %c4_i32_1 = arith.constant 4 : i32
    %8 = arith.subi %7, %c4_i32_1 : i32
    %9 = arith.cmpi sge, %8, %4 : i32
    %10 = arith.andi %6, %9 : i1
    %true = arith.constant true
    %11 = arith.xori %10, %true : i1
    %12 = arith.extui %11 : i1 to i32
    %c0_i32_2 = arith.constant 0 : i32
    %13 = arith.cmpi ne, %12, %c0_i32_2 : i32
    scf.if %13 {
      %c0 = arith.constant 0 : index
      %c0_4 = arith.constant 0 : index
      %17 = vector.load %arg3[%c0, %c0_4] : memref<16x1xi32, #tpu.memory_space<vmem>>, vector<16x1xi32>
      %c0_5 = arith.constant 0 : index
      %c0_6 = arith.constant 0 : index
      %c0_7 = arith.constant 0 : index
      %18 = vector.load %arg4[%c0_5, %c0_6, %c0_7] : memref<4x16x32xbf16, #tpu.memory_space<vmem>>, vector<4x16x32xbf16>
      %19 = vector.shape_cast %18 : vector<4x16x32xbf16> to vector<64x32xbf16>
      %c0_8 = arith.constant 0 : index
      %c0_9 = arith.constant 0 : index
      %c0_10 = arith.constant 0 : index
      %20 = vector.load %arg5[%c0_8, %c0_9, %c0_10] : memref<4x16x32xbf16, #tpu.memory_space<vmem>>, vector<4x16x32xbf16>
      %21 = vector.shape_cast %20 : vector<4x16x32xbf16> to vector<64x32xbf16>
      %c0_11 = arith.constant 0 : index
      %c0_12 = arith.constant 0 : index
      %22 = vector.load %arg6[%c0_11, %c0_12] : memref<32x512xbf16, #tpu.memory_space<vmem>>, vector<32x512xbf16>
      %cst = arith.constant dense<0.000000e+00> : vector<64x512xf32>
      %23 = tpu.matmul %19, %22, %cst {dimension_numbers = #tpu.dot_dimension_numbers<[1], [0], [0], [1], [0, 0, 1, 1], [], []>} : vector<64x32xbf16>, vector<32x512xbf16>, vector<64x512xf32> -> vector<64x512xf32>
      %c0_13 = arith.constant 0 : index
      %c0_14 = arith.constant 0 : index
      %24 = vector.load %arg8[%c0_13, %c0_14] : memref<1x512xf32, #tpu.memory_space<vmem>>, vector<1x512xf32>
      %25 = vector.broadcast %24 : vector<1x512xf32> to vector<64x512xf32>
      %26 = arith.addf %23, %25 : vector<64x512xf32>
      %c0_15 = arith.constant 0 : index
      %c0_16 = arith.constant 0 : index
      %27 = vector.load %arg19[%c0_15, %c0_16] : memref<64x512xf32, #tpu.memory_space<vmem>>, vector<64x512xf32>
      tpu.vector_store %arg19[%c0_15, %c0_16], %26 {strides = array<i32>} : memref<64x512xf32, #tpu.memory_space<vmem>>, vector<64x512xf32>,
      %c0_17 = arith.constant 0 : index
      %c0_18 = arith.constant 0 : index
      %28 = vector.load %arg7[%c0_17, %c0_18] : memref<32x512xbf16, #tpu.memory_space<vmem>>, vector<32x512xbf16>
      %cst_19 = arith.constant dense<0.000000e+00> : vector<64x512xf32>
      %29 = tpu.matmul %21, %28, %cst_19 {dimension_numbers = #tpu.dot_dimension_numbers<[1], [0], [0], [1], [0, 0, 1, 1], [], []>} : vector<64x32xbf16>, vector<32x512xbf16>, vector<64x512xf32> -> vector<64x512xf32>
      %c0_20 = arith.constant 0 : index
      %c0_21 = arith.constant 0 : index
      %30 = vector.load %arg9[%c0_20, %c0_21] : memref<1x512xf32, #tpu.memory_space<vmem>>, vector<1x512xf32>
      %31 = vector.broadcast %30 : vector<1x512xf32> to vector<64x512xf32>
      %32 = arith.addf %29, %31 : vector<64x512xf32>
      %c0_22 = arith.constant 0 : index
      %c0_23 = arith.constant 0 : index
      %33 = vector.load %arg20[%c0_22, %c0_23] : memref<64x512xf32, #tpu.memory_space<vmem>>, vector<64x512xf32>
      tpu.vector_store %arg20[%c0_22, %c0_23], %32 {strides = array<i32>} : memref<64x512xf32, #tpu.memory_space<vmem>>, vector<64x512xf32>,
      %c0_i32_24 = arith.constant 0 : i32
      %34 = arith.addi %5, %c0_i32_24 : i32
      %c7_i32 = arith.constant 7 : i32
      %35 = arith.subi %c7_i32, %34 : i32
      %c16_i32 = arith.constant 16 : i32
      %36 = arith.muli %c0_i32_24, %c16_i32 : i32
      %37 = tpu.assume_multiple %36, 8 : i32
      %38 = arith.index_cast %37 : i32 to index
      %c0_25 = arith.constant 0 : index
      %39 = vector.load %arg19[%38, %c0_25] : memref<64x512xf32, #tpu.memory_space<vmem>>, vector<16x512xf32>
      %c0_26 = arith.constant 0 : index
      %c0_27 = arith.constant 0 : index
      %40 = vector.load %arg15[%c0_26, %c0_27] : memref<16x128xbf16, #tpu.memory_space<vmem>>, vector<16x128xbf16>
      %c0_28 = arith.constant 0 : index
      %c0_29 = arith.constant 0 : index
      %41 = vector.load %arg10[%c0_28, %c0_29] : memref<128x512xbf16, #tpu.memory_space<vmem>>, vector<128x512xbf16>
      %cst_30 = arith.constant dense<0.000000e+00> : vector<16x512xf32>
      %42 = tpu.matmul %40, %41, %cst_30 {dimension_numbers = #tpu.dot_dimension_numbers<[1], [0], [0], [1], [0, 0, 1, 1], [], []>} : vector<16x128xbf16>, vector<128x512xbf16>, vector<16x512xf32> -> vector<16x512xf32>
      %43 = arith.addf %39, %42 : vector<16x512xf32>
      %44 = arith.index_cast %37 : i32 to index
      %c0_31 = arith.constant 0 : index
      %45 = vector.load %arg20[%44, %c0_31] : memref<64x512xf32, #tpu.memory_space<vmem>>, vector<16x512xf32>
      %c0_32 = arith.constant 0 : index
      %c0_33 = arith.constant 0 : index
      %46 = vector.load %arg17[%c0_32, %c0_33] : memref<16x128xbf16, #tpu.memory_space<vmem>>, vector<16x128xbf16>
      %c0_34 = arith.constant 0 : index
      %c0_35 = arith.constant 0 : index
      %47 = vector.load %arg11[%c0_34, %c0_35] : memref<128x512xbf16, #tpu.memory_space<vmem>>, vector<128x512xbf16>
      %cst_36 = arith.constant dense<0.000000e+00> : vector<16x512xf32>
      %48 = tpu.matmul %46, %47, %cst_36 {dimension_numbers = #tpu.dot_dimension_numbers<[1], [0], [0], [1], [0, 0, 1, 1], [], []>} : vector<16x128xbf16>, vector<128x512xbf16>, vector<16x512xf32> -> vector<16x512xf32>
      %49 = arith.addf %45, %48 : vector<16x512xf32>
      %c0_37 = arith.constant 0 : index
      %c0_38 = arith.constant 0 : index
      %50 = vector.load %arg16[%c0_37, %c0_38] : memref<16x128xf32, #tpu.memory_space<vmem>>, vector<16x128xf32>
      %51 = vector.extract_strided_slice %43 {offsets = [0, 0], sizes = [16, 128], strides = [1, 1]} : vector<16x512xf32> to vector<16x128xf32>
      %52 = arith.negf %51 : vector<16x128xf32>
      %53 = math.exp %52 : vector<16x128xf32>
      %cst_39 = arith.constant 1.000000e+00 : f32
      %54 = vector.broadcast %cst_39 : f32 to vector<16x128xf32>
      %55 = arith.addf %54, %53 : vector<16x128xf32>
      %56 = arith.divf %54, %55 : vector<16x128xf32>
      %57 = vector.extract_strided_slice %43 {offsets = [0, 128], sizes = [16, 128], strides = [1, 1]} : vector<16x512xf32> to vector<16x128xf32>
      %58 = arith.negf %57 : vector<16x128xf32>
      %59 = math.exp %58 : vector<16x128xf32>
      %cst_40 = arith.constant 1.000000e+00 : f32
      %60 = vector.broadcast %cst_40 : f32 to vector<16x128xf32>
      %61 = arith.addf %60, %59 : vector<16x128xf32>
      %62 = arith.divf %60, %61 : vector<16x128xf32>
      %63 = vector.extract_strided_slice %43 {offsets = [0, 256], sizes = [16, 128], strides = [1, 1]} : vector<16x512xf32> to vector<16x128xf32>
      %64 = math.tanh %63 : vector<16x128xf32>
      %65 = vector.extract_strided_slice %43 {offsets = [0, 384], sizes = [16, 128], strides = [1, 1]} : vector<16x512xf32> to vector<16x128xf32>
      %66 = arith.negf %65 : vector<16x128xf32>
      %67 = math.exp %66 : vector<16x128xf32>
      %cst_41 = arith.constant 1.000000e+00 : f32
      %68 = vector.broadcast %cst_41 : f32 to vector<16x128xf32>
      %69 = arith.addf %68, %67 : vector<16x128xf32>
      %70 = arith.divf %68, %69 : vector<16x128xf32>
      %71 = arith.mulf %62, %50 : vector<16x128xf32>
      %72 = arith.mulf %56, %64 : vector<16x128xf32>
      %73 = arith.addf %71, %72 : vector<16x128xf32>
      %74 = math.tanh %73 : vector<16x128xf32>
      %75 = arith.mulf %70, %74 : vector<16x128xf32>
      %c0_42 = arith.constant 0 : index
      %c0_43 = arith.constant 0 : index
      %76 = vector.load %arg18[%c0_42, %c0_43] : memref<16x128xf32, #tpu.memory_space<vmem>>, vector<16x128xf32>
      %77 = vector.extract_strided_slice %49 {offsets = [0, 0], sizes = [16, 128], strides = [1, 1]} : vector<16x512xf32> to vector<16x128xf32>
      %78 = arith.negf %77 : vector<16x128xf32>
      %79 = math.exp %78 : vector<16x128xf32>
      %cst_44 = arith.constant 1.000000e+00 : f32
      %80 = vector.broadcast %cst_44 : f32 to vector<16x128xf32>
      %81 = arith.addf %80, %79 : vector<16x128xf32>
      %82 = arith.divf %80, %81 : vector<16x128xf32>
      %83 = vector.extract_strided_slice %49 {offsets = [0, 128], sizes = [16, 128], strides = [1, 1]} : vector<16x512xf32> to vector<16x128xf32>
      %84 = arith.negf %83 : vector<16x128xf32>
      %85 = math.exp %84 : vector<16x128xf32>
      %cst_45 = arith.constant 1.000000e+00 : f32
      %86 = vector.broadcast %cst_45 : f32 to vector<16x128xf32>
      %87 = arith.addf %86, %85 : vector<16x128xf32>
      %88 = arith.divf %86, %87 : vector<16x128xf32>
      %89 = vector.extract_strided_slice %49 {offsets = [0, 256], sizes = [16, 128], strides = [1, 1]} : vector<16x512xf32> to vector<16x128xf32>
      %90 = math.tanh %89 : vector<16x128xf32>
      %91 = vector.extract_strided_slice %49 {offsets = [0, 384], sizes = [16, 128], strides = [1, 1]} : vector<16x512xf32> to vector<16x128xf32>
      %92 = arith.negf %91 : vector<16x128xf32>
      %93 = math.exp %92 : vector<16x128xf32>
      %cst_46 = arith.constant 1.000000e+00 : f32
      %94 = vector.broadcast %cst_46 : f32 to vector<16x128xf32>
      %95 = arith.addf %94, %93 : vector<16x128xf32>
      %96 = arith.divf %94, %95 : vector<16x128xf32>
      %97 = arith.mulf %88, %76 : vector<16x128xf32>
      %98 = arith.mulf %82, %90 : vector<16x128xf32>
      %99 = arith.addf %97, %98 : vector<16x128xf32>
      %100 = math.tanh %99 : vector<16x128xf32>
      %101 = arith.mulf %96, %100 : vector<16x128xf32>
      %102 = vector.broadcast %34 : i32 to vector<16x1xi32>
      %103 = arith.cmpi sgt, %17, %102 : vector<16x1xi32>
      %104 = vector.broadcast %35 : i32 to vector<16x1xi32>
      %105 = arith.cmpi sgt, %17, %104 : vector<16x1xi32>
      %106 = arith.truncf %75 : vector<16x128xf32> to vector<16x128xbf16>
      %c0_47 = arith.constant 0 : index
      %c0_48 = arith.constant 0 : index
      %107 = vector.load %arg15[%c0_47, %c0_48] : memref<16x128xbf16, #tpu.memory_space<vmem>>, vector<16x128xbf16>
      %108 = vector.shape_cast %103 : vector<16x1xi1> to vector<16x1xi1>
      %109 = vector.broadcast %108 : vector<16x1xi1> to vector<16x128xi1>
      %110 = arith.select %109, %106, %107 : vector<16x128xi1>, vector<16x128xbf16>
      %c0_49 = arith.constant 0 : index
      %c0_50 = arith.constant 0 : index
      %111 = vector.load %arg15[%c0_49, %c0_50] : memref<16x128xbf16, #tpu.memory_space<vmem>>, vector<16x128xbf16>
      tpu.vector_store %arg15[%c0_49, %c0_50], %110 {strides = array<i32>} : memref<16x128xbf16, #tpu.memory_space<vmem>>, vector<16x128xbf16>,
      %c0_51 = arith.constant 0 : index
      %c0_52 = arith.constant 0 : index
      %112 = vector.load %arg16[%c0_51, %c0_52] : memref<16x128xf32, #tpu.memory_space<vmem>>, vector<16x128xf32>
      %113 = vector.shape_cast %103 : vector<16x1xi1> to vector<16x1xi1>
      %114 = vector.broadcast %113 : vector<16x1xi1> to vector<16x128xi1>
      %115 = arith.select %114, %73, %112 : vector<16x128xi1>, vector<16x128xf32>
      %c0_53 = arith.constant 0 : index
      %c0_54 = arith.constant 0 : index
      %116 = vector.load %arg16[%c0_53, %c0_54] : memref<16x128xf32, #tpu.memory_space<vmem>>, vector<16x128xf32>
      tpu.vector_store %arg16[%c0_53, %c0_54], %115 {strides = array<i32>} : memref<16x128xf32, #tpu.memory_space<vmem>>, vector<16x128xf32>,
      %117 = arith.truncf %101 : vector<16x128xf32> to vector<16x128xbf16>
      %c0_55 = arith.constant 0 : index
      %c0_56 = arith.constant 0 : index
      %118 = vector.load %arg17[%c0_55, %c0_56] : memref<16x128xbf16, #tpu.memory_space<vmem>>, vector<16x128xbf16>
      %119 = vector.shape_cast %105 : vector<16x1xi1> to vector<16x1xi1>
      %120 = vector.broadcast %119 : vector<16x1xi1> to vector<16x128xi1>
      %121 = arith.select %120, %117, %118 : vector<16x128xi1>, vector<16x128xbf16>
      %c0_57 = arith.constant 0 : index
      %c0_58 = arith.constant 0 : index
      %122 = vector.load %arg17[%c0_57, %c0_58] : memref<16x128xbf16, #tpu.memory_space<vmem>>, vector<16x128xbf16>
      tpu.vector_store %arg17[%c0_57, %c0_58], %121 {strides = array<i32>} : memref<16x128xbf16, #tpu.memory_space<vmem>>, vector<16x128xbf16>,
      %c0_59 = arith.constant 0 : index
      %c0_60 = arith.constant 0 : index
      %123 = vector.load %arg18[%c0_59, %c0_60] : memref<16x128xf32, #tpu.memory_space<vmem>>, vector<16x128xf32>
      %124 = vector.shape_cast %105 : vector<16x1xi1> to vector<16x1xi1>
      %125 = vector.broadcast %124 : vector<16x1xi1> to vector<16x128xi1>
      %126 = arith.select %125, %99, %123 : vector<16x128xi1>, vector<16x128xf32>
      %c0_61 = arith.constant 0 : index
      %c0_62 = arith.constant 0 : index
      %127 = vector.load %arg18[%c0_61, %c0_62] : memref<16x128xf32, #tpu.memory_space<vmem>>, vector<16x128xf32>
      tpu.vector_store %arg18[%c0_61, %c0_62], %126 {strides = array<i32>} : memref<16x128xf32, #tpu.memory_space<vmem>>, vector<16x128xf32>,
      %c1_i32_63 = arith.constant 1 : i32
      %128 = arith.addi %5, %c1_i32_63 : i32
      %c7_i32_64 = arith.constant 7 : i32
      %129 = arith.subi %c7_i32_64, %128 : i32
      %c16_i32_65 = arith.constant 16 : i32
      %130 = arith.muli %c1_i32_63, %c16_i32_65 : i32
      %131 = tpu.assume_multiple %130, 8 : i32
      %132 = arith.index_cast %131 : i32 to index
      %c0_66 = arith.constant 0 : index
      %133 = vector.load %arg19[%132, %c0_66] : memref<64x512xf32, #tpu.memory_space<vmem>>, vector<16x512xf32>
      %c0_67 = arith.constant 0 : index
      %c0_68 = arith.constant 0 : index
      %134 = vector.load %arg15[%c0_67, %c0_68] : memref<16x128xbf16, #tpu.memory_space<vmem>>, vector<16x128xbf16>
      %c0_69 = arith.constant 0 : index
      %c0_70 = arith.constant 0 : index
      %135 = vector.load %arg10[%c0_69, %c0_70] : memref<128x512xbf16, #tpu.memory_space<vmem>>, vector<128x512xbf16>
      %cst_71 = arith.constant dense<0.000000e+00> : vector<16x512xf32>
      %136 = tpu.matmul %134, %135, %cst_71 {dimension_numbers = #tpu.dot_dimension_numbers<[1], [0], [0], [1], [0, 0, 1, 1], [], []>} : vector<16x128xbf16>, vector<128x512xbf16>, vector<16x512xf32> -> vector<16x512xf32>
      %137 = arith.addf %133, %136 : vector<16x512xf32>
      %138 = arith.index_cast %131 : i32 to index
      %c0_72 = arith.constant 0 : index
      %139 = vector.load %arg20[%138, %c0_72] : memref<64x512xf32, #tpu.memory_space<vmem>>, vector<16x512xf32>
      %c0_73 = arith.constant 0 : index
      %c0_74 = arith.constant 0 : index
      %140 = vector.load %arg17[%c0_73, %c0_74] : memref<16x128xbf16, #tpu.memory_space<vmem>>, vector<16x128xbf16>
      %c0_75 = arith.constant 0 : index
      %c0_76 = arith.constant 0 : index
      %141 = vector.load %arg11[%c0_75, %c0_76] : memref<128x512xbf16, #tpu.memory_space<vmem>>, vector<128x512xbf16>
      %cst_77 = arith.constant dense<0.000000e+00> : vector<16x512xf32>
      %142 = tpu.matmul %140, %141, %cst_77 {dimension_numbers = #tpu.dot_dimension_numbers<[1], [0], [0], [1], [0, 0, 1, 1], [], []>} : vector<16x128xbf16>, vector<128x512xbf16>, vector<16x512xf32> -> vector<16x512xf32>
      %143 = arith.addf %139, %142 : vector<16x512xf32>
      %c0_78 = arith.constant 0 : index
      %c0_79 = arith.constant 0 : index
      %144 = vector.load %arg16[%c0_78, %c0_79] : memref<16x128xf32, #tpu.memory_space<vmem>>, vector<16x128xf32>
      %145 = vector.extract_strided_slice %137 {offsets = [0, 0], sizes = [16, 128], strides = [1, 1]} : vector<16x512xf32> to vector<16x128xf32>
      %146 = arith.negf %145 : vector<16x128xf32>
      %147 = math.exp %146 : vector<16x128xf32>
      %cst_80 = arith.constant 1.000000e+00 : f32
      %148 = vector.broadcast %cst_80 : f32 to vector<16x128xf32>
      %149 = arith.addf %148, %147 : vector<16x128xf32>
      %150 = arith.divf %148, %149 : vector<16x128xf32>
      %151 = vector.extract_strided_slice %137 {offsets = [0, 128], sizes = [16, 128], strides = [1, 1]} : vector<16x512xf32> to vector<16x128xf32>
      %152 = arith.negf %151 : vector<16x128xf32>
      %153 = math.exp %152 : vector<16x128xf32>
      %cst_81 = arith.constant 1.000000e+00 : f32
      %154 = vector.broadcast %cst_81 : f32 to vector<16x128xf32>
      %155 = arith.addf %154, %153 : vector<16x128xf32>
      %156 = arith.divf %154, %155 : vector<16x128xf32>
      %157 = vector.extract_strided_slice %137 {offsets = [0, 256], sizes = [16, 128], strides = [1, 1]} : vector<16x512xf32> to vector<16x128xf32>
      %158 = math.tanh %157 : vector<16x128xf32>
      %159 = vector.extract_strided_slice %137 {offsets = [0, 384], sizes = [16, 128], strides = [1, 1]} : vector<16x512xf32> to vector<16x128xf32>
      %160 = arith.negf %159 : vector<16x128xf32>
      %161 = math.exp %160 : vector<16x128xf32>
      %cst_82 = arith.constant 1.000000e+00 : f32
      %162 = vector.broadcast %cst_82 : f32 to vector<16x128xf32>
      %163 = arith.addf %162, %161 : vector<16x128xf32>
      %164 = arith.divf %162, %163 : vector<16x128xf32>
      %165 = arith.mulf %156, %144 : vector<16x128xf32>
      %166 = arith.mulf %150, %158 : vector<16x128xf32>
      %167 = arith.addf %165, %166 : vector<16x128xf32>
      %168 = math.tanh %167 : vector<16x128xf32>
      %169 = arith.mulf %164, %168 : vector<16x128xf32>
      %c0_83 = arith.constant 0 : index
      %c0_84 = arith.constant 0 : index
      %170 = vector.load %arg18[%c0_83, %c0_84] : memref<16x128xf32, #tpu.memory_space<vmem>>, vector<16x128xf32>
      %171 = vector.extract_strided_slice %143 {offsets = [0, 0], sizes = [16, 128], strides = [1, 1]} : vector<16x512xf32> to vector<16x128xf32>
      %172 = arith.negf %171 : vector<16x128xf32>
      %173 = math.exp %172 : vector<16x128xf32>
      %cst_85 = arith.constant 1.000000e+00 : f32
      %174 = vector.broadcast %cst_85 : f32 to vector<16x128xf32>
      %175 = arith.addf %174, %173 : vector<16x128xf32>
      %176 = arith.divf %174, %175 : vector<16x128xf32>
      %177 = vector.extract_strided_slice %143 {offsets = [0, 128], sizes = [16, 128], strides = [1, 1]} : vector<16x512xf32> to vector<16x128xf32>
      %178 = arith.negf %177 : vector<16x128xf32>
      %179 = math.exp %178 : vector<16x128xf32>
      %cst_86 = arith.constant 1.000000e+00 : f32
      %180 = vector.broadcast %cst_86 : f32 to vector<16x128xf32>
      %181 = arith.addf %180, %179 : vector<16x128xf32>
      %182 = arith.divf %180, %181 : vector<16x128xf32>
      %183 = vector.extract_strided_slice %143 {offsets = [0, 256], sizes = [16, 128], strides = [1, 1]} : vector<16x512xf32> to vector<16x128xf32>
      %184 = math.tanh %183 : vector<16x128xf32>
      %185 = vector.extract_strided_slice %143 {offsets = [0, 384], sizes = [16, 128], strides = [1, 1]} : vector<16x512xf32> to vector<16x128xf32>
      %186 = arith.negf %185 : vector<16x128xf32>
      %187 = math.exp %186 : vector<16x128xf32>
      %cst_87 = arith.constant 1.000000e+00 : f32
      %188 = vector.broadcast %cst_87 : f32 to vector<16x128xf32>
      %189 = arith.addf %188, %187 : vector<16x128xf32>
      %190 = arith.divf %188, %189 : vector<16x128xf32>
      %191 = arith.mulf %182, %170 : vector<16x128xf32>
      %192 = arith.mulf %176, %184 : vector<16x128xf32>
      %193 = arith.addf %191, %192 : vector<16x128xf32>
      %194 = math.tanh %193 : vector<16x128xf32>
      %195 = arith.mulf %190, %194 : vector<16x128xf32>
      %196 = vector.broadcast %128 : i32 to vector<16x1xi32>
      %197 = arith.cmpi sgt, %17, %196 : vector<16x1xi32>
      %198 = vector.broadcast %129 : i32 to vector<16x1xi32>
      %199 = arith.cmpi sgt, %17, %198 : vector<16x1xi32>
      %200 = arith.truncf %169 : vector<16x128xf32> to vector<16x128xbf16>
      %c0_88 = arith.constant 0 : index
      %c0_89 = arith.constant 0 : index
      %201 = vector.load %arg15[%c0_88, %c0_89] : memref<16x128xbf16, #tpu.memory_space<vmem>>, vector<16x128xbf16>
      %202 = vector.shape_cast %197 : vector<16x1xi1> to vector<16x1xi1>
      %203 = vector.broadcast %202 : vector<16x1xi1> to vector<16x128xi1>
      %204 = arith.select %203, %200, %201 : vector<16x128xi1>, vector<16x128xbf16>
      %c0_90 = arith.constant 0 : index
      %c0_91 = arith.constant 0 : index
      %205 = vector.load %arg15[%c0_90, %c0_91] : memref<16x128xbf16, #tpu.memory_space<vmem>>, vector<16x128xbf16>
      tpu.vector_store %arg15[%c0_90, %c0_91], %204 {strides = array<i32>} : memref<16x128xbf16, #tpu.memory_space<vmem>>, vector<16x128xbf16>,
      %c0_92 = arith.constant 0 : index
      %c0_93 = arith.constant 0 : index
      %206 = vector.load %arg16[%c0_92, %c0_93] : memref<16x128xf32, #tpu.memory_space<vmem>>, vector<16x128xf32>
      %207 = vector.shape_cast %197 : vector<16x1xi1> to vector<16x1xi1>
      %208 = vector.broadcast %207 : vector<16x1xi1> to vector<16x128xi1>
      %209 = arith.select %208, %167, %206 : vector<16x128xi1>, vector<16x128xf32>
      %c0_94 = arith.constant 0 : index
      %c0_95 = arith.constant 0 : index
      %210 = vector.load %arg16[%c0_94, %c0_95] : memref<16x128xf32, #tpu.memory_space<vmem>>, vector<16x128xf32>
      tpu.vector_store %arg16[%c0_94, %c0_95], %209 {strides = array<i32>} : memref<16x128xf32, #tpu.memory_space<vmem>>, vector<16x128xf32>,
      %211 = arith.truncf %195 : vector<16x128xf32> to vector<16x128xbf16>
      %c0_96 = arith.constant 0 : index
      %c0_97 = arith.constant 0 : index
      %212 = vector.load %arg17[%c0_96, %c0_97] : memref<16x128xbf16, #tpu.memory_space<vmem>>, vector<16x128xbf16>
      %213 = vector.shape_cast %199 : vector<16x1xi1> to vector<16x1xi1>
      %214 = vector.broadcast %213 : vector<16x1xi1> to vector<16x128xi1>
      %215 = arith.select %214, %211, %212 : vector<16x128xi1>, vector<16x128xbf16>
      %c0_98 = arith.constant 0 : index
      %c0_99 = arith.constant 0 : index
      %216 = vector.load %arg17[%c0_98, %c0_99] : memref<16x128xbf16, #tpu.memory_space<vmem>>, vector<16x128xbf16>
      tpu.vector_store %arg17[%c0_98, %c0_99], %215 {strides = array<i32>} : memref<16x128xbf16, #tpu.memory_space<vmem>>, vector<16x128xbf16>,
      %c0_100 = arith.constant 0 : index
      %c0_101 = arith.constant 0 : index
      %217 = vector.load %arg18[%c0_100, %c0_101] : memref<16x128xf32, #tpu.memory_space<vmem>>, vector<16x128xf32>
      %218 = vector.shape_cast %199 : vector<16x1xi1> to vector<16x1xi1>
      %219 = vector.broadcast %218 : vector<16x1xi1> to vector<16x128xi1>
      %220 = arith.select %219, %193, %217 : vector<16x128xi1>, vector<16x128xf32>
      %c0_102 = arith.constant 0 : index
      %c0_103 = arith.constant 0 : index
      %221 = vector.load %arg18[%c0_102, %c0_103] : memref<16x128xf32, #tpu.memory_space<vmem>>, vector<16x128xf32>
      tpu.vector_store %arg18[%c0_102, %c0_103], %220 {strides = array<i32>} : memref<16x128xf32, #tpu.memory_space<vmem>>, vector<16x128xf32>,
      %c2_i32 = arith.constant 2 : i32
      %222 = arith.addi %5, %c2_i32 : i32
      %c7_i32_104 = arith.constant 7 : i32
      %223 = arith.subi %c7_i32_104, %222 : i32
      %c16_i32_105 = arith.constant 16 : i32
      %224 = arith.muli %c2_i32, %c16_i32_105 : i32
      %225 = tpu.assume_multiple %224, 8 : i32
      %226 = arith.index_cast %225 : i32 to index
      %c0_106 = arith.constant 0 : index
      %227 = vector.load %arg19[%226, %c0_106] : memref<64x512xf32, #tpu.memory_space<vmem>>, vector<16x512xf32>
      %c0_107 = arith.constant 0 : index
      %c0_108 = arith.constant 0 : index
      %228 = vector.load %arg15[%c0_107, %c0_108] : memref<16x128xbf16, #tpu.memory_space<vmem>>, vector<16x128xbf16>
      %c0_109 = arith.constant 0 : index
      %c0_110 = arith.constant 0 : index
      %229 = vector.load %arg10[%c0_109, %c0_110] : memref<128x512xbf16, #tpu.memory_space<vmem>>, vector<128x512xbf16>
      %cst_111 = arith.constant dense<0.000000e+00> : vector<16x512xf32>
      %230 = tpu.matmul %228, %229, %cst_111 {dimension_numbers = #tpu.dot_dimension_numbers<[1], [0], [0], [1], [0, 0, 1, 1], [], []>} : vector<16x128xbf16>, vector<128x512xbf16>, vector<16x512xf32> -> vector<16x512xf32>
      %231 = arith.addf %227, %230 : vector<16x512xf32>
      %232 = arith.index_cast %225 : i32 to index
      %c0_112 = arith.constant 0 : index
      %233 = vector.load %arg20[%232, %c0_112] : memref<64x512xf32, #tpu.memory_space<vmem>>, vector<16x512xf32>
      %c0_113 = arith.constant 0 : index
      %c0_114 = arith.constant 0 : index
      %234 = vector.load %arg17[%c0_113, %c0_114] : memref<16x128xbf16, #tpu.memory_space<vmem>>, vector<16x128xbf16>
      %c0_115 = arith.constant 0 : index
      %c0_116 = arith.constant 0 : index
      %235 = vector.load %arg11[%c0_115, %c0_116] : memref<128x512xbf16, #tpu.memory_space<vmem>>, vector<128x512xbf16>
      %cst_117 = arith.constant dense<0.000000e+00> : vector<16x512xf32>
      %236 = tpu.matmul %234, %235, %cst_117 {dimension_numbers = #tpu.dot_dimension_numbers<[1], [0], [0], [1], [0, 0, 1, 1], [], []>} : vector<16x128xbf16>, vector<128x512xbf16>, vector<16x512xf32> -> vector<16x512xf32>
      %237 = arith.addf %233, %236 : vector<16x512xf32>
      %c0_118 = arith.constant 0 : index
      %c0_119 = arith.constant 0 : index
      %238 = vector.load %arg16[%c0_118, %c0_119] : memref<16x128xf32, #tpu.memory_space<vmem>>, vector<16x128xf32>
      %239 = vector.extract_strided_slice %231 {offsets = [0, 0], sizes = [16, 128], strides = [1, 1]} : vector<16x512xf32> to vector<16x128xf32>
      %240 = arith.negf %239 : vector<16x128xf32>
      %241 = math.exp %240 : vector<16x128xf32>
      %cst_120 = arith.constant 1.000000e+00 : f32
      %242 = vector.broadcast %cst_120 : f32 to vector<16x128xf32>
      %243 = arith.addf %242, %241 : vector<16x128xf32>
      %244 = arith.divf %242, %243 : vector<16x128xf32>
      %245 = vector.extract_strided_slice %231 {offsets = [0, 128], sizes = [16, 128], strides = [1, 1]} : vector<16x512xf32> to vector<16x128xf32>
      %246 = arith.negf %245 : vector<16x128xf32>
      %247 = math.exp %246 : vector<16x128xf32>
      %cst_121 = arith.constant 1.000000e+00 : f32
      %248 = vector.broadcast %cst_121 : f32 to vector<16x128xf32>
      %249 = arith.addf %248, %247 : vector<16x128xf32>
      %250 = arith.divf %248, %249 : vector<16x128xf32>
      %251 = vector.extract_strided_slice %231 {offsets = [0, 256], sizes = [16, 128], strides = [1, 1]} : vector<16x512xf32> to vector<16x128xf32>
      %252 = math.tanh %251 : vector<16x128xf32>
      %253 = vector.extract_strided_slice %231 {offsets = [0, 384], sizes = [16, 128], strides = [1, 1]} : vector<16x512xf32> to vector<16x128xf32>
      %254 = arith.negf %253 : vector<16x128xf32>
      %255 = math.exp %254 : vector<16x128xf32>
      %cst_122 = arith.constant 1.000000e+00 : f32
      %256 = vector.broadcast %cst_122 : f32 to vector<16x128xf32>
      %257 = arith.addf %256, %255 : vector<16x128xf32>
      %258 = arith.divf %256, %257 : vector<16x128xf32>
      %259 = arith.mulf %250, %238 : vector<16x128xf32>
      %260 = arith.mulf %244, %252 : vector<16x128xf32>
      %261 = arith.addf %259, %260 : vector<16x128xf32>
      %262 = math.tanh %261 : vector<16x128xf32>
      %263 = arith.mulf %258, %262 : vector<16x128xf32>
      %c0_123 = arith.constant 0 : index
      %c0_124 = arith.constant 0 : index
      %264 = vector.load %arg18[%c0_123, %c0_124] : memref<16x128xf32, #tpu.memory_space<vmem>>, vector<16x128xf32>
      %265 = vector.extract_strided_slice %237 {offsets = [0, 0], sizes = [16, 128], strides = [1, 1]} : vector<16x512xf32> to vector<16x128xf32>
      %266 = arith.negf %265 : vector<16x128xf32>
      %267 = math.exp %266 : vector<16x128xf32>
      %cst_125 = arith.constant 1.000000e+00 : f32
      %268 = vector.broadcast %cst_125 : f32 to vector<16x128xf32>
      %269 = arith.addf %268, %267 : vector<16x128xf32>
      %270 = arith.divf %268, %269 : vector<16x128xf32>
      %271 = vector.extract_strided_slice %237 {offsets = [0, 128], sizes = [16, 128], strides = [1, 1]} : vector<16x512xf32> to vector<16x128xf32>
      %272 = arith.negf %271 : vector<16x128xf32>
      %273 = math.exp %272 : vector<16x128xf32>
      %cst_126 = arith.constant 1.000000e+00 : f32
      %274 = vector.broadcast %cst_126 : f32 to vector<16x128xf32>
      %275 = arith.addf %274, %273 : vector<16x128xf32>
      %276 = arith.divf %274, %275 : vector<16x128xf32>
      %277 = vector.extract_strided_slice %237 {offsets = [0, 256], sizes = [16, 128], strides = [1, 1]} : vector<16x512xf32> to vector<16x128xf32>
      %278 = math.tanh %277 : vector<16x128xf32>
      %279 = vector.extract_strided_slice %237 {offsets = [0, 384], sizes = [16, 128], strides = [1, 1]} : vector<16x512xf32> to vector<16x128xf32>
      %280 = arith.negf %279 : vector<16x128xf32>
      %281 = math.exp %280 : vector<16x128xf32>
      %cst_127 = arith.constant 1.000000e+00 : f32
      %282 = vector.broadcast %cst_127 : f32 to vector<16x128xf32>
      %283 = arith.addf %282, %281 : vector<16x128xf32>
      %284 = arith.divf %282, %283 : vector<16x128xf32>
      %285 = arith.mulf %276, %264 : vector<16x128xf32>
      %286 = arith.mulf %270, %278 : vector<16x128xf32>
      %287 = arith.addf %285, %286 : vector<16x128xf32>
      %288 = math.tanh %287 : vector<16x128xf32>
      %289 = arith.mulf %284, %288 : vector<16x128xf32>
      %290 = vector.broadcast %222 : i32 to vector<16x1xi32>
      %291 = arith.cmpi sgt, %17, %290 : vector<16x1xi32>
      %292 = vector.broadcast %223 : i32 to vector<16x1xi32>
      %293 = arith.cmpi sgt, %17, %292 : vector<16x1xi32>
      %294 = arith.truncf %263 : vector<16x128xf32> to vector<16x128xbf16>
      %c0_128 = arith.constant 0 : index
      %c0_129 = arith.constant 0 : index
      %295 = vector.load %arg15[%c0_128, %c0_129] : memref<16x128xbf16, #tpu.memory_space<vmem>>, vector<16x128xbf16>
      %296 = vector.shape_cast %291 : vector<16x1xi1> to vector<16x1xi1>
      %297 = vector.broadcast %296 : vector<16x1xi1> to vector<16x128xi1>
      %298 = arith.select %297, %294, %295 : vector<16x128xi1>, vector<16x128xbf16>
      %c0_130 = arith.constant 0 : index
      %c0_131 = arith.constant 0 : index
      %299 = vector.load %arg15[%c0_130, %c0_131] : memref<16x128xbf16, #tpu.memory_space<vmem>>, vector<16x128xbf16>
      tpu.vector_store %arg15[%c0_130, %c0_131], %298 {strides = array<i32>} : memref<16x128xbf16, #tpu.memory_space<vmem>>, vector<16x128xbf16>,
      %c0_132 = arith.constant 0 : index
      %c0_133 = arith.constant 0 : index
      %300 = vector.load %arg16[%c0_132, %c0_133] : memref<16x128xf32, #tpu.memory_space<vmem>>, vector<16x128xf32>
      %301 = vector.shape_cast %291 : vector<16x1xi1> to vector<16x1xi1>
      %302 = vector.broadcast %301 : vector<16x1xi1> to vector<16x128xi1>
      %303 = arith.select %302, %261, %300 : vector<16x128xi1>, vector<16x128xf32>
      %c0_134 = arith.constant 0 : index
      %c0_135 = arith.constant 0 : index
      %304 = vector.load %arg16[%c0_134, %c0_135] : memref<16x128xf32, #tpu.memory_space<vmem>>, vector<16x128xf32>
      tpu.vector_store %arg16[%c0_134, %c0_135], %303 {strides = array<i32>} : memref<16x128xf32, #tpu.memory_space<vmem>>, vector<16x128xf32>,
      %305 = arith.truncf %289 : vector<16x128xf32> to vector<16x128xbf16>
      %c0_136 = arith.constant 0 : index
      %c0_137 = arith.constant 0 : index
      %306 = vector.load %arg17[%c0_136, %c0_137] : memref<16x128xbf16, #tpu.memory_space<vmem>>, vector<16x128xbf16>
      %307 = vector.shape_cast %293 : vector<16x1xi1> to vector<16x1xi1>
      %308 = vector.broadcast %307 : vector<16x1xi1> to vector<16x128xi1>
      %309 = arith.select %308, %305, %306 : vector<16x128xi1>, vector<16x128xbf16>
      %c0_138 = arith.constant 0 : index
      %c0_139 = arith.constant 0 : index
      %310 = vector.load %arg17[%c0_138, %c0_139] : memref<16x128xbf16, #tpu.memory_space<vmem>>, vector<16x128xbf16>
      tpu.vector_store %arg17[%c0_138, %c0_139], %309 {strides = array<i32>} : memref<16x128xbf16, #tpu.memory_space<vmem>>, vector<16x128xbf16>,
      %c0_140 = arith.constant 0 : index
      %c0_141 = arith.constant 0 : index
      %311 = vector.load %arg18[%c0_140, %c0_141] : memref<16x128xf32, #tpu.memory_space<vmem>>, vector<16x128xf32>
      %312 = vector.shape_cast %293 : vector<16x1xi1> to vector<16x1xi1>
      %313 = vector.broadcast %312 : vector<16x1xi1> to vector<16x128xi1>
      %314 = arith.select %313, %287, %311 : vector<16x128xi1>, vector<16x128xf32>
      %c0_142 = arith.constant 0 : index
      %c0_143 = arith.constant 0 : index
      %315 = vector.load %arg18[%c0_142, %c0_143] : memref<16x128xf32, #tpu.memory_space<vmem>>, vector<16x128xf32>
      tpu.vector_store %arg18[%c0_142, %c0_143], %314 {strides = array<i32>} : memref<16x128xf32, #tpu.memory_space<vmem>>, vector<16x128xf32>,
      %c3_i32 = arith.constant 3 : i32
      %316 = arith.addi %5, %c3_i32 : i32
      %c7_i32_144 = arith.constant 7 : i32
      %317 = arith.subi %c7_i32_144, %316 : i32
      %c16_i32_145 = arith.constant 16 : i32
      %318 = arith.muli %c3_i32, %c16_i32_145 : i32
      %319 = tpu.assume_multiple %318, 8 : i32
      %320 = arith.index_cast %319 : i32 to index
      %c0_146 = arith.constant 0 : index
      %321 = vector.load %arg19[%320, %c0_146] : memref<64x512xf32, #tpu.memory_space<vmem>>, vector<16x512xf32>
      %c0_147 = arith.constant 0 : index
      %c0_148 = arith.constant 0 : index
      %322 = vector.load %arg15[%c0_147, %c0_148] : memref<16x128xbf16, #tpu.memory_space<vmem>>, vector<16x128xbf16>
      %c0_149 = arith.constant 0 : index
      %c0_150 = arith.constant 0 : index
      %323 = vector.load %arg10[%c0_149, %c0_150] : memref<128x512xbf16, #tpu.memory_space<vmem>>, vector<128x512xbf16>
      %cst_151 = arith.constant dense<0.000000e+00> : vector<16x512xf32>
      %324 = tpu.matmul %322, %323, %cst_151 {dimension_numbers = #tpu.dot_dimension_numbers<[1], [0], [0], [1], [0, 0, 1, 1], [], []>} : vector<16x128xbf16>, vector<128x512xbf16>, vector<16x512xf32> -> vector<16x512xf32>
      %325 = arith.addf %321, %324 : vector<16x512xf32>
      %326 = arith.index_cast %319 : i32 to index
      %c0_152 = arith.constant 0 : index
      %327 = vector.load %arg20[%326, %c0_152] : memref<64x512xf32, #tpu.memory_space<vmem>>, vector<16x512xf32>
      %c0_153 = arith.constant 0 : index
      %c0_154 = arith.constant 0 : index
      %328 = vector.load %arg17[%c0_153, %c0_154] : memref<16x128xbf16, #tpu.memory_space<vmem>>, vector<16x128xbf16>
      %c0_155 = arith.constant 0 : index
      %c0_156 = arith.constant 0 : index
      %329 = vector.load %arg11[%c0_155, %c0_156] : memref<128x512xbf16, #tpu.memory_space<vmem>>, vector<128x512xbf16>
      %cst_157 = arith.constant dense<0.000000e+00> : vector<16x512xf32>
      %330 = tpu.matmul %328, %329, %cst_157 {dimension_numbers = #tpu.dot_dimension_numbers<[1], [0], [0], [1], [0, 0, 1, 1], [], []>} : vector<16x128xbf16>, vector<128x512xbf16>, vector<16x512xf32> -> vector<16x512xf32>
      %331 = arith.addf %327, %330 : vector<16x512xf32>
      %c0_158 = arith.constant 0 : index
      %c0_159 = arith.constant 0 : index
      %332 = vector.load %arg16[%c0_158, %c0_159] : memref<16x128xf32, #tpu.memory_space<vmem>>, vector<16x128xf32>
      %333 = vector.extract_strided_slice %325 {offsets = [0, 0], sizes = [16, 128], strides = [1, 1]} : vector<16x512xf32> to vector<16x128xf32>
      %334 = arith.negf %333 : vector<16x128xf32>
      %335 = math.exp %334 : vector<16x128xf32>
      %cst_160 = arith.constant 1.000000e+00 : f32
      %336 = vector.broadcast %cst_160 : f32 to vector<16x128xf32>
      %337 = arith.addf %336, %335 : vector<16x128xf32>
      %338 = arith.divf %336, %337 : vector<16x128xf32>
      %339 = vector.extract_strided_slice %325 {offsets = [0, 128], sizes = [16, 128], strides = [1, 1]} : vector<16x512xf32> to vector<16x128xf32>
      %340 = arith.negf %339 : vector<16x128xf32>
      %341 = math.exp %340 : vector<16x128xf32>
      %cst_161 = arith.constant 1.000000e+00 : f32
      %342 = vector.broadcast %cst_161 : f32 to vector<16x128xf32>
      %343 = arith.addf %342, %341 : vector<16x128xf32>
      %344 = arith.divf %342, %343 : vector<16x128xf32>
      %345 = vector.extract_strided_slice %325 {offsets = [0, 256], sizes = [16, 128], strides = [1, 1]} : vector<16x512xf32> to vector<16x128xf32>
      %346 = math.tanh %345 : vector<16x128xf32>
      %347 = vector.extract_strided_slice %325 {offsets = [0, 384], sizes = [16, 128], strides = [1, 1]} : vector<16x512xf32> to vector<16x128xf32>
      %348 = arith.negf %347 : vector<16x128xf32>
      %349 = math.exp %348 : vector<16x128xf32>
      %cst_162 = arith.constant 1.000000e+00 : f32
      %350 = vector.broadcast %cst_162 : f32 to vector<16x128xf32>
      %351 = arith.addf %350, %349 : vector<16x128xf32>
      %352 = arith.divf %350, %351 : vector<16x128xf32>
      %353 = arith.mulf %344, %332 : vector<16x128xf32>
      %354 = arith.mulf %338, %346 : vector<16x128xf32>
      %355 = arith.addf %353, %354 : vector<16x128xf32>
      %356 = math.tanh %355 : vector<16x128xf32>
      %357 = arith.mulf %352, %356 : vector<16x128xf32>
      %c0_163 = arith.constant 0 : index
      %c0_164 = arith.constant 0 : index
      %358 = vector.load %arg18[%c0_163, %c0_164] : memref<16x128xf32, #tpu.memory_space<vmem>>, vector<16x128xf32>
      %359 = vector.extract_strided_slice %331 {offsets = [0, 0], sizes = [16, 128], strides = [1, 1]} : vector<16x512xf32> to vector<16x128xf32>
      %360 = arith.negf %359 : vector<16x128xf32>
      %361 = math.exp %360 : vector<16x128xf32>
      %cst_165 = arith.constant 1.000000e+00 : f32
      %362 = vector.broadcast %cst_165 : f32 to vector<16x128xf32>
      %363 = arith.addf %362, %361 : vector<16x128xf32>
      %364 = arith.divf %362, %363 : vector<16x128xf32>
      %365 = vector.extract_strided_slice %331 {offsets = [0, 128], sizes = [16, 128], strides = [1, 1]} : vector<16x512xf32> to vector<16x128xf32>
      %366 = arith.negf %365 : vector<16x128xf32>
      %367 = math.exp %366 : vector<16x128xf32>
      %cst_166 = arith.constant 1.000000e+00 : f32
      %368 = vector.broadcast %cst_166 : f32 to vector<16x128xf32>
      %369 = arith.addf %368, %367 : vector<16x128xf32>
      %370 = arith.divf %368, %369 : vector<16x128xf32>
      %371 = vector.extract_strided_slice %331 {offsets = [0, 256], sizes = [16, 128], strides = [1, 1]} : vector<16x512xf32> to vector<16x128xf32>
      %372 = math.tanh %371 : vector<16x128xf32>
      %373 = vector.extract_strided_slice %331 {offsets = [0, 384], sizes = [16, 128], strides = [1, 1]} : vector<16x512xf32> to vector<16x128xf32>
      %374 = arith.negf %373 : vector<16x128xf32>
      %375 = math.exp %374 : vector<16x128xf32>
      %cst_167 = arith.constant 1.000000e+00 : f32
      %376 = vector.broadcast %cst_167 : f32 to vector<16x128xf32>
      %377 = arith.addf %376, %375 : vector<16x128xf32>
      %378 = arith.divf %376, %377 : vector<16x128xf32>
      %379 = arith.mulf %370, %358 : vector<16x128xf32>
      %380 = arith.mulf %364, %372 : vector<16x128xf32>
      %381 = arith.addf %379, %380 : vector<16x128xf32>
      %382 = math.tanh %381 : vector<16x128xf32>
      %383 = arith.mulf %378, %382 : vector<16x128xf32>
      %384 = vector.broadcast %316 : i32 to vector<16x1xi32>
      %385 = arith.cmpi sgt, %17, %384 : vector<16x1xi32>
      %386 = vector.broadcast %317 : i32 to vector<16x1xi32>
      %387 = arith.cmpi sgt, %17, %386 : vector<16x1xi32>
      %388 = arith.truncf %357 : vector<16x128xf32> to vector<16x128xbf16>
      %c0_168 = arith.constant 0 : index
      %c0_169 = arith.constant 0 : index
      %389 = vector.load %arg15[%c0_168, %c0_169] : memref<16x128xbf16, #tpu.memory_space<vmem>>, vector<16x128xbf16>
      %390 = vector.shape_cast %385 : vector<16x1xi1> to vector<16x1xi1>
      %391 = vector.broadcast %390 : vector<16x1xi1> to vector<16x128xi1>
      %392 = arith.select %391, %388, %389 : vector<16x128xi1>, vector<16x128xbf16>
      %c0_170 = arith.constant 0 : index
      %c0_171 = arith.constant 0 : index
      %393 = vector.load %arg15[%c0_170, %c0_171] : memref<16x128xbf16, #tpu.memory_space<vmem>>, vector<16x128xbf16>
      tpu.vector_store %arg15[%c0_170, %c0_171], %392 {strides = array<i32>} : memref<16x128xbf16, #tpu.memory_space<vmem>>, vector<16x128xbf16>,
      %c0_172 = arith.constant 0 : index
      %c0_173 = arith.constant 0 : index
      %394 = vector.load %arg16[%c0_172, %c0_173] : memref<16x128xf32, #tpu.memory_space<vmem>>, vector<16x128xf32>
      %395 = vector.shape_cast %385 : vector<16x1xi1> to vector<16x1xi1>
      %396 = vector.broadcast %395 : vector<16x1xi1> to vector<16x128xi1>
      %397 = arith.select %396, %355, %394 : vector<16x128xi1>, vector<16x128xf32>
      %c0_174 = arith.constant 0 : index
      %c0_175 = arith.constant 0 : index
      %398 = vector.load %arg16[%c0_174, %c0_175] : memref<16x128xf32, #tpu.memory_space<vmem>>, vector<16x128xf32>
      tpu.vector_store %arg16[%c0_174, %c0_175], %397 {strides = array<i32>} : memref<16x128xf32, #tpu.memory_space<vmem>>, vector<16x128xf32>,
      %399 = arith.truncf %383 : vector<16x128xf32> to vector<16x128xbf16>
      %c0_176 = arith.constant 0 : index
      %c0_177 = arith.constant 0 : index
      %400 = vector.load %arg17[%c0_176, %c0_177] : memref<16x128xbf16, #tpu.memory_space<vmem>>, vector<16x128xbf16>
      %401 = vector.shape_cast %387 : vector<16x1xi1> to vector<16x1xi1>
      %402 = vector.broadcast %401 : vector<16x1xi1> to vector<16x128xi1>
      %403 = arith.select %402, %399, %400 : vector<16x128xi1>, vector<16x128xbf16>
      %c0_178 = arith.constant 0 : index
      %c0_179 = arith.constant 0 : index
      %404 = vector.load %arg17[%c0_178, %c0_179] : memref<16x128xbf16, #tpu.memory_space<vmem>>, vector<16x128xbf16>
      tpu.vector_store %arg17[%c0_178, %c0_179], %403 {strides = array<i32>} : memref<16x128xbf16, #tpu.memory_space<vmem>>, vector<16x128xbf16>,
      %c0_180 = arith.constant 0 : index
      %c0_181 = arith.constant 0 : index
      %405 = vector.load %arg18[%c0_180, %c0_181] : memref<16x128xf32, #tpu.memory_space<vmem>>, vector<16x128xf32>
      %406 = vector.shape_cast %387 : vector<16x1xi1> to vector<16x1xi1>
      %407 = vector.broadcast %406 : vector<16x1xi1> to vector<16x128xi1>
      %408 = arith.select %407, %381, %405 : vector<16x128xi1>, vector<16x128xf32>
      %c0_182 = arith.constant 0 : index
      %c0_183 = arith.constant 0 : index
      %409 = vector.load %arg18[%c0_182, %c0_183] : memref<16x128xf32, #tpu.memory_space<vmem>>, vector<16x128xf32>
      tpu.vector_store %arg18[%c0_182, %c0_183], %408 {strides = array<i32>} : memref<16x128xf32, #tpu.memory_space<vmem>>, vector<16x128xf32>,
      %c4_i32_184 = arith.constant 4 : i32
    } else {
    }
    %c1_i32 = arith.constant 1 : i32
    %14 = arith.cmpi eq, %arg1, %c1_i32 : i32
    %15 = arith.extui %14 : i1 to i32
    %c0_i32_3 = arith.constant 0 : i32
    %16 = arith.cmpi ne, %15, %c0_i32_3 : i32
    scf.if %16 {
      %c0 = arith.constant 0 : index
      %c0_4 = arith.constant 0 : index
      %17 = vector.load %arg15[%c0, %c0_4] : memref<16x128xbf16, #tpu.memory_space<vmem>>, vector<16x128xbf16>
      %c0_5 = arith.constant 0 : index
      %c0_6 = arith.constant 0 : index
      %18 = vector.load %arg17[%c0_5, %c0_6] : memref<16x128xbf16, #tpu.memory_space<vmem>>, vector<16x128xbf16>
      %19 = tpu.concatenate %17, %18 in 1 : vector<16x128xbf16>, vector<16x128xbf16> -> vector<16x256xbf16>
      %c0_7 = arith.constant 0 : index
      %c0_8 = arith.constant 0 : index
      %20 = vector.load %arg12[%c0_7, %c0_8] : memref<256x256xbf16, #tpu.memory_space<vmem>>, vector<256x256xbf16>
      %cst = arith.constant dense<0.000000e+00> : vector<16x256xf32>
      %21 = tpu.matmul %19, %20, %cst {dimension_numbers = #tpu.dot_dimension_numbers<[1], [0], [0], [1], [0, 0, 1, 1], [], []>} : vector<16x256xbf16>, vector<256x256xbf16>, vector<16x256xf32> -> vector<16x256xf32>
      %c0_9 = arith.constant 0 : index
      %c0_10 = arith.constant 0 : index
      %22 = vector.load %arg13[%c0_9, %c0_10] : memref<1x256xf32, #tpu.memory_space<vmem>>, vector<1x256xf32>
      %23 = vector.broadcast %22 : vector<1x256xf32> to vector<16x256xf32>
      %24 = arith.addf %21, %23 : vector<16x256xf32>
      %c0_11 = arith.constant 0 : index
      %c0_12 = arith.constant 0 : index
      %25 = vector.load %arg14[%c0_11, %c0_12] : memref<16x256xf32, #tpu.memory_space<vmem>>, vector<16x256xf32>
      tpu.vector_store %arg14[%c0_11, %c0_12], %24 {strides = array<i32>} : memref<16x256xf32, #tpu.memory_space<vmem>>, vector<16x256xf32>,
    } else {
    }
    return
  }
  func.func @transform_0(%arg0: i32, %arg1: i32, %arg2: memref<1xi32, #tpu.memory_space<smem>>) -> (i32, i32) {
    %c0_i32 = arith.constant 0 : i32
    %c0_i32_0 = arith.constant 0 : i32
    return %arg0, %c0_i32 : i32, i32
  }
  func.func @transform_1(%arg0: i32, %arg1: i32, %arg2: memref<1xi32, #tpu.memory_space<smem>>) -> (i32, i32, i32) {
    %c0_i32 = arith.constant 0 : i32
    %c0_i32_0 = arith.constant 0 : i32
    return %arg1, %arg0, %c0_i32 : i32, i32, i32
  }
  func.func @transform_2(%arg0: i32, %arg1: i32, %arg2: memref<1xi32, #tpu.memory_space<smem>>) -> (i32, i32, i32) {
    %c0_i32 = arith.constant 0 : i32
    %c0_i32_0 = arith.constant 0 : i32
    return %arg1, %arg0, %c0_i32 : i32, i32, i32
  }
  func.func @transform_3(%arg0: i32, %arg1: i32, %arg2: memref<1xi32, #tpu.memory_space<smem>>) -> (i32, i32) {
    %c0_i32 = arith.constant 0 : i32
    %c0_i32_0 = arith.constant 0 : i32
    %c0_i32_1 = arith.constant 0 : i32
    return %c0_i32, %c0_i32_0 : i32, i32
  }
  func.func @transform_4(%arg0: i32, %arg1: i32, %arg2: memref<1xi32, #tpu.memory_space<smem>>) -> (i32, i32) {
    %c0_i32 = arith.constant 0 : i32
    %c0_i32_0 = arith.constant 0 : i32
    %c0_i32_1 = arith.constant 0 : i32
    return %c0_i32, %c0_i32_0 : i32, i32
  }
  func.func @transform_5(%arg0: i32, %arg1: i32, %arg2: memref<1xi32, #tpu.memory_space<smem>>) -> (i32, i32) {
    %c0_i32 = arith.constant 0 : i32
    %c0_i32_0 = arith.constant 0 : i32
    %c0_i32_1 = arith.constant 0 : i32
    return %c0_i32, %c0_i32_0 : i32, i32
  }
  func.func @transform_6(%arg0: i32, %arg1: i32, %arg2: memref<1xi32, #tpu.memory_space<smem>>) -> (i32, i32) {
    %c0_i32 = arith.constant 0 : i32
    %c0_i32_0 = arith.constant 0 : i32
    %c0_i32_1 = arith.constant 0 : i32
    return %c0_i32, %c0_i32_0 : i32, i32
  }
  func.func @transform_7(%arg0: i32, %arg1: i32, %arg2: memref<1xi32, #tpu.memory_space<smem>>) -> (i32, i32) {
    %c0_i32 = arith.constant 0 : i32
    %c0_i32_0 = arith.constant 0 : i32
    %c0_i32_1 = arith.constant 0 : i32
    return %c0_i32, %c0_i32_0 : i32, i32
  }
  func.func @transform_8(%arg0: i32, %arg1: i32, %arg2: memref<1xi32, #tpu.memory_space<smem>>) -> (i32, i32) {
    %c0_i32 = arith.constant 0 : i32
    %c0_i32_0 = arith.constant 0 : i32
    %c0_i32_1 = arith.constant 0 : i32
    return %c0_i32, %c0_i32_0 : i32, i32
  }
  func.func @transform_9(%arg0: i32, %arg1: i32, %arg2: memref<1xi32, #tpu.memory_space<smem>>) -> (i32, i32) {
    %c0_i32 = arith.constant 0 : i32
    %c0_i32_0 = arith.constant 0 : i32
    %c0_i32_1 = arith.constant 0 : i32
    return %c0_i32, %c0_i32_0 : i32, i32
  }
  func.func @transform_10(%arg0: i32, %arg1: i32, %arg2: memref<1xi32, #tpu.memory_space<smem>>) -> (i32, i32) {
    %c0_i32 = arith.constant 0 : i32
    %c0_i32_0 = arith.constant 0 : i32
    %c0_i32_1 = arith.constant 0 : i32
    return %c0_i32, %c0_i32_0 : i32, i32
  }
  func.func @transform_11(%arg0: i32, %arg1: i32, %arg2: memref<1xi32, #tpu.memory_space<smem>>) -> (i32, i32) {
    %c0_i32 = arith.constant 0 : i32
    %c0_i32_0 = arith.constant 0 : i32
    return %arg0, %c0_i32 : i32, i32
  }
}

</mosaic_0001>

<llo_original>
// kernel: tpu_custom_call.1
$region0: #{tpu_custom_call.1}
  #allocation0 [shape = 'u32[]', space=smem, size = 0x4, offset = 0x4, fixed_abs, tag = 'smem constant byte address 0x4 - core index']
  #allocation1 [shape = 'u32[144,128]{1,0:T(1,128)}', space=vmem, size = 0x12000, scoped, tag = 'internal scratch']
  #allocation2 [shape = 'bf16[16,128]{1,0:T(16,128)(2,1)}', space=vmem, size = 0x1000, scoped, tag = 'scratch operand']
  #allocation3 [shape = 'f32[16,128]{1,0:T(8,128)}', space=vmem, size = 0x2000, scoped, tag = 'scratch operand']
  #allocation4 [shape = 'bf16[16,128]{1,0:T(16,128)(2,1)}', space=vmem, size = 0x1000, scoped, tag = 'scratch operand']
  #allocation5 [shape = 'f32[16,128]{1,0:T(8,128)}', space=vmem, size = 0x2000, scoped, tag = 'scratch operand']
  #allocation6 [shape = 'f32[64,512]{1,0:T(8,128)}', space=vmem, size = 0x20000, scoped, tag = 'scratch operand']
  #allocation7 [shape = 'f32[64,512]{1,0:T(8,128)}', space=vmem, size = 0x20000, scoped, tag = 'scratch operand']
  #allocation8 [shape = 's32[1]{0}', space=sflag, size = 0x4, scoped, tag = 'scoped memory for tpu_custom_call.1']
  #allocation9 [shape = 's32[1]{0:T(128)S(6)}', space=smem, size = 0x200, scoped, tag = 'prefetched SMEM operand 0']
  %s0 = inlined_call_operand.<no memory space> [shape: s32[1], index: 0, kind: input, shape index: {}]
  %s1 = inlined_call_operand.vmem [shape: s32[16,1], index: 1, kind: input, shape index: {}]
  %s2 = inlined_call_operand.hbm [shape: bf16[8,16,32], index: 2, kind: input, shape index: {}]
  %s3 = inlined_call_operand.hbm [shape: bf16[8,16,32], index: 3, kind: input, shape index: {}]
  %s4 = inlined_call_operand.hbm [shape: bf16[32,512], index: 4, kind: input, shape index: {}]
  %s5 = inlined_call_operand.hbm [shape: bf16[32,512], index: 5, kind: input, shape index: {}]
  %s6 = inlined_call_operand.vmem [shape: f32[1,512], index: 6, kind: input, shape index: {}]
  %s7 = inlined_call_operand.vmem [shape: f32[1,512], index: 7, kind: input, shape index: {}]
  %s8 = inlined_call_operand.hbm [shape: bf16[128,512], index: 8, kind: input, shape index: {}]
  %s9 = inlined_call_operand.hbm [shape: bf16[128,512], index: 9, kind: input, shape index: {}]
  %s10 = inlined_call_operand.hbm [shape: bf16[256,256], index: 10, kind: input, shape index: {}]
  %s11 = inlined_call_operand.vmem [shape: f32[1,256], index: 11, kind: input, shape index: {}]
  %s12 = inlined_call_operand.hbm [shape: f32[16,256], index: 12, kind: output, shape index: {}]
  %s13 = sld [smem:[#allocation0]]
  $region117: #{tpu_custom_call.1} parent=0
    _
  %s15 = ssub.s32 1, %s13
  %s16 = scalar_select 0, %s15, %s13
  %17 = sst [smem:[#allocation9]] %s0
  $region1: #{tpu_custom_call.1} parent=0
    #allocation10 [shape = 'u8[32768]{0}', space=vmem, size = 0x8000, scoped, tag = 'input window, operand 2']
    #allocation11 [shape = 's32[2]{0}', space=sflag, size = 0x8, scoped, tag = 'scoped memory for tpu_custom_call.1']
    #allocation12 [shape = 's32[2]{0}', space=sflag, size = 0x8, scoped, tag = 'scoped memory for tpu_custom_call.1']
    #allocation13 [shape = 'u8[32768]{0}', space=vmem, size = 0x8000, scoped, tag = 'input window, operand 3']
    #allocation14 [shape = 's32[2]{0}', space=sflag, size = 0x8, scoped, tag = 'scoped memory for tpu_custom_call.1']
    #allocation15 [shape = 'u8[32768]{0}', space=vmem, size = 0x8000, scoped, tag = 'input window, operand 4, single buffered']
    #allocation16 [shape = 'u8[32768]{0}', space=vmem, size = 0x8000, scoped, tag = 'input window, operand 5, single buffered']
    #allocation17 [shape = 's32[1]{0}', space=sflag, size = 0x4, scoped, tag = 'scoped memory for tpu_custom_call.1']
    #allocation18 [shape = 'u8[131072]{0}', space=vmem, size = 0x20000, scoped, tag = 'input window, operand 8, single buffered']
    #allocation19 [shape = 'u8[131072]{0}', space=vmem, size = 0x20000, scoped, tag = 'input window, operand 9, single buffered']
    #allocation20 [shape = 's32[1]{0}', space=sflag, size = 0x4, scoped, tag = 'scoped memory for tpu_custom_call.1']
    #allocation21 [shape = 'u8[131072]{0}', space=vmem, size = 0x20000, scoped, tag = 'input window, operand 10, single buffered']
    #allocation22 [shape = 'u8[16384]{0}', space=vmem, size = 0x4000, scoped, tag = 'output window, operand 0, single buffered']
    %18 = vsyncpa [#allocation11], 0
    %s19 = scalar_lea.sflag [#allocation11], 1
    %20 = vsyncpa %s19, 0
    %21 = vsyncpa [#allocation14], 0
    %s22 = scalar_lea.sflag [#allocation14], 1
    %23 = vsyncpa %s22, 0
    %24 = vsyncpa [#allocation17], 0
    %25 = vsyncpa [#allocation20], 0
    %26 = vsyncpa [#allocation12], 0
    loop: start=0, step=1, limit=4
    $region2: #{tpu_custom_call.1} parent=1 // loop_pre_header
      _
    $region3: #{tpu_custom_call.1} parent=1 // loop_header
      %s28 = sphi 0, %s32
      %p29 = scmp.ge.s32.totalorder %s28, 4
      %s35 = sphi 0, %s47
      %s36 = sphi 0, %s43
      %s37 = sphi 0, %s35
      %s38 = sphi 0, %s36
      %s39 = sphi 0, %s37
      %s40 = sphi 0, %s38
      %s50 = sphi 0, %s52
      %s53 = sphi 0, %s50
      %s54 = sphi 0, %s53
      %s70 = sphi 0, %s54
      %s78 = sphi 0, %s80
      %s81 = sphi 0, %s78
      %s82 = sphi 0, %s81
      %s98 = sphi 0, %s82
      %s106 = sphi 0, %s108
      %s109 = sphi 0, %s106
      %s110 = sphi 0, %s109
      %s126 = sphi 0, %s110
      %s130 = sphi 0, %s130
      %s132 = sphi 0, %s130
      %s133 = sphi 0, %s132
      %s147 = sphi 0, %s133
      %s151 = sphi 0, %s151
      %s153 = sphi 0, %s151
      %s154 = sphi 0, %s153
      %s168 = sphi 0, %s154
      %s172 = sphi 0, %s172
      %s174 = sphi 0, %s172
      %s175 = sphi 0, %s174
      %s189 = sphi 0, %s175
      %s193 = sphi 0, %s193
      %s195 = sphi 0, %s193
      %s196 = sphi 0, %s195
      %s210 = sphi 0, %s196
      %s214 = sphi 0, %s214
      %s216 = sphi 0, %s214
      %s217 = sphi 0, %s216
      %s231 = sphi 0, %s217
      %s235 = sphi 0, %s235
      %s237 = sphi 0, %s235
      %s238 = sphi 0, %s237
      %s252 = sphi 0, %s238
      %s256 = sphi 0, %s256
      %s258 = sphi 0, %s256
      %s259 = sphi 0, %s258
      %s273 = sphi 0, %s259
      %s277 = sphi 0, %s277
      %s279 = sphi 0, %s277
      %s280 = sphi 0, %s279
      %s294 = sphi 0, %s280
      %s300 = sphi 0, %s302
      %s303 = sphi 0, %s300
      %s304 = sphi 0, %s303
      %s320 = sphi 0, %s304
    $region4: #{tpu_custom_call.1} parent=1 // loop_header_branch
      %31 = sbr.rel (%p29) target = $region8
    $region5: #{tpu_custom_call.1} parent=1 // loop_body
      %s33 = ssub.s32 %s28, 1
      %s34 = ssub.s32 %s28, 2
      %s41 = sadd.s32 1, %s36
      %p42 = scmp.ge.s32.totalorder %s41, 2
      %s43 = scalar_select %p42, 0, %s41
      %s44 = sadd.s32 1, %s35
      %s45 = scalar_select %p42, %s44, %s35
      %p46 = scmp.ge.s32.totalorder %s45, 1
      %s47 = scalar_select %p46, 0, %s45
      %s48 = ssub.s32 %s35, %s47
      %p49 = scmp.eq.s32.totalorder %s48, 0
      %s51 = sadd.s32 %s50, 1
      %s52 = scalar_select %p49, %s50, %s51
      %p55 = pneg %p49
      %p56 = scmp.eq.s32.totalorder %s28, 1
      %p57 = por %p55, %p56
      %p58 = scmp.ne.s32.totalorder %s50, %s53
      %p59 = scmp.eq.s32.totalorder %s28, 0
      %p60 = por %p58, %p59
      %p61 = scmp.ne.s32.totalorder %s50, %s53
      %p62 = scmp.eq.s32.totalorder %s33, 1
      %p63 = por %p61, %p62
      %p64 = scmp.ne.s32.totalorder %s53, %s54
      %p65 = scmp.eq.s32.totalorder %s33, 0
      %p66 = por %p64, %p65
      %p67 = scmp.ne.s32.totalorder %s53, %s54
      %p68 = scmp.eq.s32.totalorder %s34, 1
      %p69 = por %p67, %p68
      %p71 = scmp.ne.s32.totalorder %s54, %s70
      %p72 = scmp.eq.s32.totalorder %s34, 0
      %p73 = por %p71, %p72
      %s74 = ssub.s32 %s36, %s43
      %s75 = ssub.s32 %s35, %s47
      %s76 = sor.u32 %s74, %s75
      %p77 = scmp.eq.s32.totalorder %s76, 0
      %s79 = sadd.s32 %s78, 1
      %s80 = scalar_select %p77, %s78, %s79
      %p83 = pneg %p77
      %p84 = scmp.eq.s32.totalorder %s28, 1
      %p85 = por %p83, %p84
      %p86 = scmp.ne.s32.totalorder %s78, %s81
      %p87 = scmp.eq.s32.totalorder %s28, 0
      %p88 = por %p86, %p87
      %p89 = scmp.ne.s32.totalorder %s78, %s81
      %p90 = scmp.eq.s32.totalorder %s33, 1
      %p91 = por %p89, %p90
      %p92 = scmp.ne.s32.totalorder %s81, %s82
      %p93 = scmp.eq.s32.totalorder %s33, 0
      %p94 = por %p92, %p93
      %p95 = scmp.ne.s32.totalorder %s81, %s82
      %p96 = scmp.eq.s32.totalorder %s34, 1
      %p97 = por %p95, %p96
      %p99 = scmp.ne.s32.totalorder %s82, %s98
      %p100 = scmp.eq.s32.totalorder %s34, 0
      %p101 = por %p99, %p100
      %s102 = ssub.s32 %s36, %s43
      %s103 = ssub.s32 %s35, %s47
      %s104 = sor.u32 %s102, %s103
      %p105 = scmp.eq.s32.totalorder %s104, 0
      %s107 = sadd.s32 %s106, 1
      %s108 = scalar_select %p105, %s106, %s107
      %p111 = pneg %p105
      %p112 = scmp.eq.s32.totalorder %s28, 1
      %p113 = por %p111, %p112
      %p114 = scmp.ne.s32.totalorder %s106, %s109
      %p115 = scmp.eq.s32.totalorder %s28, 0
      %p116 = por %p114, %p115
      %p117 = scmp.ne.s32.totalorder %s106, %s109
      %p118 = scmp.eq.s32.totalorder %s33, 1
      %p119 = por %p117, %p118
      %p120 = scmp.ne.s32.totalorder %s109, %s110
      %p121 = scmp.eq.s32.totalorder %s33, 0
      %p122 = por %p120, %p121
      %p123 = scmp.ne.s32.totalorder %s109, %s110
      %p124 = scmp.eq.s32.totalorder %s34, 1
      %p125 = por %p123, %p124
      %p127 = scmp.ne.s32.totalorder %s110, %s126
      %p128 = scmp.eq.s32.totalorder %s34, 0
      %p129 = por %p127, %p128
      %s131 = sadd.s32 %s130, 1
      %p134 = scmp.eq.s32.totalorder %s28, 1
      %p135 = scmp.ne.s32.totalorder %s130, %s132
      %p136 = scmp.eq.s32.totalorder %s28, 0
      %p137 = por %p135, %p136
      %p138 = scmp.ne.s32.totalorder %s130, %s132
      %p139 = scmp.eq.s32.totalorder %s33, 1
      %p140 = por %p138, %p139
      %p141 = scmp.ne.s32.totalorder %s132, %s133
      %p142 = scmp.eq.s32.totalorder %s33, 0
      %p143 = por %p141, %p142
      %p144 = scmp.ne.s32.totalorder %s132, %s133
      %p145 = scmp.eq.s32.totalorder %s34, 1
      %p146 = por %p144, %p145
      %p148 = scmp.ne.s32.totalorder %s133, %s147
      %p149 = scmp.eq.s32.totalorder %s34, 0
      %p150 = por %p148, %p149
      %s152 = sadd.s32 %s151, 1
      %p155 = scmp.eq.s32.totalorder %s28, 1
      %p156 = scmp.ne.s32.totalorder %s151, %s153
      %p157 = scmp.eq.s32.totalorder %s28, 0
      %p158 = por %p156, %p157
      %p159 = scmp.ne.s32.totalorder %s151, %s153
      %p160 = scmp.eq.s32.totalorder %s33, 1
      %p161 = por %p159, %p160
      %p162 = scmp.ne.s32.totalorder %s153, %s154
      %p163 = scmp.eq.s32.totalorder %s33, 0
      %p164 = por %p162, %p163
      %p165 = scmp.ne.s32.totalorder %s153, %s154
      %p166 = scmp.eq.s32.totalorder %s34, 1
      %p167 = por %p165, %p166
      %p169 = scmp.ne.s32.totalorder %s154, %s168
      %p170 = scmp.eq.s32.totalorder %s34, 0
      %p171 = por %p169, %p170
      %s173 = sadd.s32 %s172, 1
      %p176 = scmp.eq.s32.totalorder %s28, 1
      %p177 = scmp.ne.s32.totalorder %s172, %s174
      %p178 = scmp.eq.s32.totalorder %s28, 0
      %p179 = por %p177, %p178
      %p180 = scmp.ne.s32.totalorder %s172, %s174
      %p181 = scmp.eq.s32.totalorder %s33, 1
      %p182 = por %p180, %p181
      %p183 = scmp.ne.s32.totalorder %s174, %s175
      %p184 = scmp.eq.s32.totalorder %s33, 0
      %p185 = por %p183, %p184
      %p186 = scmp.ne.s32.totalorder %s174, %s175
      %p187 = scmp.eq.s32.totalorder %s34, 1
      %p188 = por %p186, %p187
      %p190 = scmp.ne.s32.totalorder %s175, %s189
      %p191 = scmp.eq.s32.totalorder %s34, 0
      %p192 = por %p190, %p191
      %s194 = sadd.s32 %s193, 1
      %p197 = scmp.eq.s32.totalorder %s28, 1
      %p198 = scmp.ne.s32.totalorder %s193, %s195
      %p199 = scmp.eq.s32.totalorder %s28, 0
      %p200 = por %p198, %p199
      %p201 = scmp.ne.s32.totalorder %s193, %s195
      %p202 = scmp.eq.s32.totalorder %s33, 1
      %p203 = por %p201, %p202
      %p204 = scmp.ne.s32.totalorder %s195, %s196
      %p205 = scmp.eq.s32.totalorder %s33, 0
      %p206 = por %p204, %p205
      %p207 = scmp.ne.s32.totalorder %s195, %s196
      %p208 = scmp.eq.s32.totalorder %s34, 1
      %p209 = por %p207, %p208
      %p211 = scmp.ne.s32.totalorder %s196, %s210
      %p212 = scmp.eq.s32.totalorder %s34, 0
      %p213 = por %p211, %p212
      %s215 = sadd.s32 %s214, 1
      %p218 = scmp.eq.s32.totalorder %s28, 1
      %p219 = scmp.ne.s32.totalorder %s214, %s216
      %p220 = scmp.eq.s32.totalorder %s28, 0
      %p221 = por %p219, %p220
      %p222 = scmp.ne.s32.totalorder %s214, %s216
      %p223 = scmp.eq.s32.totalorder %s33, 1
      %p224 = por %p222, %p223
      %p225 = scmp.ne.s32.totalorder %s216, %s217
      %p226 = scmp.eq.s32.totalorder %s33, 0
      %p227 = por %p225, %p226
      %p228 = scmp.ne.s32.totalorder %s216, %s217
      %p229 = scmp.eq.s32.totalorder %s34, 1
      %p230 = por %p228, %p229
      %p232 = scmp.ne.s32.totalorder %s217, %s231
      %p233 = scmp.eq.s32.totalorder %s34, 0
      %p234 = por %p232, %p233
      %s236 = sadd.s32 %s235, 1
      %p239 = scmp.eq.s32.totalorder %s28, 1
      %p240 = scmp.ne.s32.totalorder %s235, %s237
      %p241 = scmp.eq.s32.totalorder %s28, 0
      %p242 = por %p240, %p241
      %p243 = scmp.ne.s32.totalorder %s235, %s237
      %p244 = scmp.eq.s32.totalorder %s33, 1
      %p245 = por %p243, %p244
      %p246 = scmp.ne.s32.totalorder %s237, %s238
      %p247 = scmp.eq.s32.totalorder %s33, 0
      %p248 = por %p246, %p247
      %p249 = scmp.ne.s32.totalorder %s237, %s238
      %p250 = scmp.eq.s32.totalorder %s34, 1
      %p251 = por %p249, %p250
      %p253 = scmp.ne.s32.totalorder %s238, %s252
      %p254 = scmp.eq.s32.totalorder %s34, 0
      %p255 = por %p253, %p254
      %s257 = sadd.s32 %s256, 1
      %p260 = scmp.eq.s32.totalorder %s28, 1
      %p261 = scmp.ne.s32.totalorder %s256, %s258
      %p262 = scmp.eq.s32.totalorder %s28, 0
      %p263 = por %p261, %p262
      %p264 = scmp.ne.s32.totalorder %s256, %s258
      %p265 = scmp.eq.s32.totalorder %s33, 1
      %p266 = por %p264, %p265
      %p267 = scmp.ne.s32.totalorder %s258, %s259
      %p268 = scmp.eq.s32.totalorder %s33, 0
      %p269 = por %p267, %p268
      %p270 = scmp.ne.s32.totalorder %s258, %s259
      %p271 = scmp.eq.s32.totalorder %s34, 1
      %p272 = por %p270, %p271
      %p274 = scmp.ne.s32.totalorder %s259, %s273
      %p275 = scmp.eq.s32.totalorder %s34, 0
      %p276 = por %p274, %p275
      %s278 = sadd.s32 %s277, 1
      %p281 = scmp.eq.s32.totalorder %s28, 1
      %p282 = scmp.ne.s32.totalorder %s277, %s279
      %p283 = scmp.eq.s32.totalorder %s28, 0
      %p284 = por %p282, %p283
      %p285 = scmp.ne.s32.totalorder %s277, %s279
      %p286 = scmp.eq.s32.totalorder %s33, 1
      %p287 = por %p285, %p286
      %p288 = scmp.ne.s32.totalorder %s279, %s280
      %p289 = scmp.eq.s32.totalorder %s33, 0
      %p290 = por %p288, %p289
      %p291 = scmp.ne.s32.totalorder %s279, %s280
      %p292 = scmp.eq.s32.totalorder %s34, 1
      %p293 = por %p291, %p292
      %p295 = scmp.ne.s32.totalorder %s280, %s294
      %p296 = scmp.eq.s32.totalorder %s34, 0
      %p297 = por %p295, %p296
      %s298 = ssub.s32 %s35, %s47
      %p299 = scmp.eq.s32.totalorder %s298, 0
      %s301 = sadd.s32 %s300, 1
      %s302 = scalar_select %p299, %s300, %s301
      %p305 = pneg %p299
      %p306 = scmp.eq.s32.totalorder %s28, 1
      %p307 = por %p305, %p306
      %p308 = scmp.ne.s32.totalorder %s300, %s303
      %p309 = scmp.eq.s32.totalorder %s28, 0
      %p310 = por %p308, %p309
      %p311 = scmp.ne.s32.totalorder %s300, %s303
      %p312 = scmp.eq.s32.totalorder %s33, 1
      %p313 = por %p311, %p312
      %p314 = scmp.ne.s32.totalorder %s303, %s304
      %p315 = scmp.eq.s32.totalorder %s33, 0
      %p316 = por %p314, %p315
      %p317 = scmp.ne.s32.totalorder %s303, %s304
      %p318 = scmp.eq.s32.totalorder %s34, 1
      %p319 = por %p317, %p318
      %p321 = scmp.ne.s32.totalorder %s304, %s320
      %p322 = scmp.eq.s32.totalorder %s34, 0
      %p323 = por %p321, %p322
      %p324 = scmp.le.s32.totalorder 1, %s28
      %p325 = scmp.lt.s32.totalorder %s28, 3
      %p326 = pnand %p324, %p325
      %p327 = pneg %p326
      // Predicated region
      $region9: #{tpu_custom_call.1} parent=5 // pred_check
        _
      $region10: #{tpu_custom_call.1} parent=5 // pred_check_branch
        %329 = sbr.rel (%p326) target = $region12
      $region11: #{tpu_custom_call.1} parent=5 // pred_region
        %s330 = ssub.s32 %s28, 1
        // Predicated region
        $region13: #{tpu_custom_call.1} parent=11 // pred_check
          %p331 = pneg %p66
        $region14: #{tpu_custom_call.1} parent=11 // pred_check_branch
          %333 = sbr.rel (%p331) target = $region16
        $region15: #{tpu_custom_call.1} parent=11 // pred_region
          %s334 = smul.u32 2, %s37
          %p335 = scmp.lt.s32.totalorder %s334, 1
          %s336 = scalar_select %p335, %s334, 1
          %s337 = smul.addr %s336, 8
          %s338 = scalar_lea.vmem %s1, %s337
          %s339 = smul.u32 2, %s37
        $region16: #{tpu_custom_call.1} parent=11 // pred_fallthru
          _
        // Predicated region
        $region17: #{tpu_custom_call.1} parent=11 // pred_check
          %p340 = pneg %p143
        $region18: #{tpu_custom_call.1} parent=11 // pred_check_branch
          %342 = sbr.rel (%p340) target = $region20
        $region19: #{tpu_custom_call.1} parent=11 // pred_region
          %s344 = ssub.s32 1024, 1024
          %345 = vsyncadd [#allocation14], %s344
          %s346 = sshll.u32 [#allocation15], 4
          %s347 = int_to_ptr.vmem [resolvable:$true] %s346
          %352 = dma.hbm_to_vmem [thread:$0]  %s4, 1024, %s347, [#allocation14], 256, 256, 16
        $region20: #{tpu_custom_call.1} parent=11 // pred_fallthru
          _
        // Predicated region
        $region21: #{tpu_custom_call.1} parent=11 // pred_check
          %p353 = pneg %p164
        $region22: #{tpu_custom_call.1} parent=11 // pred_check_branch
          %355 = sbr.rel (%p353) target = $region24
        $region23: #{tpu_custom_call.1} parent=11 // pred_region
          %s357 = ssub.s32 1024, 1024
          %358 = vsyncadd [#allocation17], %s357
          %s359 = sshll.u32 [#allocation16], 4
          %s360 = int_to_ptr.vmem [resolvable:$true] %s359
          %365 = dma.hbm_to_vmem [thread:$0]  %s5, 1024, %s360, [#allocation17], 256, 256, 16
        $region24: #{tpu_custom_call.1} parent=11 // pred_fallthru
          _
        // Predicated region
        $region25: #{tpu_custom_call.1} parent=11 // pred_check
          %p366 = pneg %p185
        $region26: #{tpu_custom_call.1} parent=11 // pred_check_branch
          %368 = sbr.rel (%p366) target = $region28
        $region27: #{tpu_custom_call.1} parent=11 // pred_region
          _
        $region28: #{tpu_custom_call.1} parent=11 // pred_fallthru
          _
        // Predicated region
        $region29: #{tpu_custom_call.1} parent=11 // pred_check
          %p369 = pneg %p206
        $region30: #{tpu_custom_call.1} parent=11 // pred_check_branch
          %371 = sbr.rel (%p369) target = $region32
        $region31: #{tpu_custom_call.1} parent=11 // pred_region
          _
        $region32: #{tpu_custom_call.1} parent=11 // pred_fallthru
          _
        // Predicated region
        $region33: #{tpu_custom_call.1} parent=11 // pred_check
          %p372 = pneg %p227
        $region34: #{tpu_custom_call.1} parent=11 // pred_check_branch
          %374 = sbr.rel (%p372) target = $region36
        $region35: #{tpu_custom_call.1} parent=11 // pred_region
          %s376 = ssub.s32 4096, 4096
          %377 = vsyncadd [#allocation17], %s376
          %s378 = sshll.u32 [#allocation18], 4
          %s379 = int_to_ptr.vmem [resolvable:$true] %s378
          %384 = dma.hbm_to_vmem [thread:$0]  %s8, 4096, %s379, [#allocation17], 256, 256, 16
        $region36: #{tpu_custom_call.1} parent=11 // pred_fallthru
          _
        // Predicated region
        $region37: #{tpu_custom_call.1} parent=11 // pred_check
          %p385 = pneg %p248
        $region38: #{tpu_custom_call.1} parent=11 // pred_check_branch
          %387 = sbr.rel (%p385) target = $region40
        $region39: #{tpu_custom_call.1} parent=11 // pred_region
          %s389 = ssub.s32 4096, 4096
          %390 = vsyncadd [#allocation20], %s389
          %s391 = sshll.u32 [#allocation19], 4
          %s392 = int_to_ptr.vmem [resolvable:$true] %s391
          %397 = dma.hbm_to_vmem [thread:$0]  %s9, 4096, %s392, [#allocation20], 256, 256, 16
        $region40: #{tpu_custom_call.1} parent=11 // pred_fallthru
          _
        // Predicated region
        $region41: #{tpu_custom_call.1} parent=11 // pred_check
          %p398 = pneg %p269
        $region42: #{tpu_custom_call.1} parent=11 // pred_check_branch
          %400 = sbr.rel (%p398) target = $region44
        $region43: #{tpu_custom_call.1} parent=11 // pred_region
          %s402 = ssub.s32 4096, 4096
          %403 = vsyncadd [#allocation20], %s402
          %s404 = sshll.u32 [#allocation21], 4
          %s405 = int_to_ptr.vmem [resolvable:$true] %s404
          %410 = dma.hbm_to_vmem [thread:$0]  %s10, 4096, %s405, [#allocation20], 128, 128, 8
        $region44: #{tpu_custom_call.1} parent=11 // pred_fallthru
          _
        // Predicated region
        $region45: #{tpu_custom_call.1} parent=11 // pred_check
          %p411 = pneg %p290
        $region46: #{tpu_custom_call.1} parent=11 // pred_check_branch
          %413 = sbr.rel (%p411) target = $region48
        $region47: #{tpu_custom_call.1} parent=11 // pred_region
          _
        $region48: #{tpu_custom_call.1} parent=11 // pred_fallthru
          _
      $region12: #{tpu_custom_call.1} parent=5 // pred_fallthru
        _
      %p414 = scmp.lt.s32.totalorder %s28, 2
      // Predicated region
      $region49: #{tpu_custom_call.1} parent=5 // pred_check
        %p415 = pneg %p414
      $region50: #{tpu_custom_call.1} parent=5 // pred_check_branch
        %417 = sbr.rel (%p415) target = $region52
      $region51: #{tpu_custom_call.1} parent=5 // pred_region
        // Predicated region
        $region53: #{tpu_custom_call.1} parent=51 // pred_check
          %p418 = pneg %p88
        $region54: #{tpu_custom_call.1} parent=51 // pred_check_branch
          %420 = sbr.rel (%p418) target = $region56
        $region55: #{tpu_custom_call.1} parent=51 // pred_region
          %s421 = sand.u32 %s78, 1
          %s422 = scalar_lea.sflag [#allocation11], %s421
          %s423 = sand.u32 %s78, 1
          %s424 = smul.addr %s423, 32
          %s425 = scalar_lea.vmem [#allocation10], %s424
          %s426 = smul.u32 4, %s36
          %s427 = smul.u32 2, %s35
          %s429 = ssub.s32 512, 512
          %430 = vsyncadd %s422, %s429
          %s431 = smul.addr %s426, 2
          %s432 = sadd.s32 %s427, %s431
          %s433 = smul.addr %s432, 64
          %s434 = scalar_lea.hbm %s2, %s433
          %s435 = sshll.u32 %s425, 4
          %s436 = int_to_ptr.vmem [resolvable:$true] %s435
          %441 = dma.hbm_to_vmem [thread:$0]  %s434, 512, %s436, %s422, 64, 64, 4
        $region56: #{tpu_custom_call.1} parent=51 // pred_fallthru
          _
        // Predicated region
        $region57: #{tpu_custom_call.1} parent=51 // pred_check
          %p442 = pneg %p116
        $region58: #{tpu_custom_call.1} parent=51 // pred_check_branch
          %444 = sbr.rel (%p442) target = $region60
        $region59: #{tpu_custom_call.1} parent=51 // pred_region
          %s445 = sand.u32 %s28, 1
          %s446 = scalar_lea.sflag [#allocation14], %s445
          %s447 = sand.u32 %s106, 1
          %s448 = smul.addr %s447, 32
          %s449 = scalar_lea.vmem [#allocation13], %s448
          %s450 = smul.u32 4, %s36
          %s451 = smul.u32 2, %s35
          %s453 = ssub.s32 512, 512
          %454 = vsyncadd %s446, %s453
          %s455 = smul.addr %s450, 2
          %s456 = sadd.s32 %s451, %s455
          %s457 = smul.addr %s456, 64
          %s458 = scalar_lea.hbm %s3, %s457
          %s459 = sshll.u32 %s449, 4
          %s460 = int_to_ptr.vmem [resolvable:$true] %s459
          %465 = dma.hbm_to_vmem [thread:$0]  %s458, 512, %s460, %s446, 64, 64, 4
        $region60: #{tpu_custom_call.1} parent=51 // pred_fallthru
          _
      $region52: #{tpu_custom_call.1} parent=5 // pred_fallthru
        _
      %p466 = scmp.le.s32.totalorder 1, %s28
      %p467 = scmp.lt.s32.totalorder %s28, 3
      %p468 = pnand %p466, %p467
      %p469 = pneg %p468
      // Predicated region
      $region61: #{tpu_custom_call.1} parent=5 // pred_check
        _
      $region62: #{tpu_custom_call.1} parent=5 // pred_check_branch
        %471 = sbr.rel (%p468) target = $region64
      $region63: #{tpu_custom_call.1} parent=5 // pred_region
        %s472 = ssub.s32 %s28, 1
        %s473 = sand.u32 %s81, 1
        %s474 = scalar_lea.sflag [#allocation11], %s473
        %s475 = sand.u32 %s81, 1
        %s476 = smul.addr %s475, 32
        %s477 = scalar_lea.vmem [#allocation10], %s476
        // Predicated region
        $region65: #{tpu_custom_call.1} parent=63 // pred_check
          %p478 = pneg %p94
        $region66: #{tpu_custom_call.1} parent=63 // pred_check_branch
          %480 = sbr.rel (%p478) target = $region68
        $region67: #{tpu_custom_call.1} parent=63 // pred_region
          %481 = dma.done %s474, 512
        $region68: #{tpu_custom_call.1} parent=63 // pred_fallthru
          _
        %s482 = sand.u32 %s33, 1
        %s483 = scalar_lea.sflag [#allocation14], %s482
        %s484 = sand.u32 %s109, 1
        %s485 = smul.addr %s484, 32
        %s486 = scalar_lea.vmem [#allocation13], %s485
        // Predicated region
        $region69: #{tpu_custom_call.1} parent=63 // pred_check
          %p487 = pneg %p122
        $region70: #{tpu_custom_call.1} parent=63 // pred_check_branch
          %489 = sbr.rel (%p487) target = $region72
        $region71: #{tpu_custom_call.1} parent=63 // pred_region
          %490 = dma.done %s483, 512
        $region72: #{tpu_custom_call.1} parent=63 // pred_fallthru
          _
        // Predicated region
        $region73: #{tpu_custom_call.1} parent=63 // pred_check
          %p491 = pneg %p143
        $region74: #{tpu_custom_call.1} parent=63 // pred_check_branch
          %493 = sbr.rel (%p491) target = $region76
        $region75: #{tpu_custom_call.1} parent=63 // pred_region
          %494 = dma.done [#allocation14], 1024
        $region76: #{tpu_custom_call.1} parent=63 // pred_fallthru
          _
        // Predicated region
        $region77: #{tpu_custom_call.1} parent=63 // pred_check
          %p495 = pneg %p164
        $region78: #{tpu_custom_call.1} parent=63 // pred_check_branch
          %497 = sbr.rel (%p495) target = $region80
        $region79: #{tpu_custom_call.1} parent=63 // pred_region
          %498 = dma.done [#allocation17], 1024
        $region80: #{tpu_custom_call.1} parent=63 // pred_fallthru
          _
        // Predicated region
        $region81: #{tpu_custom_call.1} parent=63 // pred_check
          %p499 = pneg %p227
        $region82: #{tpu_custom_call.1} parent=63 // pred_check_branch
          %501 = sbr.rel (%p499) target = $region84
        $region83: #{tpu_custom_call.1} parent=63 // pred_region
          %502 = dma.done [#allocation17], 4096
        $region84: #{tpu_custom_call.1} parent=63 // pred_fallthru
          _
        // Predicated region
        $region85: #{tpu_custom_call.1} parent=63 // pred_check
          %p503 = pneg %p248
        $region86: #{tpu_custom_call.1} parent=63 // pred_check_branch
          %505 = sbr.rel (%p503) target = $region88
        $region87: #{tpu_custom_call.1} parent=63 // pred_region
          %506 = dma.done [#allocation20], 4096
        $region88: #{tpu_custom_call.1} parent=63 // pred_fallthru
          _
        // Predicated region
        $region89: #{tpu_custom_call.1} parent=63 // pred_check
          %p507 = pneg %p269
        $region90: #{tpu_custom_call.1} parent=63 // pred_check_branch
          %509 = sbr.rel (%p507) target = $region92
        $region91: #{tpu_custom_call.1} parent=63 // pred_region
          %510 = dma.done [#allocation20], 4096
        $region92: #{tpu_custom_call.1} parent=63 // pred_fallthru
          _
        %s511 = smul.u32 2, %s37
        %p512 = scmp.lt.s32.totalorder %s511, 1
        %s513 = scalar_select %p512, %s511, 1
        %s514 = smul.addr %s513, 8
        %s515 = scalar_lea.vmem %s1, %s514
        %p516 = pneg %p66
        %p517 = pneg %p63
        %s518 = sand.u32 %s81, 1
        %s519 = scalar_lea.sflag [#allocation11], %s518
        %s520 = sand.u32 %s81, 1
        %s521 = smul.addr %s520, 32
        %s522 = scalar_lea.vmem [#allocation10], %s521
        %p523 = pneg %p94
        %p524 = pneg %p91
        %s525 = sand.u32 %s33, 1
        %s526 = scalar_lea.sflag [#allocation14], %s525
        %s527 = sand.u32 %s109, 1
        %s528 = smul.addr %s527, 32
        %s529 = scalar_lea.vmem [#allocation13], %s528
        %p530 = pneg %p122
        %p531 = pneg %p119
        %p532 = pneg %p143
        %p533 = pneg %p140
        %p534 = pneg %p164
        %p535 = pneg %p161
        %p536 = pneg %p185
        %p537 = pneg %p182
        %p538 = pneg %p206
        %p539 = pneg %p203
        %p540 = pneg %p227
        %p541 = pneg %p224
        %p542 = pneg %p248
        %p543 = pneg %p245
        %p544 = pneg %p269
        %p545 = pneg %p266
        %p546 = pneg %p290
        %p547 = pneg %p287
        %p548 = pneg %p316
        %p549 = pneg %p313
        %s550 = smul.u32 2, %s37
        %p551 = scmp.lt.s32.totalorder %s550, 1
        %s552 = scalar_select %p551, %s550, 1
        %s553 = smul.addr %s552, 8
        %s554 = scalar_lea.vmem %s1, %s553
        %s555 = smul.u32 2, %s37
        %s556 = smul.u32 4, %s38
        %s557 = smul.u32 2, %s37
        %s558 = smul.u32 4, %s38
        %s559 = smul.u32 2, %s37
        %s560 = smul.u32 2, %s37
        %p564 = scmp.eq.s32.totalorder %s38, 0
        // Predicated region
        $region93: #{tpu_custom_call.1} parent=63 // pred_check
          %p565 = pneg %p564
        $region94: #{tpu_custom_call.1} parent=63 // pred_check_branch
          %567 = sbr.rel (%p565) target = $region96
        $region95: #{tpu_custom_call.1} parent=63 // pred_region
          %568 = vst [vmem:[#allocation2] sm:$0xff] 0
          %569 = vst [vmem:[#allocation3] sm:$0xff] 0.0
          %570 = vst [vmem:[#allocation3 + $0x8] sm:$0xff] 0.0
          %571 = vst [vmem:[#allocation4] sm:$0xff] 0
          %572 = vst [vmem:[#allocation5] sm:$0xff] 0.0
          %573 = vst [vmem:[#allocation5 + $0x8] sm:$0xff] 0.0
        $region96: #{tpu_custom_call.1} parent=63 // pred_fallthru
          _
        %s574 = sld [smem:[#allocation9 + %s37]]
        %s575 = smul.u32 %s38, 4
        %p576 = scmp.ge.s32.totalorder %s575, %s574
        %s577 = ssub.s32 4, %s575
        %p578 = scmp.ge.s32.totalorder %s577, %s574
        %p579 = pnand %p576, %p578
        %p580 = pneg %p579
        %p581 = pneg %p580
        // Predicated region
        $region97: #{tpu_custom_call.1} parent=63 // pred_check
          _
        $region98: #{tpu_custom_call.1} parent=63 // pred_check_branch
          %583 = sbr.rel (%p580) target = $region100
        $region99: #{tpu_custom_call.1} parent=63 // pred_region
          %v584 = vld [vmem:[%s554] sm:$0xff]
          %v585 = vld [vmem:[%s554 + $0x8] sm:$0xff]
          %v586 = vld [vmem:[%s477] sm:$0xf]
          %v587 = vld [vmem:[%s477 + $0x4] sm:$0xf]
          %v588 = vld [vmem:[%s477 + $0x8] sm:$0xf]
          %v589 = vld [vmem:[%s477 + $0xc] sm:$0xf]
          %v590 = vld [vmem:[%s477 + $0x10] sm:$0xf]
          %v591 = vld [vmem:[%s477 + $0x14] sm:$0xf]
          %v592 = vld [vmem:[%s477 + $0x18] sm:$0xf]
          %v593 = vld [vmem:[%s477 + $0x1c] sm:$0xf]
          %v594 = vld [vmem:[%s486] sm:$0xf]
          %v595 = vld [vmem:[%s486 + $0x4] sm:$0xf]
          %v596 = vld [vmem:[%s486 + $0x8] sm:$0xf]
          %v597 = vld [vmem:[%s486 + $0xc] sm:$0xf]
          %v598 = vld [vmem:[%s486 + $0x10] sm:$0xf]
          %v599 = vld [vmem:[%s486 + $0x14] sm:$0xf]
          %v600 = vld [vmem:[%s486 + $0x18] sm:$0xf]
          %v601 = vld [vmem:[%s486 + $0x1c] sm:$0xf]
          %v602 = vld [vmem:[#allocation15] sm:$0xff]
          %v603 = vld [vmem:[#allocation15 + $0x8] sm:$0xff]
          %v604 = vld [vmem:[#allocation15 + $0x10] sm:$0xff]
          %v605 = vld [vmem:[#allocation15 + $0x18] sm:$0xff]
          %v606 = vld [vmem:[#allocation15 + $0x20] sm:$0xff]
          %v607 = vld [vmem:[#allocation15 + $0x28] sm:$0xff]
          %v608 = vld [vmem:[#allocation15 + $0x30] sm:$0xff]
          %v609 = vld [vmem:[#allocation15 + $0x38] sm:$0xff]
          %v610 = vld [vmem:[%s6] sm:$0xf]
          %v612 = vlaneseq
          %v613 = vshrl.u32 %v612, 7
          %v614 = vsub.s32 0, %v613
          %v615 = vrot.slane %v610, %v614
          %v616 = vlaneseq
          %v617 = vshrl.u32 %v616, 7
          %v618 = vsub.s32 1, %v617
          %v619 = vrot.slane %v610, %v618
          %v620 = vlaneseq
          %v621 = vshrl.u32 %v620, 7
          %v622 = vsub.s32 2, %v621
          %v623 = vrot.slane %v610, %v622
          %v624 = vlaneseq
          %v625 = vshrl.u32 %v624, 7
          %v626 = vsub.s32 3, %v625
          %v627 = vrot.slane %v610, %v626
          %v640 = vunpack.c.l.b16 %v586
          %v641 = vunpack.c.l.b16 %v587
          %v642 = vunpack.c.l.b16 %v588
          %v643 = vunpack.c.l.b16 %v589
          %v644 = vunpack.c.l.b16 %v590
          %v645 = vunpack.c.l.b16 %v591
          %v646 = vunpack.c.l.b16 %v592
          %v647 = vunpack.c.l.b16 %v593
          %v648 = vpack.c.b16 %v641, %v640
          %v649 = vpack.c.b16 %v643, %v642
          %v650 = vpack.c.b16 %v645, %v644
          %v651 = vpack.c.b16 %v647, %v646
          %v660 = vunpack.c.l.b16 %v602
          %v661 = vunpack.c.h.b16 %v602
          %v662 = vunpack.c.l.b16 %v603
          %v663 = vunpack.c.h.b16 %v603
          %v664 = vunpack.c.l.b16 %v604
          %v665 = vunpack.c.h.b16 %v604
          %v666 = vunpack.c.l.b16 %v605
          %v667 = vunpack.c.h.b16 %v605
          %v668 = vunpack.c.l.b16 %v606
          %v669 = vunpack.c.h.b16 %v606
          %v670 = vunpack.c.l.b16 %v607
          %v671 = vunpack.c.h.b16 %v607
          %v672 = vunpack.c.l.b16 %v608
          %v673 = vunpack.c.h.b16 %v608
          %v674 = vunpack.c.l.b16 %v609
          %v675 = vunpack.c.h.b16 %v609
          %v676 = vpack.c.b16 %v664, %v660
          %v677 = vpack.c.b16 %v665, %v661
          %v678 = vpack.c.b16 %v666, %v662
          %v679 = vpack.c.b16 %v667, %v663
          %v680 = vpack.c.b16 %v672, %v668
          %v681 = vpack.c.b16 %v673, %v669
          %v682 = vpack.c.b16 %v674, %v670
          %v683 = vpack.c.b16 %v675, %v671
          %vm692 = vcmask 261120
          %v694 = vsel %vm692, %v648, 0
          %v697 = vsel %vm692, %v649, 0
          %v700 = vsel %vm692, %v650, 0
          %v703 = vsel %vm692, %v651, 0
          %705 = vmatprep.subr.bf16.mxu0 %v677
          %706 = vmatpush1.bf16.msra.mxu0 %v676
          %707 = vmatprep.subr.bf16.mxu0 %v681
          %708 = vmatpush1.bf16.msra.mxu0 %v680
          %709 = vmatprep.subr.bf16.mxu0 0
          %710 = vmatpush1.bf16.msra.mxu0 0
          %711 = vmatprep.subr.bf16.mxu0 0
          %712 = vmatpush1.bf16.msra.mxu0 0
          %713 = vmatprep.subr.bf16.mxu0 0
          %714 = vmatpush1.bf16.msra.mxu0 0
          %715 = vmatprep.subr.bf16.mxu0 0
          %716 = vmatpush1.bf16.msra.mxu0 0
          %717 = vmatprep.subr.bf16.mxu0 0
          %718 = vmatpush1.bf16.msra.mxu0 0
          %719 = vmatprep.subr.bf16.mxu0 0
          %720 = vmatpush1.bf16.msra.mxu0 0
          %721 = vmatprep.subr.bf16.mxu0 0
          %722 = vmatpush1.bf16.msra.mxu0 0
          %723 = vmatprep.subr.bf16.mxu0 0
          %724 = vmatpush1.bf16.msra.mxu0 0
          %725 = vmatprep.subr.bf16.mxu0 0
          %726 = vmatpush1.bf16.msra.mxu0 0
          %727 = vmatprep.subr.bf16.mxu0 0
          %728 = vmatpush1.bf16.msra.mxu0 0
          %729 = vmatprep.subr.bf16.mxu0 0
          %730 = vmatpush1.bf16.msra.mxu0 0
          %731 = vmatprep.subr.bf16.mxu0 0
          %732 = vmatpush1.bf16.msra.mxu0 0
          %733 = vmatprep.subr.bf16.mxu0 0
          %734 = vmatpush1.bf16.msra.mxu0 0
          %735 = vmatprep.subr.bf16.mxu0 0
          %736 = vmatpush1.bf16.msra.mxu0 0
          %737 = vmatprep.mubr.bf16.mxu0 0
          %738 = vmatmul.mubr.bf16.gmra.mrb[0].mxu0 %v694
          %v739 = vpop.f32.mrb[0].mxu0
          %v740 = vadd.f32 %v615, %v739
          %v741 = vpop.f32.mrb[0].mxu0
          %v742 = vadd.f32 %v619, %v741
          %v743 = vpop.f32.mrb[0].mxu0
          %v744 = vadd.f32 %v615, %v743
          %v745 = vpop.f32.mrb[0].mxu0
          %v746 = vadd.f32 %v619, %v745
          %747 = vmatprep.mubr.bf16.mxu0 0
          %748 = vmatmul.mubr.bf16.gmra.mrb[0].mxu0 %v697
          %v749 = vpop.f32.mrb[0].mxu0
          %v750 = vadd.f32 %v615, %v749
          %v751 = vpop.f32.mrb[0].mxu0
          %v752 = vadd.f32 %v619, %v751
          %v753 = vpop.f32.mrb[0].mxu0
          %v754 = vadd.f32 %v615, %v753
          %v755 = vpop.f32.mrb[0].mxu0
          %v756 = vadd.f32 %v619, %v755
          %757 = vmatprep.mubr.bf16.mxu0 0
          %758 = vmatmul.mubr.bf16.gmra.mrb[0].mxu0 %v700
          %v759 = vpop.f32.mrb[0].mxu0
          %v760 = vadd.f32 %v615, %v759
          %v761 = vpop.f32.mrb[0].mxu0
          %v762 = vadd.f32 %v619, %v761
          %v763 = vpop.f32.mrb[0].mxu0
          %v764 = vadd.f32 %v615, %v763
          %v765 = vpop.f32.mrb[0].mxu0
          %v766 = vadd.f32 %v619, %v765
          %767 = vmatprep.mubr.bf16.mxu0 0
          %768 = vmatmul.mubr.bf16.gmra.mrb[0].mxu0 %v703
          %v769 = vpop.f32.mrb[0].mxu0
          %v770 = vadd.f32 %v615, %v769
          %v771 = vpop.f32.mrb[0].mxu0
          %v772 = vadd.f32 %v619, %v771
          %v773 = vpop.f32.mrb[0].mxu0
          %v774 = vadd.f32 %v615, %v773
          %v775 = vpop.f32.mrb[0].mxu0
          %v776 = vadd.f32 %v619, %v775
          %777 = vdwg.mxu0
          %778 = vmatprep.subr.bf16.mxu0 %v679
          %779 = vmatpush1.bf16.msra.mxu0 %v678
          %780 = vmatprep.subr.bf16.mxu0 %v683
          %781 = vmatpush1.bf16.msra.mxu0 %v682
          %782 = vmatprep.subr.bf16.mxu0 0
          %783 = vmatpush1.bf16.msra.mxu0 0
          %784 = vmatprep.subr.bf16.mxu0 0
          %785 = vmatpush1.bf16.msra.mxu0 0
          %786 = vmatprep.subr.bf16.mxu0 0
          %787 = vmatpush1.bf16.msra.mxu0 0
          %788 = vmatprep.subr.bf16.mxu0 0
          %789 = vmatpush1.bf16.msra.mxu0 0
          %790 = vmatprep.subr.bf16.mxu0 0
          %791 = vmatpush1.bf16.msra.mxu0 0
          %792 = vmatprep.subr.bf16.mxu0 0
          %793 = vmatpush1.bf16.msra.mxu0 0
          %794 = vmatprep.subr.bf16.mxu0 0
          %795 = vmatpush1.bf16.msra.mxu0 0
          %796 = vmatprep.subr.bf16.mxu0 0
          %797 = vmatpush1.bf16.msra.mxu0 0
          %798 = vmatprep.subr.bf16.mxu0 0
          %799 = vmatpush1.bf16.msra.mxu0 0
          %800 = vmatprep.subr.bf16.mxu0 0
          %801 = vmatpush1.bf16.msra.mxu0 0
          %802 = vmatprep.subr.bf16.mxu0 0
          %803 = vmatpush1.bf16.msra.mxu0 0
          %804 = vmatprep.subr.bf16.mxu0 0
          %805 = vmatpush1.bf16.msra.mxu0 0
          %806 = vmatprep.subr.bf16.mxu0 0
          %807 = vmatpush1.bf16.msra.mxu0 0
          %808 = vmatprep.subr.bf16.mxu0 0
          %809 = vmatpush1.bf16.msra.mxu0 0
          %810 = vmatprep.mubr.bf16.mxu0 0
          %811 = vmatmul.mubr.bf16.gmra.mrb[0].mxu0 %v694
          %v812 = vpop.f32.mrb[0].mxu0
          %v813 = vadd.f32 %v623, %v812
          %v814 = vpop.f32.mrb[0].mxu0
          %v815 = vadd.f32 %v627, %v814
          %v816 = vpop.f32.mrb[0].mxu0
          %v817 = vadd.f32 %v623, %v816
          %v818 = vpop.f32.mrb[0].mxu0
          %v819 = vadd.f32 %v627, %v818
          %820 = vmatprep.mubr.bf16.mxu0 0
          %821 = vmatmul.mubr.bf16.gmra.mrb[0].mxu0 %v697
          %v822 = vpop.f32.mrb[0].mxu0
          %v823 = vadd.f32 %v623, %v822
          %v824 = vpop.f32.mrb[0].mxu0
          %v825 = vadd.f32 %v627, %v824
          %v826 = vpop.f32.mrb[0].mxu0
          %v827 = vadd.f32 %v623, %v826
          %v828 = vpop.f32.mrb[0].mxu0
          %v829 = vadd.f32 %v627, %v828
          %830 = vmatprep.mubr.bf16.mxu0 0
          %831 = vmatmul.mubr.bf16.gmra.mrb[0].mxu0 %v700
          %v832 = vpop.f32.mrb[0].mxu0
          %v833 = vadd.f32 %v623, %v832
          %v834 = vpop.f32.mrb[0].mxu0
          %v835 = vadd.f32 %v627, %v834
          %v836 = vpop.f32.mrb[0].mxu0
          %v837 = vadd.f32 %v623, %v836
          %v838 = vpop.f32.mrb[0].mxu0
          %v839 = vadd.f32 %v627, %v838
          %840 = vmatprep.mubr.bf16.mxu0 0
          %841 = vmatmul.mubr.bf16.gmra.mrb[0].mxu0 %v703
          %v842 = vpop.f32.mrb[0].mxu0
          %v843 = vadd.f32 %v623, %v842
          %v844 = vpop.f32.mrb[0].mxu0
          %v845 = vadd.f32 %v627, %v844
          %v846 = vpop.f32.mrb[0].mxu0
          %v847 = vadd.f32 %v623, %v846
          %v848 = vpop.f32.mrb[0].mxu0
          %v849 = vadd.f32 %v627, %v848
          %850 = vdwg.mxu0
          %851 = vst [vmem:[#allocation6] sm:$0xff] %v740
          %852 = vst [vmem:[#allocation6 + $0x8] sm:$0xff] %v742
          %853 = vst [vmem:[#allocation6 + $0x10] sm:$0xff] %v813
          %854 = vst [vmem:[#allocation6 + $0x18] sm:$0xff] %v815
          %855 = vst [vmem:[#allocation6 + $0x20] sm:$0xff] %v744
          %856 = vst [vmem:[#allocation6 + $0x28] sm:$0xff] %v746
          %857 = vst [vmem:[#allocation6 + $0x30] sm:$0xff] %v817
          %858 = vst [vmem:[#allocation6 + $0x38] sm:$0xff] %v819
          %859 = vst [vmem:[#allocation6 + $0x40] sm:$0xff] %v750
          %860 = vst [vmem:[#allocation6 + $0x48] sm:$0xff] %v752
          %861 = vst [vmem:[#allocation6 + $0x50] sm:$0xff] %v823
          %862 = vst [vmem:[#allocation6 + $0x58] sm:$0xff] %v825
          %863 = vst [vmem:[#allocation6 + $0x60] sm:$0xff] %v754
          %864 = vst [vmem:[#allocation6 + $0x68] sm:$0xff] %v756
          %865 = vst [vmem:[#allocation6 + $0x70] sm:$0xff] %v827
          %866 = vst [vmem:[#allocation6 + $0x78] sm:$0xff] %v829
          %867 = vst [vmem:[#allocation6 + $0x80] sm:$0xff] %v760
          %868 = vst [vmem:[#allocation6 + $0x88] sm:$0xff] %v762
          %869 = vst [vmem:[#allocation6 + $0x90] sm:$0xff] %v833
          %870 = vst [vmem:[#allocation6 + $0x98] sm:$0xff] %v835
          %871 = vst [vmem:[#allocation6 + $0xa0] sm:$0xff] %v764
          %872 = vst [vmem:[#allocation6 + $0xa8] sm:$0xff] %v766
          %873 = vst [vmem:[#allocation6 + $0xb0] sm:$0xff] %v837
          %874 = vst [vmem:[#allocation6 + $0xb8] sm:$0xff] %v839
          %875 = vst [vmem:[#allocation6 + $0xc0] sm:$0xff] %v770
          %876 = vst [vmem:[#allocation6 + $0xc8] sm:$0xff] %v772
          %877 = vst [vmem:[#allocation6 + $0xd0] sm:$0xff] %v843
          %878 = vst [vmem:[#allocation6 + $0xd8] sm:$0xff] %v845
          %879 = vst [vmem:[#allocation6 + $0xe0] sm:$0xff] %v774
          %880 = vst [vmem:[#allocation6 + $0xe8] sm:$0xff] %v776
          %881 = vst [vmem:[#allocation6 + $0xf0] sm:$0xff] %v847
          %882 = vst [vmem:[#allocation6 + $0xf8] sm:$0xff] %v849
          %v883 = vld [vmem:[#allocation16] sm:$0xff]
          %v884 = vld [vmem:[#allocation16 + $0x8] sm:$0xff]
          %v885 = vld [vmem:[#allocation16 + $0x10] sm:$0xff]
          %v886 = vld [vmem:[#allocation16 + $0x18] sm:$0xff]
          %v887 = vld [vmem:[#allocation16 + $0x20] sm:$0xff]
          %v888 = vld [vmem:[#allocation16 + $0x28] sm:$0xff]
          %v889 = vld [vmem:[#allocation16 + $0x30] sm:$0xff]
          %v890 = vld [vmem:[#allocation16 + $0x38] sm:$0xff]
          %v891 = vld [vmem:[%s7] sm:$0xf]
          %v893 = vlaneseq
          %v894 = vshrl.u32 %v893, 7
          %v895 = vsub.s32 0, %v894
          %v896 = vrot.slane %v891, %v895
          %v897 = vlaneseq
          %v898 = vshrl.u32 %v897, 7
          %v899 = vsub.s32 1, %v898
          %v900 = vrot.slane %v891, %v899
          %v901 = vlaneseq
          %v902 = vshrl.u32 %v901, 7
          %v903 = vsub.s32 2, %v902
          %v904 = vrot.slane %v891, %v903
          %v905 = vlaneseq
          %v906 = vshrl.u32 %v905, 7
          %v907 = vsub.s32 3, %v906
          %v908 = vrot.slane %v891, %v907
          %v921 = vunpack.c.l.b16 %v594
          %v922 = vunpack.c.l.b16 %v595
          %v923 = vunpack.c.l.b16 %v596
          %v924 = vunpack.c.l.b16 %v597
          %v925 = vunpack.c.l.b16 %v598
          %v926 = vunpack.c.l.b16 %v599
          %v927 = vunpack.c.l.b16 %v600
          %v928 = vunpack.c.l.b16 %v601
          %v929 = vpack.c.b16 %v922, %v921
          %v930 = vpack.c.b16 %v924, %v923
          %v931 = vpack.c.b16 %v926, %v925
          %v932 = vpack.c.b16 %v928, %v927
          %v941 = vunpack.c.l.b16 %v883
          %v942 = vunpack.c.h.b16 %v883
          %v943 = vunpack.c.l.b16 %v884
          %v944 = vunpack.c.h.b16 %v884
          %v945 = vunpack.c.l.b16 %v885
          %v946 = vunpack.c.h.b16 %v885
          %v947 = vunpack.c.l.b16 %v886
          %v948 = vunpack.c.h.b16 %v886
          %v949 = vunpack.c.l.b16 %v887
          %v950 = vunpack.c.h.b16 %v887
          %v951 = vunpack.c.l.b16 %v888
          %v952 = vunpack.c.h.b16 %v888
          %v953 = vunpack.c.l.b16 %v889
          %v954 = vunpack.c.h.b16 %v889
          %v955 = vunpack.c.l.b16 %v890
          %v956 = vunpack.c.h.b16 %v890
          %v957 = vpack.c.b16 %v945, %v941
          %v958 = vpack.c.b16 %v946, %v942
          %v959 = vpack.c.b16 %v947, %v943
          %v960 = vpack.c.b16 %v948, %v944
          %v961 = vpack.c.b16 %v953, %v949
          %v962 = vpack.c.b16 %v954, %v950
          %v963 = vpack.c.b16 %v955, %v951
          %v964 = vpack.c.b16 %v956, %v952
          %v974 = vsel %vm692, %v929, 0
          %v977 = vsel %vm692, %v930, 0
          %v980 = vsel %vm692, %v931, 0
          %v983 = vsel %vm692, %v932, 0
          %985 = vmatprep.subr.bf16.mxu0 %v958
          %986 = vmatpush1.bf16.msra.mxu0 %v957
          %987 = vmatprep.subr.bf16.mxu0 %v962
          %988 = vmatpush1.bf16.msra.mxu0 %v961
          %989 = vmatprep.subr.bf16.mxu0 0
          %990 = vmatpush1.bf16.msra.mxu0 0
          %991 = vmatprep.subr.bf16.mxu0 0
          %992 = vmatpush1.bf16.msra.mxu0 0
          %993 = vmatprep.subr.bf16.mxu0 0
          %994 = vmatpush1.bf16.msra.mxu0 0
          %995 = vmatprep.subr.bf16.mxu0 0
          %996 = vmatpush1.bf16.msra.mxu0 0
          %997 = vmatprep.subr.bf16.mxu0 0
          %998 = vmatpush1.bf16.msra.mxu0 0
          %999 = vmatprep.subr.bf16.mxu0 0
          %1000 = vmatpush1.bf16.msra.mxu0 0
          %1001 = vmatprep.subr.bf16.mxu0 0
          %1002 = vmatpush1.bf16.msra.mxu0 0
          %1003 = vmatprep.subr.bf16.mxu0 0
          %1004 = vmatpush1.bf16.msra.mxu0 0
          %1005 = vmatprep.subr.bf16.mxu0 0
          %1006 = vmatpush1.bf16.msra.mxu0 0
          %1007 = vmatprep.subr.bf16.mxu0 0
          %1008 = vmatpush1.bf16.msra.mxu0 0
          %1009 = vmatprep.subr.bf16.mxu0 0
          %1010 = vmatpush1.bf16.msra.mxu0 0
          %1011 = vmatprep.subr.bf16.mxu0 0
          %1012 = vmatpush1.bf16.msra.mxu0 0
          %1013 = vmatprep.subr.bf16.mxu0 0
          %1014 = vmatpush1.bf16.msra.mxu0 0
          %1015 = vmatprep.subr.bf16.mxu0 0
          %1016 = vmatpush1.bf16.msra.mxu0 0
          %1017 = vmatprep.mubr.bf16.mxu0 0
          %1018 = vmatmul.mubr.bf16.gmra.mrb[0].mxu0 %v974
          %v1019 = vpop.f32.mrb[0].mxu0
          %v1020 = vadd.f32 %v896, %v1019
          %v1021 = vpop.f32.mrb[0].mxu0
          %v1022 = vadd.f32 %v900, %v1021
          %v1023 = vpop.f32.mrb[0].mxu0
          %v1024 = vadd.f32 %v896, %v1023
          %v1025 = vpop.f32.mrb[0].mxu0
          %v1026 = vadd.f32 %v900, %v1025
          %1027 = vmatprep.mubr.bf16.mxu0 0
          %1028 = vmatmul.mubr.bf16.gmra.mrb[0].mxu0 %v977
          %v1029 = vpop.f32.mrb[0].mxu0
          %v1030 = vadd.f32 %v896, %v1029
          %v1031 = vpop.f32.mrb[0].mxu0
          %v1032 = vadd.f32 %v900, %v1031
          %v1033 = vpop.f32.mrb[0].mxu0
          %v1034 = vadd.f32 %v896, %v1033
          %v1035 = vpop.f32.mrb[0].mxu0
          %v1036 = vadd.f32 %v900, %v1035
          %1037 = vmatprep.mubr.bf16.mxu0 0
          %1038 = vmatmul.mubr.bf16.gmra.mrb[0].mxu0 %v980
          %v1039 = vpop.f32.mrb[0].mxu0
          %v1040 = vadd.f32 %v896, %v1039
          %v1041 = vpop.f32.mrb[0].mxu0
          %v1042 = vadd.f32 %v900, %v1041
          %v1043 = vpop.f32.mrb[0].mxu0
          %v1044 = vadd.f32 %v896, %v1043
          %v1045 = vpop.f32.mrb[0].mxu0
          %v1046 = vadd.f32 %v900, %v1045
          %1047 = vmatprep.mubr.bf16.mxu0 0
          %1048 = vmatmul.mubr.bf16.gmra.mrb[0].mxu0 %v983
          %v1049 = vpop.f32.mrb[0].mxu0
          %v1050 = vadd.f32 %v896, %v1049
          %v1051 = vpop.f32.mrb[0].mxu0
          %v1052 = vadd.f32 %v900, %v1051
          %v1053 = vpop.f32.mrb[0].mxu0
          %v1054 = vadd.f32 %v896, %v1053
          %v1055 = vpop.f32.mrb[0].mxu0
          %v1056 = vadd.f32 %v900, %v1055
          %1057 = vdwg.mxu0
          %1058 = vmatprep.subr.bf16.mxu0 %v960
          %1059 = vmatpush1.bf16.msra.mxu0 %v959
          %1060 = vmatprep.subr.bf16.mxu0 %v964
          %1061 = vmatpush1.bf16.msra.mxu0 %v963
          %1062 = vmatprep.subr.bf16.mxu0 0
          %1063 = vmatpush1.bf16.msra.mxu0 0
          %1064 = vmatprep.subr.bf16.mxu0 0
          %1065 = vmatpush1.bf16.msra.mxu0 0
          %1066 = vmatprep.subr.bf16.mxu0 0
          %1067 = vmatpush1.bf16.msra.mxu0 0
          %1068 = vmatprep.subr.bf16.mxu0 0
          %1069 = vmatpush1.bf16.msra.mxu0 0
          %1070 = vmatprep.subr.bf16.mxu0 0
          %1071 = vmatpush1.bf16.msra.mxu0 0
          %1072 = vmatprep.subr.bf16.mxu0 0
          %1073 = vmatpush1.bf16.msra.mxu0 0
          %1074 = vmatprep.subr.bf16.mxu0 0
          %1075 = vmatpush1.bf16.msra.mxu0 0
          %1076 = vmatprep.subr.bf16.mxu0 0
          %1077 = vmatpush1.bf16.msra.mxu0 0
          %1078 = vmatprep.subr.bf16.mxu0 0
          %1079 = vmatpush1.bf16.msra.mxu0 0
          %1080 = vmatprep.subr.bf16.mxu0 0
          %1081 = vmatpush1.bf16.msra.mxu0 0
          %1082 = vmatprep.subr.bf16.mxu0 0
          %1083 = vmatpush1.bf16.msra.mxu0 0
          %1084 = vmatprep.subr.bf16.mxu0 0
          %1085 = vmatpush1.bf16.msra.mxu0 0
          %1086 = vmatprep.subr.bf16.mxu0 0
          %1087 = vmatpush1.bf16.msra.mxu0 0
          %1088 = vmatprep.subr.bf16.mxu0 0
          %1089 = vmatpush1.bf16.msra.mxu0 0
          %1090 = vmatprep.mubr.bf16.mxu0 0
          %1091 = vmatmul.mubr.bf16.gmra.mrb[0].mxu0 %v974
          %v1092 = vpop.f32.mrb[0].mxu0
          %v1093 = vadd.f32 %v904, %v1092
          %v1094 = vpop.f32.mrb[0].mxu0
          %v1095 = vadd.f32 %v908, %v1094
          %v1096 = vpop.f32.mrb[0].mxu0
          %v1097 = vadd.f32 %v904, %v1096
          %v1098 = vpop.f32.mrb[0].mxu0
          %v1099 = vadd.f32 %v908, %v1098
          %1100 = vmatprep.mubr.bf16.mxu0 0
          %1101 = vmatmul.mubr.bf16.gmra.mrb[0].mxu0 %v977
          %v1102 = vpop.f32.mrb[0].mxu0
          %v1103 = vadd.f32 %v904, %v1102
          %v1104 = vpop.f32.mrb[0].mxu0
          %v1105 = vadd.f32 %v908, %v1104
          %v1106 = vpop.f32.mrb[0].mxu0
          %v1107 = vadd.f32 %v904, %v1106
          %v1108 = vpop.f32.mrb[0].mxu0
          %v1109 = vadd.f32 %v908, %v1108
          %1110 = vmatprep.mubr.bf16.mxu0 0
          %1111 = vmatmul.mubr.bf16.gmra.mrb[0].mxu0 %v980
          %v1112 = vpop.f32.mrb[0].mxu0
          %v1113 = vadd.f32 %v904, %v1112
          %v1114 = vpop.f32.mrb[0].mxu0
          %v1115 = vadd.f32 %v908, %v1114
          %v1116 = vpop.f32.mrb[0].mxu0
          %v1117 = vadd.f32 %v904, %v1116
          %v1118 = vpop.f32.mrb[0].mxu0
          %v1119 = vadd.f32 %v908, %v1118
          %1120 = vmatprep.mubr.bf16.mxu0 0
          %1121 = vmatmul.mubr.bf16.gmra.mrb[0].mxu0 %v983
          %v1122 = vpop.f32.mrb[0].mxu0
          %v1123 = vadd.f32 %v904, %v1122
          %v1124 = vpop.f32.mrb[0].mxu0
          %v1125 = vadd.f32 %v908, %v1124
          %v1126 = vpop.f32.mrb[0].mxu0
          %v1127 = vadd.f32 %v904, %v1126
          %v1128 = vpop.f32.mrb[0].mxu0
          %v1129 = vadd.f32 %v908, %v1128
          %1130 = vdwg.mxu0
          %1131 = vst [vmem:[#allocation7] sm:$0xff] %v1020
          %1132 = vst [vmem:[#allocation7 + $0x8] sm:$0xff] %v1022
          %1133 = vst [vmem:[#allocation7 + $0x10] sm:$0xff] %v1093
          %1134 = vst [vmem:[#allocation7 + $0x18] sm:$0xff] %v1095
          %1135 = vst [vmem:[#allocation7 + $0x20] sm:$0xff] %v1024
          %1136 = vst [vmem:[#allocation7 + $0x28] sm:$0xff] %v1026
          %1137 = vst [vmem:[#allocation7 + $0x30] sm:$0xff] %v1097
          %1138 = vst [vmem:[#allocation7 + $0x38] sm:$0xff] %v1099
          %1139 = vst [vmem:[#allocation7 + $0x40] sm:$0xff] %v1030
          %1140 = vst [vmem:[#allocation7 + $0x48] sm:$0xff] %v1032
          %1141 = vst [vmem:[#allocation7 + $0x50] sm:$0xff] %v1103
          %1142 = vst [vmem:[#allocation7 + $0x58] sm:$0xff] %v1105
          %1143 = vst [vmem:[#allocation7 + $0x60] sm:$0xff] %v1034
          %1144 = vst [vmem:[#allocation7 + $0x68] sm:$0xff] %v1036
          %1145 = vst [vmem:[#allocation7 + $0x70] sm:$0xff] %v1107
          %1146 = vst [vmem:[#allocation7 + $0x78] sm:$0xff] %v1109
          %1147 = vst [vmem:[#allocation7 + $0x80] sm:$0xff] %v1040
          %1148 = vst [vmem:[#allocation7 + $0x88] sm:$0xff] %v1042
          %1149 = vst [vmem:[#allocation7 + $0x90] sm:$0xff] %v1113
          %1150 = vst [vmem:[#allocation7 + $0x98] sm:$0xff] %v1115
          %1151 = vst [vmem:[#allocation7 + $0xa0] sm:$0xff] %v1044
          %1152 = vst [vmem:[#allocation7 + $0xa8] sm:$0xff] %v1046
          %1153 = vst [vmem:[#allocation7 + $0xb0] sm:$0xff] %v1117
          %1154 = vst [vmem:[#allocation7 + $0xb8] sm:$0xff] %v1119
          %1155 = vst [vmem:[#allocation7 + $0xc0] sm:$0xff] %v1050
          %1156 = vst [vmem:[#allocation7 + $0xc8] sm:$0xff] %v1052
          %1157 = vst [vmem:[#allocation7 + $0xd0] sm:$0xff] %v1123
          %1158 = vst [vmem:[#allocation7 + $0xd8] sm:$0xff] %v1125
          %1159 = vst [vmem:[#allocation7 + $0xe0] sm:$0xff] %v1054
          %1160 = vst [vmem:[#allocation7 + $0xe8] sm:$0xff] %v1056
          %1161 = vst [vmem:[#allocation7 + $0xf0] sm:$0xff] %v1127
          %1162 = vst [vmem:[#allocation7 + $0xf8] sm:$0xff] %v1129
          %s1163 = ssub.s32 7, %s575
          %s1164 = smul.u32 0, 4
          %s1165 = smul.addr %s1164, 8
          %s1166 = scalar_lea.vmem [#allocation6], %s1165
          %v1167 = vld [vmem:[%s1166] sm:$0xff]
          %v1168 = vld [vmem:[%s1166 + $0x8] sm:$0xff]
          %v1169 = vld [vmem:[%s1166 + $0x10] sm:$0xff]
          %v1170 = vld [vmem:[%s1166 + $0x18] sm:$0xff]
          %v1171 = vld [vmem:[%s1166 + $0x20] sm:$0xff]
          %v1172 = vld [vmem:[%s1166 + $0x28] sm:$0xff]
          %v1173 = vld [vmem:[%s1166 + $0x30] sm:$0xff]
          %v1174 = vld [vmem:[%s1166 + $0x38] sm:$0xff]
          %v1175 = vld [vmem:[#allocation2] sm:$0xff]
          %v1176 = vld [vmem:[#allocation18] sm:$0xff]
          %v1177 = vld [vmem:[#allocation18 + $0x8] sm:$0xff]
          %v1178 = vld [vmem:[#allocation18 + $0x10] sm:$0xff]
          %v1179 = vld [vmem:[#allocation18 + $0x18] sm:$0xff]
          %v1180 = vld [vmem:[#allocation18 + $0x20] sm:$0xff]
          %v1181 = vld [vmem:[#allocation18 + $0x28] sm:$0xff]
          %v1182 = vld [vmem:[#allocation18 + $0x30] sm:$0xff]
          %v1183 = vld [vmem:[#allocation18 + $0x38] sm:$0xff]
          %v1184 = vld [vmem:[#allocation18 + $0x40] sm:$0xff]
          %v1185 = vld [vmem:[#allocation18 + $0x48] sm:$0xff]
          %v1186 = vld [vmem:[#allocation18 + $0x50] sm:$0xff]
          %v1187 = vld [vmem:[#allocation18 + $0x58] sm:$0xff]
          %v1188 = vld [vmem:[#allocation18 + $0x60] sm:$0xff]
          %v1189 = vld [vmem:[#allocation18 + $0x68] sm:$0xff]
          %v1190 = vld [vmem:[#allocation18 + $0x70] sm:$0xff]
          %v1191 = vld [vmem:[#allocation18 + $0x78] sm:$0xff]
          %v1192 = vld [vmem:[#allocation18 + $0x80] sm:$0xff]
          %v1193 = vld [vmem:[#allocation18 + $0x88] sm:$0xff]
          %v1194 = vld [vmem:[#allocation18 + $0x90] sm:$0xff]
          %v1195 = vld [vmem:[#allocation18 + $0x98] sm:$0xff]
          %v1196 = vld [vmem:[#allocation18 + $0xa0] sm:$0xff]
          %v1197 = vld [vmem:[#allocation18 + $0xa8] sm:$0xff]
          %v1198 = vld [vmem:[#allocation18 + $0xb0] sm:$0xff]
          %v1199 = vld [vmem:[#allocation18 + $0xb8] sm:$0xff]
          %v1200 = vld [vmem:[#allocation18 + $0xc0] sm:$0xff]
          %v1201 = vld [vmem:[#allocation18 + $0xc8] sm:$0xff]
          %v1202 = vld [vmem:[#allocation18 + $0xd0] sm:$0xff]
          %v1203 = vld [vmem:[#allocation18 + $0xd8] sm:$0xff]
          %v1204 = vld [vmem:[#allocation18 + $0xe0] sm:$0xff]
          %v1205 = vld [vmem:[#allocation18 + $0xe8] sm:$0xff]
          %v1206 = vld [vmem:[#allocation18 + $0xf0] sm:$0xff]
          %v1207 = vld [vmem:[#allocation18 + $0xf8] sm:$0xff]
          %v1240 = vunpack.c.l.b16 %v1176
          %v1241 = vunpack.c.h.b16 %v1176
          %v1242 = vunpack.c.l.b16 %v1177
          %v1243 = vunpack.c.h.b16 %v1177
          %v1244 = vunpack.c.l.b16 %v1178
          %v1245 = vunpack.c.h.b16 %v1178
          %v1246 = vunpack.c.l.b16 %v1179
          %v1247 = vunpack.c.h.b16 %v1179
          %v1248 = vunpack.c.l.b16 %v1180
          %v1249 = vunpack.c.h.b16 %v1180
          %v1250 = vunpack.c.l.b16 %v1181
          %v1251 = vunpack.c.h.b16 %v1181
          %v1252 = vunpack.c.l.b16 %v1182
          %v1253 = vunpack.c.h.b16 %v1182
          %v1254 = vunpack.c.l.b16 %v1183
          %v1255 = vunpack.c.h.b16 %v1183
          %v1256 = vunpack.c.l.b16 %v1184
          %v1257 = vunpack.c.h.b16 %v1184
          %v1258 = vunpack.c.l.b16 %v1185
          %v1259 = vunpack.c.h.b16 %v1185
          %v1260 = vunpack.c.l.b16 %v1186
          %v1261 = vunpack.c.h.b16 %v1186
          %v1262 = vunpack.c.l.b16 %v1187
          %v1263 = vunpack.c.h.b16 %v1187
          %v1264 = vunpack.c.l.b16 %v1188
          %v1265 = vunpack.c.h.b16 %v1188
          %v1266 = vunpack.c.l.b16 %v1189
          %v1267 = vunpack.c.h.b16 %v1189
          %v1268 = vunpack.c.l.b16 %v1190
          %v1269 = vunpack.c.h.b16 %v1190
          %v1270 = vunpack.c.l.b16 %v1191
          %v1271 = vunpack.c.h.b16 %v1191
          %v1272 = vunpack.c.l.b16 %v1192
          %v1273 = vunpack.c.h.b16 %v1192
          %v1274 = vunpack.c.l.b16 %v1193
          %v1275 = vunpack.c.h.b16 %v1193
          %v1276 = vunpack.c.l.b16 %v1194
          %v1277 = vunpack.c.h.b16 %v1194
          %v1278 = vunpack.c.l.b16 %v1195
          %v1279 = vunpack.c.h.b16 %v1195
          %v1280 = vunpack.c.l.b16 %v1196
          %v1281 = vunpack.c.h.b16 %v1196
          %v1282 = vunpack.c.l.b16 %v1197
          %v1283 = vunpack.c.h.b16 %v1197
          %v1284 = vunpack.c.l.b16 %v1198
          %v1285 = vunpack.c.h.b16 %v1198
          %v1286 = vunpack.c.l.b16 %v1199
          %v1287 = vunpack.c.h.b16 %v1199
          %v1288 = vunpack.c.l.b16 %v1200
          %v1289 = vunpack.c.h.b16 %v1200
          %v1290 = vunpack.c.l.b16 %v1201
          %v1291 = vunpack.c.h.b16 %v1201
          %v1292 = vunpack.c.l.b16 %v1202
          %v1293 = vunpack.c.h.b16 %v1202
          %v1294 = vunpack.c.l.b16 %v1203
          %v1295 = vunpack.c.h.b16 %v1203
          %v1296 = vunpack.c.l.b16 %v1204
          %v1297 = vunpack.c.h.b16 %v1204
          %v1298 = vunpack.c.l.b16 %v1205
          %v1299 = vunpack.c.h.b16 %v1205
          %v1300 = vunpack.c.l.b16 %v1206
          %v1301 = vunpack.c.h.b16 %v1206
          %v1302 = vunpack.c.l.b16 %v1207
          %v1303 = vunpack.c.h.b16 %v1207
          %v1304 = vpack.c.b16 %v1244, %v1240
          %v1305 = vpack.c.b16 %v1245, %v1241
          %v1306 = vpack.c.b16 %v1246, %v1242
          %v1307 = vpack.c.b16 %v1247, %v1243
          %v1308 = vpack.c.b16 %v1252, %v1248
          %v1309 = vpack.c.b16 %v1253, %v1249
          %v1310 = vpack.c.b16 %v1254, %v1250
          %v1311 = vpack.c.b16 %v1255, %v1251
          %v1312 = vpack.c.b16 %v1260, %v1256
          %v1313 = vpack.c.b16 %v1261, %v1257
          %v1314 = vpack.c.b16 %v1262, %v1258
          %v1315 = vpack.c.b16 %v1263, %v1259
          %v1316 = vpack.c.b16 %v1268, %v1264
          %v1317 = vpack.c.b16 %v1269, %v1265
          %v1318 = vpack.c.b16 %v1270, %v1266
          %v1319 = vpack.c.b16 %v1271, %v1267
          %v1320 = vpack.c.b16 %v1276, %v1272
          %v1321 = vpack.c.b16 %v1277, %v1273
          %v1322 = vpack.c.b16 %v1278, %v1274
          %v1323 = vpack.c.b16 %v1279, %v1275
          %v1324 = vpack.c.b16 %v1284, %v1280
          %v1325 = vpack.c.b16 %v1285, %v1281
          %v1326 = vpack.c.b16 %v1286, %v1282
          %v1327 = vpack.c.b16 %v1287, %v1283
          %v1328 = vpack.c.b16 %v1292, %v1288
          %v1329 = vpack.c.b16 %v1293, %v1289
          %v1330 = vpack.c.b16 %v1294, %v1290
          %v1331 = vpack.c.b16 %v1295, %v1291
          %v1332 = vpack.c.b16 %v1300, %v1296
          %v1333 = vpack.c.b16 %v1301, %v1297
          %v1334 = vpack.c.b16 %v1302, %v1298
          %v1335 = vpack.c.b16 %v1303, %v1299
          %1368 = vmatprep.subr.bf16.mxu0 %v1305
          %1369 = vmatpush1.bf16.msra.mxu0 %v1304
          %1370 = vmatprep.subr.bf16.mxu0 %v1309
          %1371 = vmatpush1.bf16.msra.mxu0 %v1308
          %1372 = vmatprep.subr.bf16.mxu0 %v1313
          %1373 = vmatpush1.bf16.msra.mxu0 %v1312
          %1374 = vmatprep.subr.bf16.mxu0 %v1317
          %1375 = vmatpush1.bf16.msra.mxu0 %v1316
          %1376 = vmatprep.subr.bf16.mxu0 %v1321
          %1377 = vmatpush1.bf16.msra.mxu0 %v1320
          %1378 = vmatprep.subr.bf16.mxu0 %v1325
          %1379 = vmatpush1.bf16.msra.mxu0 %v1324
          %1380 = vmatprep.subr.bf16.mxu0 %v1329
          %1381 = vmatpush1.bf16.msra.mxu0 %v1328
          %1382 = vmatprep.subr.bf16.mxu0 %v1333
          %1383 = vmatpush1.bf16.msra.mxu0 %v1332
          %1384 = vmatprep.subr.bf16.mxu0 0
          %1385 = vmatpush1.bf16.msra.mxu0 0
          %1386 = vmatprep.subr.bf16.mxu0 0
          %1387 = vmatpush1.bf16.msra.mxu0 0
          %1388 = vmatprep.subr.bf16.mxu0 0
          %1389 = vmatpush1.bf16.msra.mxu0 0
          %1390 = vmatprep.subr.bf16.mxu0 0
          %1391 = vmatpush1.bf16.msra.mxu0 0
          %1392 = vmatprep.subr.bf16.mxu0 0
          %1393 = vmatpush1.bf16.msra.mxu0 0
          %1394 = vmatprep.subr.bf16.mxu0 0
          %1395 = vmatpush1.bf16.msra.mxu0 0
          %1396 = vmatprep.subr.bf16.mxu0 0
          %1397 = vmatpush1.bf16.msra.mxu0 0
          %1398 = vmatprep.subr.bf16.mxu0 0
          %1399 = vmatpush1.bf16.msra.mxu0 0
          %1400 = vmatprep.mubr.bf16.mxu0 0
          %1401 = vmatmul.mubr.bf16.gmra.mrb[0].mxu0 %v1175
          %v1402 = vpop.f32.mrb[0].mxu0
          %v1403 = vadd.f32 0.0, %v1402
          %v1404 = vpop.f32.mrb[0].mxu0
          %v1405 = vadd.f32 0.0, %v1404
          %v1406 = vpop.f32.mrb[0].mxu0
          %v1407 = vadd.f32 0.0, %v1406
          %v1408 = vpop.f32.mrb[0].mxu0
          %v1409 = vadd.f32 0.0, %v1408
          %1410 = vdwg.mxu0
          %1411 = vmatprep.subr.bf16.mxu0 %v1307
          %1412 = vmatpush1.bf16.msra.mxu0 %v1306
          %1413 = vmatprep.subr.bf16.mxu0 %v1311
          %1414 = vmatpush1.bf16.msra.mxu0 %v1310
          %1415 = vmatprep.subr.bf16.mxu0 %v1315
          %1416 = vmatpush1.bf16.msra.mxu0 %v1314
          %1417 = vmatprep.subr.bf16.mxu0 %v1319
          %1418 = vmatpush1.bf16.msra.mxu0 %v1318
          %1419 = vmatprep.subr.bf16.mxu0 %v1323
          %1420 = vmatpush1.bf16.msra.mxu0 %v1322
          %1421 = vmatprep.subr.bf16.mxu0 %v1327
          %1422 = vmatpush1.bf16.msra.mxu0 %v1326
          %1423 = vmatprep.subr.bf16.mxu0 %v1331
          %1424 = vmatpush1.bf16.msra.mxu0 %v1330
          %1425 = vmatprep.subr.bf16.mxu0 %v1335
          %1426 = vmatpush1.bf16.msra.mxu0 %v1334
          %1427 = vmatprep.subr.bf16.mxu0 0
          %1428 = vmatpush1.bf16.msra.mxu0 0
          %1429 = vmatprep.subr.bf16.mxu0 0
          %1430 = vmatpush1.bf16.msra.mxu0 0
          %1431 = vmatprep.subr.bf16.mxu0 0
          %1432 = vmatpush1.bf16.msra.mxu0 0
          %1433 = vmatprep.subr.bf16.mxu0 0
          %1434 = vmatpush1.bf16.msra.mxu0 0
          %1435 = vmatprep.subr.bf16.mxu0 0
          %1436 = vmatpush1.bf16.msra.mxu0 0
          %1437 = vmatprep.subr.bf16.mxu0 0
          %1438 = vmatpush1.bf16.msra.mxu0 0
          %1439 = vmatprep.subr.bf16.mxu0 0
          %1440 = vmatpush1.bf16.msra.mxu0 0
          %1441 = vmatprep.subr.bf16.mxu0 0
          %1442 = vmatpush1.bf16.msra.mxu0 0
          %1443 = vmatprep.mubr.bf16.mxu0 0
          %1444 = vmatmul.mubr.bf16.gmra.mrb[0].mxu0 %v1175
          %v1445 = vpop.f32.mrb[0].mxu0
          %v1446 = vadd.f32 0.0, %v1445
          %v1447 = vpop.f32.mrb[0].mxu0
          %v1448 = vadd.f32 0.0, %v1447
          %v1449 = vpop.f32.mrb[0].mxu0
          %v1450 = vadd.f32 0.0, %v1449
          %v1451 = vpop.f32.mrb[0].mxu0
          %v1452 = vadd.f32 0.0, %v1451
          %1453 = vdwg.mxu0
          %v1454 = vadd.f32 %v1167, %v1403
          %v1455 = vadd.f32 %v1168, %v1405
          %v1456 = vadd.f32 %v1169, %v1446
          %v1457 = vadd.f32 %v1170, %v1448
          %v1458 = vadd.f32 %v1171, %v1407
          %v1459 = vadd.f32 %v1172, %v1409
          %v1460 = vadd.f32 %v1173, %v1450
          %v1461 = vadd.f32 %v1174, %v1452
          %s1462 = smul.addr %s1164, 8
          %s1463 = scalar_lea.vmem [#allocation7], %s1462
          %v1464 = vld [vmem:[%s1463] sm:$0xff]
          %v1465 = vld [vmem:[%s1463 + $0x8] sm:$0xff]
          %v1466 = vld [vmem:[%s1463 + $0x10] sm:$0xff]
          %v1467 = vld [vmem:[%s1463 + $0x18] sm:$0xff]
          %v1468 = vld [vmem:[%s1463 + $0x20] sm:$0xff]
          %v1469 = vld [vmem:[%s1463 + $0x28] sm:$0xff]
          %v1470 = vld [vmem:[%s1463 + $0x30] sm:$0xff]
          %v1471 = vld [vmem:[%s1463 + $0x38] sm:$0xff]
          %v1472 = vld [vmem:[#allocation4] sm:$0xff]
          %v1473 = vld [vmem:[#allocation19] sm:$0xff]
          %v1474 = vld [vmem:[#allocation19 + $0x8] sm:$0xff]
          %v1475 = vld [vmem:[#allocation19 + $0x10] sm:$0xff]
          %v1476 = vld [vmem:[#allocation19 + $0x18] sm:$0xff]
          %v1477 = vld [vmem:[#allocation19 + $0x20] sm:$0xff]
          %v1478 = vld [vmem:[#allocation19 + $0x28] sm:$0xff]
          %v1479 = vld [vmem:[#allocation19 + $0x30] sm:$0xff]
          %v1480 = vld [vmem:[#allocation19 + $0x38] sm:$0xff]
          %v1481 = vld [vmem:[#allocation19 + $0x40] sm:$0xff]
          %v1482 = vld [vmem:[#allocation19 + $0x48] sm:$0xff]
          %v1483 = vld [vmem:[#allocation19 + $0x50] sm:$0xff]
          %v1484 = vld [vmem:[#allocation19 + $0x58] sm:$0xff]
          %v1485 = vld [vmem:[#allocation19 + $0x60] sm:$0xff]
          %v1486 = vld [vmem:[#allocation19 + $0x68] sm:$0xff]
          %v1487 = vld [vmem:[#allocation19 + $0x70] sm:$0xff]
          %v1488 = vld [vmem:[#allocation19 + $0x78] sm:$0xff]
          %v1489 = vld [vmem:[#allocation19 + $0x80] sm:$0xff]
          %v1490 = vld [vmem:[#allocation19 + $0x88] sm:$0xff]
          %v1491 = vld [vmem:[#allocation19 + $0x90] sm:$0xff]
          %v1492 = vld [vmem:[#allocation19 + $0x98] sm:$0xff]
          %v1493 = vld [vmem:[#allocation19 + $0xa0] sm:$0xff]
          %v1494 = vld [vmem:[#allocation19 + $0xa8] sm:$0xff]
          %v1495 = vld [vmem:[#allocation19 + $0xb0] sm:$0xff]
          %v1496 = vld [vmem:[#allocation19 + $0xb8] sm:$0xff]
          %v1497 = vld [vmem:[#allocation19 + $0xc0] sm:$0xff]
          %v1498 = vld [vmem:[#allocation19 + $0xc8] sm:$0xff]
          %v1499 = vld [vmem:[#allocation19 + $0xd0] sm:$0xff]
          %v1500 = vld [vmem:[#allocation19 + $0xd8] sm:$0xff]
          %v1501 = vld [vmem:[#allocation19 + $0xe0] sm:$0xff]
          %v1502 = vld [vmem:[#allocation19 + $0xe8] sm:$0xff]
          %v1503 = vld [vmem:[#allocation19 + $0xf0] sm:$0xff]
          %v1504 = vld [vmem:[#allocation19 + $0xf8] sm:$0xff]
          %v1537 = vunpack.c.l.b16 %v1473
          %v1538 = vunpack.c.h.b16 %v1473
          %v1539 = vunpack.c.l.b16 %v1474
          %v1540 = vunpack.c.h.b16 %v1474
          %v1541 = vunpack.c.l.b16 %v1475
          %v1542 = vunpack.c.h.b16 %v1475
          %v1543 = vunpack.c.l.b16 %v1476
          %v1544 = vunpack.c.h.b16 %v1476
          %v1545 = vunpack.c.l.b16 %v1477
          %v1546 = vunpack.c.h.b16 %v1477
          %v1547 = vunpack.c.l.b16 %v1478
          %v1548 = vunpack.c.h.b16 %v1478
          %v1549 = vunpack.c.l.b16 %v1479
          %v1550 = vunpack.c.h.b16 %v1479
          %v1551 = vunpack.c.l.b16 %v1480
          %v1552 = vunpack.c.h.b16 %v1480
          %v1553 = vunpack.c.l.b16 %v1481
          %v1554 = vunpack.c.h.b16 %v1481
          %v1555 = vunpack.c.l.b16 %v1482
          %v1556 = vunpack.c.h.b16 %v1482
          %v1557 = vunpack.c.l.b16 %v1483
          %v1558 = vunpack.c.h.b16 %v1483
          %v1559 = vunpack.c.l.b16 %v1484
          %v1560 = vunpack.c.h.b16 %v1484
          %v1561 = vunpack.c.l.b16 %v1485
          %v1562 = vunpack.c.h.b16 %v1485
          %v1563 = vunpack.c.l.b16 %v1486
          %v1564 = vunpack.c.h.b16 %v1486
          %v1565 = vunpack.c.l.b16 %v1487
          %v1566 = vunpack.c.h.b16 %v1487
          %v1567 = vunpack.c.l.b16 %v1488
          %v1568 = vunpack.c.h.b16 %v1488
          %v1569 = vunpack.c.l.b16 %v1489
          %v1570 = vunpack.c.h.b16 %v1489
          %v1571 = vunpack.c.l.b16 %v1490
          %v1572 = vunpack.c.h.b16 %v1490
          %v1573 = vunpack.c.l.b16 %v1491
          %v1574 = vunpack.c.h.b16 %v1491
          %v1575 = vunpack.c.l.b16 %v1492
          %v1576 = vunpack.c.h.b16 %v1492
          %v1577 = vunpack.c.l.b16 %v1493
          %v1578 = vunpack.c.h.b16 %v1493
          %v1579 = vunpack.c.l.b16 %v1494
          %v1580 = vunpack.c.h.b16 %v1494
          %v1581 = vunpack.c.l.b16 %v1495
          %v1582 = vunpack.c.h.b16 %v1495
          %v1583 = vunpack.c.l.b16 %v1496
          %v1584 = vunpack.c.h.b16 %v1496
          %v1585 = vunpack.c.l.b16 %v1497
          %v1586 = vunpack.c.h.b16 %v1497
          %v1587 = vunpack.c.l.b16 %v1498
          %v1588 = vunpack.c.h.b16 %v1498
          %v1589 = vunpack.c.l.b16 %v1499
          %v1590 = vunpack.c.h.b16 %v1499
          %v1591 = vunpack.c.l.b16 %v1500
          %v1592 = vunpack.c.h.b16 %v1500
          %v1593 = vunpack.c.l.b16 %v1501
          %v1594 = vunpack.c.h.b16 %v1501
          %v1595 = vunpack.c.l.b16 %v1502
          %v1596 = vunpack.c.h.b16 %v1502
          %v1597 = vunpack.c.l.b16 %v1503
          %v1598 = vunpack.c.h.b16 %v1503
          %v1599 = vunpack.c.l.b16 %v1504
          %v1600 = vunpack.c.h.b16 %v1504
          %v1601 = vpack.c.b16 %v1541, %v1537
          %v1602 = vpack.c.b16 %v1542, %v1538
          %v1603 = vpack.c.b16 %v1543, %v1539
          %v1604 = vpack.c.b16 %v1544, %v1540
          %v1605 = vpack.c.b16 %v1549, %v1545
          %v1606 = vpack.c.b16 %v1550, %v1546
          %v1607 = vpack.c.b16 %v1551, %v1547
          %v1608 = vpack.c.b16 %v1552, %v1548
          %v1609 = vpack.c.b16 %v1557, %v1553
          %v1610 = vpack.c.b16 %v1558, %v1554
          %v1611 = vpack.c.b16 %v1559, %v1555
          %v1612 = vpack.c.b16 %v1560, %v1556
          %v1613 = vpack.c.b16 %v1565, %v1561
          %v1614 = vpack.c.b16 %v1566, %v1562
          %v1615 = vpack.c.b16 %v1567, %v1563
          %v1616 = vpack.c.b16 %v1568, %v1564
          %v1617 = vpack.c.b16 %v1573, %v1569
          %v1618 = vpack.c.b16 %v1574, %v1570
          %v1619 = vpack.c.b16 %v1575, %v1571
          %v1620 = vpack.c.b16 %v1576, %v1572
          %v1621 = vpack.c.b16 %v1581, %v1577
          %v1622 = vpack.c.b16 %v1582, %v1578
          %v1623 = vpack.c.b16 %v1583, %v1579
          %v1624 = vpack.c.b16 %v1584, %v1580
          %v1625 = vpack.c.b16 %v1589, %v1585
          %v1626 = vpack.c.b16 %v1590, %v1586
          %v1627 = vpack.c.b16 %v1591, %v1587
          %v1628 = vpack.c.b16 %v1592, %v1588
          %v1629 = vpack.c.b16 %v1597, %v1593
          %v1630 = vpack.c.b16 %v1598, %v1594
          %v1631 = vpack.c.b16 %v1599, %v1595
          %v1632 = vpack.c.b16 %v1600, %v1596
          %1665 = vmatprep.subr.bf16.mxu0 %v1602
          %1666 = vmatpush1.bf16.msra.mxu0 %v1601
          %1667 = vmatprep.subr.bf16.mxu0 %v1606
          %1668 = vmatpush1.bf16.msra.mxu0 %v1605
          %1669 = vmatprep.subr.bf16.mxu0 %v1610
          %1670 = vmatpush1.bf16.msra.mxu0 %v1609
          %1671 = vmatprep.subr.bf16.mxu0 %v1614
          %1672 = vmatpush1.bf16.msra.mxu0 %v1613
          %1673 = vmatprep.subr.bf16.mxu0 %v1618
          %1674 = vmatpush1.bf16.msra.mxu0 %v1617
          %1675 = vmatprep.subr.bf16.mxu0 %v1622
          %1676 = vmatpush1.bf16.msra.mxu0 %v1621
          %1677 = vmatprep.subr.bf16.mxu0 %v1626
          %1678 = vmatpush1.bf16.msra.mxu0 %v1625
          %1679 = vmatprep.subr.bf16.mxu0 %v1630
          %1680 = vmatpush1.bf16.msra.mxu0 %v1629
          %1681 = vmatprep.subr.bf16.mxu0 0
          %1682 = vmatpush1.bf16.msra.mxu0 0
          %1683 = vmatprep.subr.bf16.mxu0 0
          %1684 = vmatpush1.bf16.msra.mxu0 0
          %1685 = vmatprep.subr.bf16.mxu0 0
          %1686 = vmatpush1.bf16.msra.mxu0 0
          %1687 = vmatprep.subr.bf16.mxu0 0
          %1688 = vmatpush1.bf16.msra.mxu0 0
          %1689 = vmatprep.subr.bf16.mxu0 0
          %1690 = vmatpush1.bf16.msra.mxu0 0
          %1691 = vmatprep.subr.bf16.mxu0 0
          %1692 = vmatpush1.bf16.msra.mxu0 0
          %1693 = vmatprep.subr.bf16.mxu0 0
          %1694 = vmatpush1.bf16.msra.mxu0 0
          %1695 = vmatprep.subr.bf16.mxu0 0
          %1696 = vmatpush1.bf16.msra.mxu0 0
          %1697 = vmatprep.mubr.bf16.mxu0 0
          %1698 = vmatmul.mubr.bf16.gmra.mrb[0].mxu0 %v1472
          %v1699 = vpop.f32.mrb[0].mxu0
          %v1700 = vadd.f32 0.0, %v1699
          %v1701 = vpop.f32.mrb[0].mxu0
          %v1702 = vadd.f32 0.0, %v1701
          %v1703 = vpop.f32.mrb[0].mxu0
          %v1704 = vadd.f32 0.0, %v1703
          %v1705 = vpop.f32.mrb[0].mxu0
          %v1706 = vadd.f32 0.0, %v1705
          %1707 = vdwg.mxu0
          %1708 = vmatprep.subr.bf16.mxu0 %v1604
          %1709 = vmatpush1.bf16.msra.mxu0 %v1603
          %1710 = vmatprep.subr.bf16.mxu0 %v1608
          %1711 = vmatpush1.bf16.msra.mxu0 %v1607
          %1712 = vmatprep.subr.bf16.mxu0 %v1612
          %1713 = vmatpush1.bf16.msra.mxu0 %v1611
          %1714 = vmatprep.subr.bf16.mxu0 %v1616
          %1715 = vmatpush1.bf16.msra.mxu0 %v1615
          %1716 = vmatprep.subr.bf16.mxu0 %v1620
          %1717 = vmatpush1.bf16.msra.mxu0 %v1619
          %1718 = vmatprep.subr.bf16.mxu0 %v1624
          %1719 = vmatpush1.bf16.msra.mxu0 %v1623
          %1720 = vmatprep.subr.bf16.mxu0 %v1628
          %1721 = vmatpush1.bf16.msra.mxu0 %v1627
          %1722 = vmatprep.subr.bf16.mxu0 %v1632
          %1723 = vmatpush1.bf16.msra.mxu0 %v1631
          %1724 = vmatprep.subr.bf16.mxu0 0
          %1725 = vmatpush1.bf16.msra.mxu0 0
          %1726 = vmatprep.subr.bf16.mxu0 0
          %1727 = vmatpush1.bf16.msra.mxu0 0
          %1728 = vmatprep.subr.bf16.mxu0 0
          %1729 = vmatpush1.bf16.msra.mxu0 0
          %1730 = vmatprep.subr.bf16.mxu0 0
          %1731 = vmatpush1.bf16.msra.mxu0 0
          %1732 = vmatprep.subr.bf16.mxu0 0
          %1733 = vmatpush1.bf16.msra.mxu0 0
          %1734 = vmatprep.subr.bf16.mxu0 0
          %1735 = vmatpush1.bf16.msra.mxu0 0
          %1736 = vmatprep.subr.bf16.mxu0 0
          %1737 = vmatpush1.bf16.msra.mxu0 0
          %1738 = vmatprep.subr.bf16.mxu0 0
          %1739 = vmatpush1.bf16.msra.mxu0 0
          %1740 = vmatprep.mubr.bf16.mxu0 0
          %1741 = vmatmul.mubr.bf16.gmra.mrb[0].mxu0 %v1472
          %v1742 = vpop.f32.mrb[0].mxu0
          %v1743 = vadd.f32 0.0, %v1742
          %v1744 = vpop.f32.mrb[0].mxu0
          %v1745 = vadd.f32 0.0, %v1744
          %v1746 = vpop.f32.mrb[0].mxu0
          %v1747 = vadd.f32 0.0, %v1746
          %v1748 = vpop.f32.mrb[0].mxu0
          %v1749 = vadd.f32 0.0, %v1748
          %1750 = vdwg.mxu0
          %v1751 = vadd.f32 %v1464, %v1700
          %v1752 = vadd.f32 %v1465, %v1702
          %v1753 = vadd.f32 %v1466, %v1743
          %v1754 = vadd.f32 %v1467, %v1745
          %v1755 = vadd.f32 %v1468, %v1704
          %v1756 = vadd.f32 %v1469, %v1706
          %v1757 = vadd.f32 %v1470, %v1747
          %v1758 = vadd.f32 %v1471, %v1749
          %v1759 = vld [vmem:[#allocation3] sm:$0xff]
          %v1760 = vld [vmem:[#allocation3 + $0x8] sm:$0xff]
          %v1761 = vxor.u32 %v1454, 2147483648
          %v1762 = vxor.u32 %v1458, 2147483648
          %v1763 = vmul.f32 %v1761, 1.442695
          %v1764 = vpow.pop %v1763
          %v1765 = vmul.f32 %v1762, 1.442695
          %v1766 = vpow.pop %v1765
          %v1767 = vadd.f32 %v1764, 1.0
          %v1768 = vadd.f32 %v1766, 1.0
          %v1769 = vrcp.pop %v1767
          %v1770 = vmul.f32 1.0, %v1769
          %v1771 = vrcp.pop %v1768
          %v1772 = vmul.f32 1.0, %v1771
          %v1773 = vxor.u32 %v1455, 2147483648
          %v1774 = vxor.u32 %v1459, 2147483648
          %v1775 = vmul.f32 %v1773, 1.442695
          %v1776 = vpow.pop %v1775
          %v1777 = vmul.f32 %v1774, 1.442695
          %v1778 = vpow.pop %v1777
          %v1779 = vadd.f32 %v1776, 1.0
          %v1780 = vadd.f32 %v1778, 1.0
          %v1781 = vrcp.pop %v1779
          %v1782 = vmul.f32 1.0, %v1781
          %v1783 = vrcp.pop %v1780
          %v1784 = vmul.f32 1.0, %v1783
          %v1785 = vtanh.pop %v1456
          %v1786 = vtanh.pop %v1460
          %v1787 = vxor.u32 %v1457, 2147483648
          %v1788 = vxor.u32 %v1461, 2147483648
          %v1789 = vmul.f32 %v1787, 1.442695
          %v1790 = vpow.pop %v1789
          %v1791 = vmul.f32 %v1788, 1.442695
          %v1792 = vpow.pop %v1791
          %v1793 = vadd.f32 %v1790, 1.0
          %v1794 = vadd.f32 %v1792, 1.0
          %v1795 = vrcp.pop %v1793
          %v1796 = vmul.f32 1.0, %v1795
          %v1797 = vrcp.pop %v1794
          %v1798 = vmul.f32 1.0, %v1797
          %v1799 = vmul.f32 %v1782, %v1759
          %v1800 = vmul.f32 %v1784, %v1760
          %v1801 = vmul.f32 %v1770, %v1785
          %v1802 = vmul.f32 %v1772, %v1786
          %v1803 = vadd.f32 %v1799, %v1801
          %v1804 = vadd.f32 %v1800, %v1802
          %v1805 = vtanh.pop %v1803
          %v1806 = vtanh.pop %v1804
          %v1807 = vmul.f32 %v1796, %v1805
          %v1808 = vmul.f32 %v1798, %v1806
          %v1809 = vld [vmem:[#allocation5] sm:$0xff]
          %v1810 = vld [vmem:[#allocation5 + $0x8] sm:$0xff]
          %v1811 = vxor.u32 %v1751, 2147483648
          %v1812 = vxor.u32 %v1755, 2147483648
          %v1813 = vmul.f32 %v1811, 1.442695
          %v1814 = vpow.pop %v1813
          %v1815 = vmul.f32 %v1812, 1.442695
          %v1816 = vpow.pop %v1815
          %v1817 = vadd.f32 %v1814, 1.0
          %v1818 = vadd.f32 %v1816, 1.0
          %v1819 = vrcp.pop %v1817
          %v1820 = vmul.f32 1.0, %v1819
          %v1821 = vrcp.pop %v1818
          %v1822 = vmul.f32 1.0, %v1821
          %v1823 = vxor.u32 %v1752, 2147483648
          %v1824 = vxor.u32 %v1756, 2147483648
          %v1825 = vmul.f32 %v1823, 1.442695
          %v1826 = vpow.pop %v1825
          %v1827 = vmul.f32 %v1824, 1.442695
          %v1828 = vpow.pop %v1827
          %v1829 = vadd.f32 %v1826, 1.0
          %v1830 = vadd.f32 %v1828, 1.0
          %v1831 = vrcp.pop %v1829
          %v1832 = vmul.f32 1.0, %v1831
          %v1833 = vrcp.pop %v1830
          %v1834 = vmul.f32 1.0, %v1833
          %v1835 = vtanh.pop %v1753
          %v1836 = vtanh.pop %v1757
          %v1837 = vxor.u32 %v1754, 2147483648
          %v1838 = vxor.u32 %v1758, 2147483648
          %v1839 = vmul.f32 %v1837, 1.442695
          %v1840 = vpow.pop %v1839
          %v1841 = vmul.f32 %v1838, 1.442695
          %v1842 = vpow.pop %v1841
          %v1843 = vadd.f32 %v1840, 1.0
          %v1844 = vadd.f32 %v1842, 1.0
          %v1845 = vrcp.pop %v1843
          %v1846 = vmul.f32 1.0, %v1845
          %v1847 = vrcp.pop %v1844
          %v1848 = vmul.f32 1.0, %v1847
          %v1849 = vmul.f32 %v1832, %v1809
          %v1850 = vmul.f32 %v1834, %v1810
          %v1851 = vmul.f32 %v1820, %v1835
          %v1852 = vmul.f32 %v1822, %v1836
          %v1853 = vadd.f32 %v1849, %v1851
          %v1854 = vadd.f32 %v1850, %v1852
          %v1855 = vtanh.pop %v1853
          %v1856 = vtanh.pop %v1854
          %v1857 = vmul.f32 %v1846, %v1855
          %v1858 = vmul.f32 %v1848, %v1856
          %v1859 = vstv %s575
          %vm1860 = vcmp.gt.s32.totalorder %v584, %v1859
          %vm1861 = vcmp.gt.s32.totalorder %v585, %v1859
          %v1862 = vstv %s1163
          %vm1863 = vcmp.gt.s32.totalorder %v584, %v1862
          %vm1864 = vcmp.gt.s32.totalorder %v585, %v1862
          %v1865 = vpack.c.bf16 %v1808, %v1807
          %v1866 = vsel %vm1860, 1, 0
          %v1867 = vsel %vm1861, 1, 0
          %1868 = vset.pattern.permute.xlu0 0
          %1869 = vperm.xlu0 %1868, %v1866
          %v1870 = vpop.permute.xlu0 %1869
          %1871 = vset.pattern.permute.xlu0 0
          %1872 = vperm.xlu0 %1871, %v1867
          %v1873 = vpop.permute.xlu0 %1872
          %vm1874 = vcmp.eq.s32.totalorder %v1870, 1
          %vm1875 = vcmp.eq.s32.totalorder %v1873, 1
          %vm1876 = vmpackc.low %vm1874, %vm1874
          %vm1877 = vmpackc.low %vm1875, %vm1875
          %v1878 = vsel %vm1876, 65537, 0
          %v1879 = vsel %vm1877, 65537, 0
          %v1880 = vunpack.c.l.b16 %v1878
          %v1881 = vunpack.c.l.b16 %v1879
          %v1882 = vpack.c.b16 %v1881, %v1880
          %vm1883 = vcmp.ne.s16.totalorder %v1882, 0
          %v1884 = vsel %vm1883, %v1865, %v1175
          %1885 = vst [vmem:[#allocation2] sm:$0xff] %v1884
          %v1886 = vld [vmem:[#allocation3] sm:$0xff]
          %v1887 = vld [vmem:[#allocation3 + $0x8] sm:$0xff]
          %v1888 = vsel %vm1874, %v1803, %v1886
          %v1889 = vsel %vm1875, %v1804, %v1887
          %1890 = vst [vmem:[#allocation3] sm:$0xff] %v1888
          %1891 = vst [vmem:[#allocation3 + $0x8] sm:$0xff] %v1889
          %v1892 = vpack.c.bf16 %v1858, %v1857
          %v1893 = vld [vmem:[#allocation4] sm:$0xff]
          %v1894 = vsel %vm1863, 1, 0
          %v1895 = vsel %vm1864, 1, 0
          %1896 = vset.pattern.permute.xlu0 0
          %1897 = vperm.xlu0 %1896, %v1894
          %v1898 = vpop.permute.xlu0 %1897
          %1899 = vset.pattern.permute.xlu0 0
          %1900 = vperm.xlu0 %1899, %v1895
          %v1901 = vpop.permute.xlu0 %1900
          %vm1902 = vcmp.eq.s32.totalorder %v1898, 1
          %vm1903 = vcmp.eq.s32.totalorder %v1901, 1
          %vm1904 = vmpackc.low %vm1902, %vm1902
          %vm1905 = vmpackc.low %vm1903, %vm1903
          %v1906 = vsel %vm1904, 65537, 0
          %v1907 = vsel %vm1905, 65537, 0
          %v1908 = vunpack.c.l.b16 %v1906
          %v1909 = vunpack.c.l.b16 %v1907
          %v1910 = vpack.c.b16 %v1909, %v1908
          %vm1911 = vcmp.ne.s16.totalorder %v1910, 0
          %v1912 = vsel %vm1911, %v1892, %v1893
          %1913 = vst [vmem:[#allocation4] sm:$0xff] %v1912
          %v1914 = vld [vmem:[#allocation5] sm:$0xff]
          %v1915 = vld [vmem:[#allocation5 + $0x8] sm:$0xff]
          %v1916 = vsel %vm1902, %v1853, %v1914
          %v1917 = vsel %vm1903, %v1854, %v1915
          %1918 = vst [vmem:[#allocation5] sm:$0xff] %v1916
          %1919 = vst [vmem:[#allocation5 + $0x8] sm:$0xff] %v1917
          %s1920 = sadd.s32 %s575, 1
          %s1921 = ssub.s32 6, %s575
          %s1922 = smul.u32 2, 4
          %s1923 = smul.addr %s1922, 8
          %s1924 = scalar_lea.vmem [#allocation6], %s1923
          %v1925 = vld [vmem:[%s1924] sm:$0xff]
          %v1926 = vld [vmem:[%s1924 + $0x8] sm:$0xff]
          %v1927 = vld [vmem:[%s1924 + $0x10] sm:$0xff]
          %v1928 = vld [vmem:[%s1924 + $0x18] sm:$0xff]
          %v1929 = vld [vmem:[%s1924 + $0x20] sm:$0xff]
          %v1930 = vld [vmem:[%s1924 + $0x28] sm:$0xff]
          %v1931 = vld [vmem:[%s1924 + $0x30] sm:$0xff]
          %v1932 = vld [vmem:[%s1924 + $0x38] sm:$0xff]
          %v1933 = vld [vmem:[#allocation2] sm:$0xff]
          %v1934 = vld [vmem:[#allocation18] sm:$0xff]
          %v1935 = vld [vmem:[#allocation18 + $0x8] sm:$0xff]
          %v1936 = vld [vmem:[#allocation18 + $0x10] sm:$0xff]
          %v1937 = vld [vmem:[#allocation18 + $0x18] sm:$0xff]
          %v1938 = vld [vmem:[#allocation18 + $0x20] sm:$0xff]
          %v1939 = vld [vmem:[#allocation18 + $0x28] sm:$0xff]
          %v1940 = vld [vmem:[#allocation18 + $0x30] sm:$0xff]
          %v1941 = vld [vmem:[#allocation18 + $0x38] sm:$0xff]
          %v1942 = vld [vmem:[#allocation18 + $0x40] sm:$0xff]
          %v1943 = vld [vmem:[#allocation18 + $0x48] sm:$0xff]
          %v1944 = vld [vmem:[#allocation18 + $0x50] sm:$0xff]
          %v1945 = vld [vmem:[#allocation18 + $0x58] sm:$0xff]
          %v1946 = vld [vmem:[#allocation18 + $0x60] sm:$0xff]
          %v1947 = vld [vmem:[#allocation18 + $0x68] sm:$0xff]
          %v1948 = vld [vmem:[#allocation18 + $0x70] sm:$0xff]
          %v1949 = vld [vmem:[#allocation18 + $0x78] sm:$0xff]
          %v1950 = vld [vmem:[#allocation18 + $0x80] sm:$0xff]
          %v1951 = vld [vmem:[#allocation18 + $0x88] sm:$0xff]
          %v1952 = vld [vmem:[#allocation18 + $0x90] sm:$0xff]
          %v1953 = vld [vmem:[#allocation18 + $0x98] sm:$0xff]
          %v1954 = vld [vmem:[#allocation18 + $0xa0] sm:$0xff]
          %v1955 = vld [vmem:[#allocation18 + $0xa8] sm:$0xff]
          %v1956 = vld [vmem:[#allocation18 + $0xb0] sm:$0xff]
          %v1957 = vld [vmem:[#allocation18 + $0xb8] sm:$0xff]
          %v1958 = vld [vmem:[#allocation18 + $0xc0] sm:$0xff]
          %v1959 = vld [vmem:[#allocation18 + $0xc8] sm:$0xff]
          %v1960 = vld [vmem:[#allocation18 + $0xd0] sm:$0xff]
          %v1961 = vld [vmem:[#allocation18 + $0xd8] sm:$0xff]
          %v1962 = vld [vmem:[#allocation18 + $0xe0] sm:$0xff]
          %v1963 = vld [vmem:[#allocation18 + $0xe8] sm:$0xff]
          %v1964 = vld [vmem:[#allocation18 + $0xf0] sm:$0xff]
          %v1965 = vld [vmem:[#allocation18 + $0xf8] sm:$0xff]
          %v1998 = vunpack.c.l.b16 %v1934
          %v1999 = vunpack.c.h.b16 %v1934
          %v2000 = vunpack.c.l.b16 %v1935
          %v2001 = vunpack.c.h.b16 %v1935
          %v2002 = vunpack.c.l.b16 %v1936
          %v2003 = vunpack.c.h.b16 %v1936
          %v2004 = vunpack.c.l.b16 %v1937
          %v2005 = vunpack.c.h.b16 %v1937
          %v2006 = vunpack.c.l.b16 %v1938
          %v2007 = vunpack.c.h.b16 %v1938
          %v2008 = vunpack.c.l.b16 %v1939
          %v2009 = vunpack.c.h.b16 %v1939
          %v2010 = vunpack.c.l.b16 %v1940
          %v2011 = vunpack.c.h.b16 %v1940
          %v2012 = vunpack.c.l.b16 %v1941
          %v2013 = vunpack.c.h.b16 %v1941
          %v2014 = vunpack.c.l.b16 %v1942
          %v2015 = vunpack.c.h.b16 %v1942
          %v2016 = vunpack.c.l.b16 %v1943
          %v2017 = vunpack.c.h.b16 %v1943
          %v2018 = vunpack.c.l.b16 %v1944
          %v2019 = vunpack.c.h.b16 %v1944
          %v2020 = vunpack.c.l.b16 %v1945
          %v2021 = vunpack.c.h.b16 %v1945
          %v2022 = vunpack.c.l.b16 %v1946
          %v2023 = vunpack.c.h.b16 %v1946
          %v2024 = vunpack.c.l.b16 %v1947
          %v2025 = vunpack.c.h.b16 %v1947
          %v2026 = vunpack.c.l.b16 %v1948
          %v2027 = vunpack.c.h.b16 %v1948
          %v2028 = vunpack.c.l.b16 %v1949
          %v2029 = vunpack.c.h.b16 %v1949
          %v2030 = vunpack.c.l.b16 %v1950
          %v2031 = vunpack.c.h.b16 %v1950
          %v2032 = vunpack.c.l.b16 %v1951
          %v2033 = vunpack.c.h.b16 %v1951
          %v2034 = vunpack.c.l.b16 %v1952
          %v2035 = vunpack.c.h.b16 %v1952
          %v2036 = vunpack.c.l.b16 %v1953
          %v2037 = vunpack.c.h.b16 %v1953
          %v2038 = vunpack.c.l.b16 %v1954
          %v2039 = vunpack.c.h.b16 %v1954
          %v2040 = vunpack.c.l.b16 %v1955
          %v2041 = vunpack.c.h.b16 %v1955
          %v2042 = vunpack.c.l.b16 %v1956
          %v2043 = vunpack.c.h.b16 %v1956
          %v2044 = vunpack.c.l.b16 %v1957
          %v2045 = vunpack.c.h.b16 %v1957
          %v2046 = vunpack.c.l.b16 %v1958
          %v2047 = vunpack.c.h.b16 %v1958
          %v2048 = vunpack.c.l.b16 %v1959
          %v2049 = vunpack.c.h.b16 %v1959
          %v2050 = vunpack.c.l.b16 %v1960
          %v2051 = vunpack.c.h.b16 %v1960
          %v2052 = vunpack.c.l.b16 %v1961
          %v2053 = vunpack.c.h.b16 %v1961
          %v2054 = vunpack.c.l.b16 %v1962
          %v2055 = vunpack.c.h.b16 %v1962
          %v2056 = vunpack.c.l.b16 %v1963
          %v2057 = vunpack.c.h.b16 %v1963
          %v2058 = vunpack.c.l.b16 %v1964
          %v2059 = vunpack.c.h.b16 %v1964
          %v2060 = vunpack.c.l.b16 %v1965
          %v2061 = vunpack.c.h.b16 %v1965
          %v2062 = vpack.c.b16 %v2002, %v1998
          %v2063 = vpack.c.b16 %v2003, %v1999
          %v2064 = vpack.c.b16 %v2004, %v2000
          %v2065 = vpack.c.b16 %v2005, %v2001
          %v2066 = vpack.c.b16 %v2010, %v2006
          %v2067 = vpack.c.b16 %v2011, %v2007
          %v2068 = vpack.c.b16 %v2012, %v2008
          %v2069 = vpack.c.b16 %v2013, %v2009
          %v2070 = vpack.c.b16 %v2018, %v2014
          %v2071 = vpack.c.b16 %v2019, %v2015
          %v2072 = vpack.c.b16 %v2020, %v2016
          %v2073 = vpack.c.b16 %v2021, %v2017
          %v2074 = vpack.c.b16 %v2026, %v2022
          %v2075 = vpack.c.b16 %v2027, %v2023
          %v2076 = vpack.c.b16 %v2028, %v2024
          %v2077 = vpack.c.b16 %v2029, %v2025
          %v2078 = vpack.c.b16 %v2034, %v2030
          %v2079 = vpack.c.b16 %v2035, %v2031
          %v2080 = vpack.c.b16 %v2036, %v2032
          %v2081 = vpack.c.b16 %v2037, %v2033
          %v2082 = vpack.c.b16 %v2042, %v2038
          %v2083 = vpack.c.b16 %v2043, %v2039
          %v2084 = vpack.c.b16 %v2044, %v2040
          %v2085 = vpack.c.b16 %v2045, %v2041
          %v2086 = vpack.c.b16 %v2050, %v2046
          %v2087 = vpack.c.b16 %v2051, %v2047
          %v2088 = vpack.c.b16 %v2052, %v2048
          %v2089 = vpack.c.b16 %v2053, %v2049
          %v2090 = vpack.c.b16 %v2058, %v2054
          %v2091 = vpack.c.b16 %v2059, %v2055
          %v2092 = vpack.c.b16 %v2060, %v2056
          %v2093 = vpack.c.b16 %v2061, %v2057
          %2126 = vmatprep.subr.bf16.mxu0 %v2063
          %2127 = vmatpush1.bf16.msra.mxu0 %v2062
          %2128 = vmatprep.subr.bf16.mxu0 %v2067
          %2129 = vmatpush1.bf16.msra.mxu0 %v2066
          %2130 = vmatprep.subr.bf16.mxu0 %v2071
          %2131 = vmatpush1.bf16.msra.mxu0 %v2070
          %2132 = vmatprep.subr.bf16.mxu0 %v2075
          %2133 = vmatpush1.bf16.msra.mxu0 %v2074
          %2134 = vmatprep.subr.bf16.mxu0 %v2079
          %2135 = vmatpush1.bf16.msra.mxu0 %v2078
          %2136 = vmatprep.subr.bf16.mxu0 %v2083
          %2137 = vmatpush1.bf16.msra.mxu0 %v2082
          %2138 = vmatprep.subr.bf16.mxu0 %v2087
          %2139 = vmatpush1.bf16.msra.mxu0 %v2086
          %2140 = vmatprep.subr.bf16.mxu0 %v2091
          %2141 = vmatpush1.bf16.msra.mxu0 %v2090
          %2142 = vmatprep.subr.bf16.mxu0 0
          %2143 = vmatpush1.bf16.msra.mxu0 0
          %2144 = vmatprep.subr.bf16.mxu0 0
          %2145 = vmatpush1.bf16.msra.mxu0 0
          %2146 = vmatprep.subr.bf16.mxu0 0
          %2147 = vmatpush1.bf16.msra.mxu0 0
          %2148 = vmatprep.subr.bf16.mxu0 0
          %2149 = vmatpush1.bf16.msra.mxu0 0
          %2150 = vmatprep.subr.bf16.mxu0 0
          %2151 = vmatpush1.bf16.msra.mxu0 0
          %2152 = vmatprep.subr.bf16.mxu0 0
          %2153 = vmatpush1.bf16.msra.mxu0 0
          %2154 = vmatprep.subr.bf16.mxu0 0
          %2155 = vmatpush1.bf16.msra.mxu0 0
          %2156 = vmatprep.subr.bf16.mxu0 0
          %2157 = vmatpush1.bf16.msra.mxu0 0
          %2158 = vmatprep.mubr.bf16.mxu0 0
          %2159 = vmatmul.mubr.bf16.gmra.mrb[0].mxu0 %v1933
          %v2160 = vpop.f32.mrb[0].mxu0
          %v2161 = vadd.f32 0.0, %v2160
          %v2162 = vpop.f32.mrb[0].mxu0
          %v2163 = vadd.f32 0.0, %v2162
          %v2164 = vpop.f32.mrb[0].mxu0
          %v2165 = vadd.f32 0.0, %v2164
          %v2166 = vpop.f32.mrb[0].mxu0
          %v2167 = vadd.f32 0.0, %v2166
          %2168 = vdwg.mxu0
          %2169 = vmatprep.subr.bf16.mxu0 %v2065
          %2170 = vmatpush1.bf16.msra.mxu0 %v2064
          %2171 = vmatprep.subr.bf16.mxu0 %v2069
          %2172 = vmatpush1.bf16.msra.mxu0 %v2068
          %2173 = vmatprep.subr.bf16.mxu0 %v2073
          %2174 = vmatpush1.bf16.msra.mxu0 %v2072
          %2175 = vmatprep.subr.bf16.mxu0 %v2077
          %2176 = vmatpush1.bf16.msra.mxu0 %v2076
          %2177 = vmatprep.subr.bf16.mxu0 %v2081
          %2178 = vmatpush1.bf16.msra.mxu0 %v2080
          %2179 = vmatprep.subr.bf16.mxu0 %v2085
          %2180 = vmatpush1.bf16.msra.mxu0 %v2084
          %2181 = vmatprep.subr.bf16.mxu0 %v2089
          %2182 = vmatpush1.bf16.msra.mxu0 %v2088
          %2183 = vmatprep.subr.bf16.mxu0 %v2093
          %2184 = vmatpush1.bf16.msra.mxu0 %v2092
          %2185 = vmatprep.subr.bf16.mxu0 0
          %2186 = vmatpush1.bf16.msra.mxu0 0
          %2187 = vmatprep.subr.bf16.mxu0 0
          %2188 = vmatpush1.bf16.msra.mxu0 0
          %2189 = vmatprep.subr.bf16.mxu0 0
          %2190 = vmatpush1.bf16.msra.mxu0 0
          %2191 = vmatprep.subr.bf16.mxu0 0
          %2192 = vmatpush1.bf16.msra.mxu0 0
          %2193 = vmatprep.subr.bf16.mxu0 0
          %2194 = vmatpush1.bf16.msra.mxu0 0
          %2195 = vmatprep.subr.bf16.mxu0 0
          %2196 = vmatpush1.bf16.msra.mxu0 0
          %2197 = vmatprep.subr.bf16.mxu0 0
          %2198 = vmatpush1.bf16.msra.mxu0 0
          %2199 = vmatprep.subr.bf16.mxu0 0
          %2200 = vmatpush1.bf16.msra.mxu0 0
          %2201 = vmatprep.mubr.bf16.mxu0 0
          %2202 = vmatmul.mubr.bf16.gmra.mrb[0].mxu0 %v1933
          %v2203 = vpop.f32.mrb[0].mxu0
          %v2204 = vadd.f32 0.0, %v2203
          %v2205 = vpop.f32.mrb[0].mxu0
          %v2206 = vadd.f32 0.0, %v2205
          %v2207 = vpop.f32.mrb[0].mxu0
          %v2208 = vadd.f32 0.0, %v2207
          %v2209 = vpop.f32.mrb[0].mxu0
          %v2210 = vadd.f32 0.0, %v2209
          %2211 = vdwg.mxu0
          %v2212 = vadd.f32 %v1925, %v2161
          %v2213 = vadd.f32 %v1926, %v2163
          %v2214 = vadd.f32 %v1927, %v2204
          %v2215 = vadd.f32 %v1928, %v2206
          %v2216 = vadd.f32 %v1929, %v2165
          %v2217 = vadd.f32 %v1930, %v2167
          %v2218 = vadd.f32 %v1931, %v2208
          %v2219 = vadd.f32 %v1932, %v2210
          %s2220 = smul.addr %s1922, 8
          %s2221 = scalar_lea.vmem [#allocation7], %s2220
          %v2222 = vld [vmem:[%s2221] sm:$0xff]
          %v2223 = vld [vmem:[%s2221 + $0x8] sm:$0xff]
          %v2224 = vld [vmem:[%s2221 + $0x10] sm:$0xff]
          %v2225 = vld [vmem:[%s2221 + $0x18] sm:$0xff]
          %v2226 = vld [vmem:[%s2221 + $0x20] sm:$0xff]
          %v2227 = vld [vmem:[%s2221 + $0x28] sm:$0xff]
          %v2228 = vld [vmem:[%s2221 + $0x30] sm:$0xff]
          %v2229 = vld [vmem:[%s2221 + $0x38] sm:$0xff]
          %v2230 = vld [vmem:[#allocation4] sm:$0xff]
          %v2231 = vld [vmem:[#allocation19] sm:$0xff]
          %v2232 = vld [vmem:[#allocation19 + $0x8] sm:$0xff]
          %v2233 = vld [vmem:[#allocation19 + $0x10] sm:$0xff]
          %v2234 = vld [vmem:[#allocation19 + $0x18] sm:$0xff]
          %v2235 = vld [vmem:[#allocation19 + $0x20] sm:$0xff]
          %v2236 = vld [vmem:[#allocation19 + $0x28] sm:$0xff]
          %v2237 = vld [vmem:[#allocation19 + $0x30] sm:$0xff]
          %v2238 = vld [vmem:[#allocation19 + $0x38] sm:$0xff]
          %v2239 = vld [vmem:[#allocation19 + $0x40] sm:$0xff]
          %v2240 = vld [vmem:[#allocation19 + $0x48] sm:$0xff]
          %v2241 = vld [vmem:[#allocation19 + $0x50] sm:$0xff]
          %v2242 = vld [vmem:[#allocation19 + $0x58] sm:$0xff]
          %v2243 = vld [vmem:[#allocation19 + $0x60] sm:$0xff]
          %v2244 = vld [vmem:[#allocation19 + $0x68] sm:$0xff]
          %v2245 = vld [vmem:[#allocation19 + $0x70] sm:$0xff]
          %v2246 = vld [vmem:[#allocation19 + $0x78] sm:$0xff]
          %v2247 = vld [vmem:[#allocation19 + $0x80] sm:$0xff]
          %v2248 = vld [vmem:[#allocation19 + $0x88] sm:$0xff]
          %v2249 = vld [vmem:[#allocation19 + $0x90] sm:$0xff]
          %v2250 = vld [vmem:[#allocation19 + $0x98] sm:$0xff]
          %v2251 = vld [vmem:[#allocation19 + $0xa0] sm:$0xff]
          %v2252 = vld [vmem:[#allocation19 + $0xa8] sm:$0xff]
          %v2253 = vld [vmem:[#allocation19 + $0xb0] sm:$0xff]
          %v2254 = vld [vmem:[#allocation19 + $0xb8] sm:$0xff]
          %v2255 = vld [vmem:[#allocation19 + $0xc0] sm:$0xff]
          %v2256 = vld [vmem:[#allocation19 + $0xc8] sm:$0xff]
          %v2257 = vld [vmem:[#allocation19 + $0xd0] sm:$0xff]
          %v2258 = vld [vmem:[#allocation19 + $0xd8] sm:$0xff]
          %v2259 = vld [vmem:[#allocation19 + $0xe0] sm:$0xff]
          %v2260 = vld [vmem:[#allocation19 + $0xe8] sm:$0xff]
          %v2261 = vld [vmem:[#allocation19 + $0xf0] sm:$0xff]
          %v2262 = vld [vmem:[#allocation19 + $0xf8] sm:$0xff]
          %v2295 = vunpack.c.l.b16 %v2231
          %v2296 = vunpack.c.h.b16 %v2231
          %v2297 = vunpack.c.l.b16 %v2232
          %v2298 = vunpack.c.h.b16 %v2232
          %v2299 = vunpack.c.l.b16 %v2233
          %v2300 = vunpack.c.h.b16 %v2233
          %v2301 = vunpack.c.l.b16 %v2234
          %v2302 = vunpack.c.h.b16 %v2234
          %v2303 = vunpack.c.l.b16 %v2235
          %v2304 = vunpack.c.h.b16 %v2235
          %v2305 = vunpack.c.l.b16 %v2236
          %v2306 = vunpack.c.h.b16 %v2236
          %v2307 = vunpack.c.l.b16 %v2237
          %v2308 = vunpack.c.h.b16 %v2237
          %v2309 = vunpack.c.l.b16 %v2238
          %v2310 = vunpack.c.h.b16 %v2238
          %v2311 = vunpack.c.l.b16 %v2239
          %v2312 = vunpack.c.h.b16 %v2239
          %v2313 = vunpack.c.l.b16 %v2240
          %v2314 = vunpack.c.h.b16 %v2240
          %v2315 = vunpack.c.l.b16 %v2241
          %v2316 = vunpack.c.h.b16 %v2241
          %v2317 = vunpack.c.l.b16 %v2242
          %v2318 = vunpack.c.h.b16 %v2242
          %v2319 = vunpack.c.l.b16 %v2243
          %v2320 = vunpack.c.h.b16 %v2243
          %v2321 = vunpack.c.l.b16 %v2244
          %v2322 = vunpack.c.h.b16 %v2244
          %v2323 = vunpack.c.l.b16 %v2245
          %v2324 = vunpack.c.h.b16 %v2245
          %v2325 = vunpack.c.l.b16 %v2246
          %v2326 = vunpack.c.h.b16 %v2246
          %v2327 = vunpack.c.l.b16 %v2247
          %v2328 = vunpack.c.h.b16 %v2247
          %v2329 = vunpack.c.l.b16 %v2248
          %v2330 = vunpack.c.h.b16 %v2248
          %v2331 = vunpack.c.l.b16 %v2249
          %v2332 = vunpack.c.h.b16 %v2249
          %v2333 = vunpack.c.l.b16 %v2250
          %v2334 = vunpack.c.h.b16 %v2250
          %v2335 = vunpack.c.l.b16 %v2251
          %v2336 = vunpack.c.h.b16 %v2251
          %v2337 = vunpack.c.l.b16 %v2252
          %v2338 = vunpack.c.h.b16 %v2252
          %v2339 = vunpack.c.l.b16 %v2253
          %v2340 = vunpack.c.h.b16 %v2253
          %v2341 = vunpack.c.l.b16 %v2254
          %v2342 = vunpack.c.h.b16 %v2254
          %v2343 = vunpack.c.l.b16 %v2255
          %v2344 = vunpack.c.h.b16 %v2255
          %v2345 = vunpack.c.l.b16 %v2256
          %v2346 = vunpack.c.h.b16 %v2256
          %v2347 = vunpack.c.l.b16 %v2257
          %v2348 = vunpack.c.h.b16 %v2257
          %v2349 = vunpack.c.l.b16 %v2258
          %v2350 = vunpack.c.h.b16 %v2258
          %v2351 = vunpack.c.l.b16 %v2259
          %v2352 = vunpack.c.h.b16 %v2259
          %v2353 = vunpack.c.l.b16 %v2260
          %v2354 = vunpack.c.h.b16 %v2260
          %v2355 = vunpack.c.l.b16 %v2261
          %v2356 = vunpack.c.h.b16 %v2261
          %v2357 = vunpack.c.l.b16 %v2262
          %v2358 = vunpack.c.h.b16 %v2262
          %v2359 = vpack.c.b16 %v2299, %v2295
          %v2360 = vpack.c.b16 %v2300, %v2296
          %v2361 = vpack.c.b16 %v2301, %v2297
          %v2362 = vpack.c.b16 %v2302, %v2298
          %v2363 = vpack.c.b16 %v2307, %v2303
          %v2364 = vpack.c.b16 %v2308, %v2304
          %v2365 = vpack.c.b16 %v2309, %v2305
          %v2366 = vpack.c.b16 %v2310, %v2306
          %v2367 = vpack.c.b16 %v2315, %v2311
          %v2368 = vpack.c.b16 %v2316, %v2312
          %v2369 = vpack.c.b16 %v2317, %v2313
          %v2370 = vpack.c.b16 %v2318, %v2314
          %v2371 = vpack.c.b16 %v2323, %v2319
          %v2372 = vpack.c.b16 %v2324, %v2320
          %v2373 = vpack.c.b16 %v2325, %v2321
          %v2374 = vpack.c.b16 %v2326, %v2322
          %v2375 = vpack.c.b16 %v2331, %v2327
          %v2376 = vpack.c.b16 %v2332, %v2328
          %v2377 = vpack.c.b16 %v2333, %v2329
          %v2378 = vpack.c.b16 %v2334, %v2330
          %v2379 = vpack.c.b16 %v2339, %v2335
          %v2380 = vpack.c.b16 %v2340, %v2336
          %v2381 = vpack.c.b16 %v2341, %v2337
          %v2382 = vpack.c.b16 %v2342, %v2338
          %v2383 = vpack.c.b16 %v2347, %v2343
          %v2384 = vpack.c.b16 %v2348, %v2344
          %v2385 = vpack.c.b16 %v2349, %v2345
          %v2386 = vpack.c.b16 %v2350, %v2346
          %v2387 = vpack.c.b16 %v2355, %v2351
          %v2388 = vpack.c.b16 %v2356, %v2352
          %v2389 = vpack.c.b16 %v2357, %v2353
          %v2390 = vpack.c.b16 %v2358, %v2354
          %2423 = vmatprep.subr.bf16.mxu0 %v2360
          %2424 = vmatpush1.bf16.msra.mxu0 %v2359
          %2425 = vmatprep.subr.bf16.mxu0 %v2364
          %2426 = vmatpush1.bf16.msra.mxu0 %v2363
          %2427 = vmatprep.subr.bf16.mxu0 %v2368
          %2428 = vmatpush1.bf16.msra.mxu0 %v2367
          %2429 = vmatprep.subr.bf16.mxu0 %v2372
          %2430 = vmatpush1.bf16.msra.mxu0 %v2371
          %2431 = vmatprep.subr.bf16.mxu0 %v2376
          %2432 = vmatpush1.bf16.msra.mxu0 %v2375
          %2433 = vmatprep.subr.bf16.mxu0 %v2380
          %2434 = vmatpush1.bf16.msra.mxu0 %v2379
          %2435 = vmatprep.subr.bf16.mxu0 %v2384
          %2436 = vmatpush1.bf16.msra.mxu0 %v2383
          %2437 = vmatprep.subr.bf16.mxu0 %v2388
          %2438 = vmatpush1.bf16.msra.mxu0 %v2387
          %2439 = vmatprep.subr.bf16.mxu0 0
          %2440 = vmatpush1.bf16.msra.mxu0 0
          %2441 = vmatprep.subr.bf16.mxu0 0
          %2442 = vmatpush1.bf16.msra.mxu0 0
          %2443 = vmatprep.subr.bf16.mxu0 0
          %2444 = vmatpush1.bf16.msra.mxu0 0
          %2445 = vmatprep.subr.bf16.mxu0 0
          %2446 = vmatpush1.bf16.msra.mxu0 0
          %2447 = vmatprep.subr.bf16.mxu0 0
          %2448 = vmatpush1.bf16.msra.mxu0 0
          %2449 = vmatprep.subr.bf16.mxu0 0
          %2450 = vmatpush1.bf16.msra.mxu0 0
          %2451 = vmatprep.subr.bf16.mxu0 0
          %2452 = vmatpush1.bf16.msra.mxu0 0
          %2453 = vmatprep.subr.bf16.mxu0 0
          %2454 = vmatpush1.bf16.msra.mxu0 0
          %2455 = vmatprep.mubr.bf16.mxu0 0
          %2456 = vmatmul.mubr.bf16.gmra.mrb[0].mxu0 %v2230
          %v2457 = vpop.f32.mrb[0].mxu0
          %v2458 = vadd.f32 0.0, %v2457
          %v2459 = vpop.f32.mrb[0].mxu0
          %v2460 = vadd.f32 0.0, %v2459
          %v2461 = vpop.f32.mrb[0].mxu0
          %v2462 = vadd.f32 0.0, %v2461
          %v2463 = vpop.f32.mrb[0].mxu0
          %v2464 = vadd.f32 0.0, %v2463
          %2465 = vdwg.mxu0
          %2466 = vmatprep.subr.bf16.mxu0 %v2362
          %2467 = vmatpush1.bf16.msra.mxu0 %v2361
          %2468 = vmatprep.subr.bf16.mxu0 %v2366
          %2469 = vmatpush1.bf16.msra.mxu0 %v2365
          %2470 = vmatprep.subr.bf16.mxu0 %v2370
          %2471 = vmatpush1.bf16.msra.mxu0 %v2369
          %2472 = vmatprep.subr.bf16.mxu0 %v2374
          %2473 = vmatpush1.bf16.msra.mxu0 %v2373
          %2474 = vmatprep.subr.bf16.mxu0 %v2378
          %2475 = vmatpush1.bf16.msra.mxu0 %v2377
          %2476 = vmatprep.subr.bf16.mxu0 %v2382
          %2477 = vmatpush1.bf16.msra.mxu0 %v2381
          %2478 = vmatprep.subr.bf16.mxu0 %v2386
          %2479 = vmatpush1.bf16.msra.mxu0 %v2385
          %2480 = vmatprep.subr.bf16.mxu0 %v2390
          %2481 = vmatpush1.bf16.msra.mxu0 %v2389
          %2482 = vmatprep.subr.bf16.mxu0 0
          %2483 = vmatpush1.bf16.msra.mxu0 0
          %2484 = vmatprep.subr.bf16.mxu0 0
          %2485 = vmatpush1.bf16.msra.mxu0 0
          %2486 = vmatprep.subr.bf16.mxu0 0
          %2487 = vmatpush1.bf16.msra.mxu0 0
          %2488 = vmatprep.subr.bf16.mxu0 0
          %2489 = vmatpush1.bf16.msra.mxu0 0
          %2490 = vmatprep.subr.bf16.mxu0 0
          %2491 = vmatpush1.bf16.msra.mxu0 0
          %2492 = vmatprep.subr.bf16.mxu0 0
          %2493 = vmatpush1.bf16.msra.mxu0 0
          %2494 = vmatprep.subr.bf16.mxu0 0
          %2495 = vmatpush1.bf16.msra.mxu0 0
          %2496 = vmatprep.subr.bf16.mxu0 0
          %2497 = vmatpush1.bf16.msra.mxu0 0
          %2498 = vmatprep.mubr.bf16.mxu0 0
          %2499 = vmatmul.mubr.bf16.gmra.mrb[0].mxu0 %v2230
          %v2500 = vpop.f32.mrb[0].mxu0
          %v2501 = vadd.f32 0.0, %v2500
          %v2502 = vpop.f32.mrb[0].mxu0
          %v2503 = vadd.f32 0.0, %v2502
          %v2504 = vpop.f32.mrb[0].mxu0
          %v2505 = vadd.f32 0.0, %v2504
          %v2506 = vpop.f32.mrb[0].mxu0
          %v2507 = vadd.f32 0.0, %v2506
          %2508 = vdwg.mxu0
          %v2509 = vadd.f32 %v2222, %v2458
          %v2510 = vadd.f32 %v2223, %v2460
          %v2511 = vadd.f32 %v2224, %v2501
          %v2512 = vadd.f32 %v2225, %v2503
          %v2513 = vadd.f32 %v2226, %v2462
          %v2514 = vadd.f32 %v2227, %v2464
          %v2515 = vadd.f32 %v2228, %v2505
          %v2516 = vadd.f32 %v2229, %v2507
          %v2517 = vld [vmem:[#allocation3] sm:$0xff]
          %v2518 = vld [vmem:[#allocation3 + $0x8] sm:$0xff]
          %v2519 = vxor.u32 %v2212, 2147483648
          %v2520 = vxor.u32 %v2216, 2147483648
          %v2521 = vmul.f32 %v2519, 1.442695
          %v2522 = vpow.pop %v2521
          %v2523 = vmul.f32 %v2520, 1.442695
          %v2524 = vpow.pop %v2523
          %v2525 = vadd.f32 %v2522, 1.0
          %v2526 = vadd.f32 %v2524, 1.0
          %v2527 = vrcp.pop %v2525
          %v2528 = vmul.f32 1.0, %v2527
          %v2529 = vrcp.pop %v2526
          %v2530 = vmul.f32 1.0, %v2529
          %v2531 = vxor.u32 %v2213, 2147483648
          %v2532 = vxor.u32 %v2217, 2147483648
          %v2533 = vmul.f32 %v2531, 1.442695
          %v2534 = vpow.pop %v2533
          %v2535 = vmul.f32 %v2532, 1.442695
          %v2536 = vpow.pop %v2535
          %v2537 = vadd.f32 %v2534, 1.0
          %v2538 = vadd.f32 %v2536, 1.0
          %v2539 = vrcp.pop %v2537
          %v2540 = vmul.f32 1.0, %v2539
          %v2541 = vrcp.pop %v2538
          %v2542 = vmul.f32 1.0, %v2541
          %v2543 = vtanh.pop %v2214
          %v2544 = vtanh.pop %v2218
          %v2545 = vxor.u32 %v2215, 2147483648
          %v2546 = vxor.u32 %v2219, 2147483648
          %v2547 = vmul.f32 %v2545, 1.442695
          %v2548 = vpow.pop %v2547
          %v2549 = vmul.f32 %v2546, 1.442695
          %v2550 = vpow.pop %v2549
          %v2551 = vadd.f32 %v2548, 1.0
          %v2552 = vadd.f32 %v2550, 1.0
          %v2553 = vrcp.pop %v2551
          %v2554 = vmul.f32 1.0, %v2553
          %v2555 = vrcp.pop %v2552
          %v2556 = vmul.f32 1.0, %v2555
          %v2557 = vmul.f32 %v2540, %v2517
          %v2558 = vmul.f32 %v2542, %v2518
          %v2559 = vmul.f32 %v2528, %v2543
          %v2560 = vmul.f32 %v2530, %v2544
          %v2561 = vadd.f32 %v2557, %v2559
          %v2562 = vadd.f32 %v2558, %v2560
          %v2563 = vtanh.pop %v2561
          %v2564 = vtanh.pop %v2562
          %v2565 = vmul.f32 %v2554, %v2563
          %v2566 = vmul.f32 %v2556, %v2564
          %v2567 = vld [vmem:[#allocation5] sm:$0xff]
          %v2568 = vld [vmem:[#allocation5 + $0x8] sm:$0xff]
          %v2569 = vxor.u32 %v2509, 2147483648
          %v2570 = vxor.u32 %v2513, 2147483648
          %v2571 = vmul.f32 %v2569, 1.442695
          %v2572 = vpow.pop %v2571
          %v2573 = vmul.f32 %v2570, 1.442695
          %v2574 = vpow.pop %v2573
          %v2575 = vadd.f32 %v2572, 1.0
          %v2576 = vadd.f32 %v2574, 1.0
          %v2577 = vrcp.pop %v2575
          %v2578 = vmul.f32 1.0, %v2577
          %v2579 = vrcp.pop %v2576
          %v2580 = vmul.f32 1.0, %v2579
          %v2581 = vxor.u32 %v2510, 2147483648
          %v2582 = vxor.u32 %v2514, 2147483648
          %v2583 = vmul.f32 %v2581, 1.442695
          %v2584 = vpow.pop %v2583
          %v2585 = vmul.f32 %v2582, 1.442695
          %v2586 = vpow.pop %v2585
          %v2587 = vadd.f32 %v2584, 1.0
          %v2588 = vadd.f32 %v2586, 1.0
          %v2589 = vrcp.pop %v2587
          %v2590 = vmul.f32 1.0, %v2589
          %v2591 = vrcp.pop %v2588
          %v2592 = vmul.f32 1.0, %v2591
          %v2593 = vtanh.pop %v2511
          %v2594 = vtanh.pop %v2515
          %v2595 = vxor.u32 %v2512, 2147483648
          %v2596 = vxor.u32 %v2516, 2147483648
          %v2597 = vmul.f32 %v2595, 1.442695
          %v2598 = vpow.pop %v2597
          %v2599 = vmul.f32 %v2596, 1.442695
          %v2600 = vpow.pop %v2599
          %v2601 = vadd.f32 %v2598, 1.0
          %v2602 = vadd.f32 %v2600, 1.0
          %v2603 = vrcp.pop %v2601
          %v2604 = vmul.f32 1.0, %v2603
          %v2605 = vrcp.pop %v2602
          %v2606 = vmul.f32 1.0, %v2605
          %v2607 = vmul.f32 %v2590, %v2567
          %v2608 = vmul.f32 %v2592, %v2568
          %v2609 = vmul.f32 %v2578, %v2593
          %v2610 = vmul.f32 %v2580, %v2594
          %v2611 = vadd.f32 %v2607, %v2609
          %v2612 = vadd.f32 %v2608, %v2610
          %v2613 = vtanh.pop %v2611
          %v2614 = vtanh.pop %v2612
          %v2615 = vmul.f32 %v2604, %v2613
          %v2616 = vmul.f32 %v2606, %v2614
          %v2617 = vstv %s1920
          %vm2618 = vcmp.gt.s32.totalorder %v584, %v2617
          %vm2619 = vcmp.gt.s32.totalorder %v585, %v2617
          %v2620 = vstv %s1921
          %vm2621 = vcmp.gt.s32.totalorder %v584, %v2620
          %vm2622 = vcmp.gt.s32.totalorder %v585, %v2620
          %v2623 = vpack.c.bf16 %v2566, %v2565
          %v2624 = vsel %vm2618, 1, 0
          %v2625 = vsel %vm2619, 1, 0
          %2626 = vset.pattern.permute.xlu0 0
          %2627 = vperm.xlu0 %2626, %v2624
          %v2628 = vpop.permute.xlu0 %2627
          %2629 = vset.pattern.permute.xlu0 0
          %2630 = vperm.xlu0 %2629, %v2625
          %v2631 = vpop.permute.xlu0 %2630
          %vm2632 = vcmp.eq.s32.totalorder %v2628, 1
          %vm2633 = vcmp.eq.s32.totalorder %v2631, 1
          %vm2634 = vmpackc.low %vm2632, %vm2632
          %vm2635 = vmpackc.low %vm2633, %vm2633
          %v2636 = vsel %vm2634, 65537, 0
          %v2637 = vsel %vm2635, 65537, 0
          %v2638 = vunpack.c.l.b16 %v2636
          %v2639 = vunpack.c.l.b16 %v2637
          %v2640 = vpack.c.b16 %v2639, %v2638
          %vm2641 = vcmp.ne.s16.totalorder %v2640, 0
          %v2642 = vsel %vm2641, %v2623, %v1933
          %2643 = vst [vmem:[#allocation2] sm:$0xff] %v2642
          %v2644 = vld [vmem:[#allocation3] sm:$0xff]
          %v2645 = vld [vmem:[#allocation3 + $0x8] sm:$0xff]
          %v2646 = vsel %vm2632, %v2561, %v2644
          %v2647 = vsel %vm2633, %v2562, %v2645
          %2648 = vst [vmem:[#allocation3] sm:$0xff] %v2646
          %2649 = vst [vmem:[#allocation3 + $0x8] sm:$0xff] %v2647
          %v2650 = vpack.c.bf16 %v2616, %v2615
          %v2651 = vld [vmem:[#allocation4] sm:$0xff]
          %v2652 = vsel %vm2621, 1, 0
          %v2653 = vsel %vm2622, 1, 0
          %2654 = vset.pattern.permute.xlu0 0
          %2655 = vperm.xlu0 %2654, %v2652
          %v2656 = vpop.permute.xlu0 %2655
          %2657 = vset.pattern.permute.xlu0 0
          %2658 = vperm.xlu0 %2657, %v2653
          %v2659 = vpop.permute.xlu0 %2658
          %vm2660 = vcmp.eq.s32.totalorder %v2656, 1
          %vm2661 = vcmp.eq.s32.totalorder %v2659, 1
          %vm2662 = vmpackc.low %vm2660, %vm2660
          %vm2663 = vmpackc.low %vm2661, %vm2661
          %v2664 = vsel %vm2662, 65537, 0
          %v2665 = vsel %vm2663, 65537, 0
          %v2666 = vunpack.c.l.b16 %v2664
          %v2667 = vunpack.c.l.b16 %v2665
          %v2668 = vpack.c.b16 %v2667, %v2666
          %vm2669 = vcmp.ne.s16.totalorder %v2668, 0
          %v2670 = vsel %vm2669, %v2650, %v2651
          %2671 = vst [vmem:[#allocation4] sm:$0xff] %v2670
          %v2672 = vld [vmem:[#allocation5] sm:$0xff]
          %v2673 = vld [vmem:[#allocation5 + $0x8] sm:$0xff]
          %v2674 = vsel %vm2660, %v2611, %v2672
          %v2675 = vsel %vm2661, %v2612, %v2673
          %2676 = vst [vmem:[#allocation5] sm:$0xff] %v2674
          %2677 = vst [vmem:[#allocation5 + $0x8] sm:$0xff] %v2675
          %s2678 = sadd.s32 %s575, 2
          %s2679 = ssub.s32 5, %s575
          %s2680 = smul.u32 4, 4
          %s2681 = smul.addr %s2680, 8
          %s2682 = scalar_lea.vmem [#allocation6], %s2681
          %v2683 = vld [vmem:[%s2682] sm:$0xff]
          %v2684 = vld [vmem:[%s2682 + $0x8] sm:$0xff]
          %v2685 = vld [vmem:[%s2682 + $0x10] sm:$0xff]
          %v2686 = vld [vmem:[%s2682 + $0x18] sm:$0xff]
          %v2687 = vld [vmem:[%s2682 + $0x20] sm:$0xff]
          %v2688 = vld [vmem:[%s2682 + $0x28] sm:$0xff]
          %v2689 = vld [vmem:[%s2682 + $0x30] sm:$0xff]
          %v2690 = vld [vmem:[%s2682 + $0x38] sm:$0xff]
          %v2691 = vld [vmem:[#allocation2] sm:$0xff]
          %v2692 = vld [vmem:[#allocation18] sm:$0xff]
          %v2693 = vld [vmem:[#allocation18 + $0x8] sm:$0xff]
          %v2694 = vld [vmem:[#allocation18 + $0x10] sm:$0xff]
          %v2695 = vld [vmem:[#allocation18 + $0x18] sm:$0xff]
          %v2696 = vld [vmem:[#allocation18 + $0x20] sm:$0xff]
          %v2697 = vld [vmem:[#allocation18 + $0x28] sm:$0xff]
          %v2698 = vld [vmem:[#allocation18 + $0x30] sm:$0xff]
          %v2699 = vld [vmem:[#allocation18 + $0x38] sm:$0xff]
          %v2700 = vld [vmem:[#allocation18 + $0x40] sm:$0xff]
          %v2701 = vld [vmem:[#allocation18 + $0x48] sm:$0xff]
          %v2702 = vld [vmem:[#allocation18 + $0x50] sm:$0xff]
          %v2703 = vld [vmem:[#allocation18 + $0x58] sm:$0xff]
          %v2704 = vld [vmem:[#allocation18 + $0x60] sm:$0xff]
          %v2705 = vld [vmem:[#allocation18 + $0x68] sm:$0xff]
          %v2706 = vld [vmem:[#allocation18 + $0x70] sm:$0xff]
          %v2707 = vld [vmem:[#allocation18 + $0x78] sm:$0xff]
          %v2708 = vld [vmem:[#allocation18 + $0x80] sm:$0xff]
          %v2709 = vld [vmem:[#allocation18 + $0x88] sm:$0xff]
          %v2710 = vld [vmem:[#allocation18 + $0x90] sm:$0xff]
          %v2711 = vld [vmem:[#allocation18 + $0x98] sm:$0xff]
          %v2712 = vld [vmem:[#allocation18 + $0xa0] sm:$0xff]
          %v2713 = vld [vmem:[#allocation18 + $0xa8] sm:$0xff]
          %v2714 = vld [vmem:[#allocation18 + $0xb0] sm:$0xff]
          %v2715 = vld [vmem:[#allocation18 + $0xb8] sm:$0xff]
          %v2716 = vld [vmem:[#allocation18 + $0xc0] sm:$0xff]
          %v2717 = vld [vmem:[#allocation18 + $0xc8] sm:$0xff]
          %v2718 = vld [vmem:[#allocation18 + $0xd0] sm:$0xff]
          %v2719 = vld [vmem:[#allocation18 + $0xd8] sm:$0xff]
          %v2720 = vld [vmem:[#allocation18 + $0xe0] sm:$0xff]
          %v2721 = vld [vmem:[#allocation18 + $0xe8] sm:$0xff]
          %v2722 = vld [vmem:[#allocation18 + $0xf0] sm:$0xff]
          %v2723 = vld [vmem:[#allocation18 + $0xf8] sm:$0xff]
          %v2756 = vunpack.c.l.b16 %v2692
          %v2757 = vunpack.c.h.b16 %v2692
          %v2758 = vunpack.c.l.b16 %v2693
          %v2759 = vunpack.c.h.b16 %v2693
          %v2760 = vunpack.c.l.b16 %v2694
          %v2761 = vunpack.c.h.b16 %v2694
          %v2762 = vunpack.c.l.b16 %v2695
          %v2763 = vunpack.c.h.b16 %v2695
          %v2764 = vunpack.c.l.b16 %v2696
          %v2765 = vunpack.c.h.b16 %v2696
          %v2766 = vunpack.c.l.b16 %v2697
          %v2767 = vunpack.c.h.b16 %v2697
          %v2768 = vunpack.c.l.b16 %v2698
          %v2769 = vunpack.c.h.b16 %v2698
          %v2770 = vunpack.c.l.b16 %v2699
          %v2771 = vunpack.c.h.b16 %v2699
          %v2772 = vunpack.c.l.b16 %v2700
          %v2773 = vunpack.c.h.b16 %v2700
          %v2774 = vunpack.c.l.b16 %v2701
          %v2775 = vunpack.c.h.b16 %v2701
          %v2776 = vunpack.c.l.b16 %v2702
          %v2777 = vunpack.c.h.b16 %v2702
          %v2778 = vunpack.c.l.b16 %v2703
          %v2779 = vunpack.c.h.b16 %v2703
          %v2780 = vunpack.c.l.b16 %v2704
          %v2781 = vunpack.c.h.b16 %v2704
          %v2782 = vunpack.c.l.b16 %v2705
          %v2783 = vunpack.c.h.b16 %v2705
          %v2784 = vunpack.c.l.b16 %v2706
          %v2785 = vunpack.c.h.b16 %v2706
          %v2786 = vunpack.c.l.b16 %v2707
          %v2787 = vunpack.c.h.b16 %v2707
          %v2788 = vunpack.c.l.b16 %v2708
          %v2789 = vunpack.c.h.b16 %v2708
          %v2790 = vunpack.c.l.b16 %v2709
          %v2791 = vunpack.c.h.b16 %v2709
          %v2792 = vunpack.c.l.b16 %v2710
          %v2793 = vunpack.c.h.b16 %v2710
          %v2794 = vunpack.c.l.b16 %v2711
          %v2795 = vunpack.c.h.b16 %v2711
          %v2796 = vunpack.c.l.b16 %v2712
          %v2797 = vunpack.c.h.b16 %v2712
          %v2798 = vunpack.c.l.b16 %v2713
          %v2799 = vunpack.c.h.b16 %v2713
          %v2800 = vunpack.c.l.b16 %v2714
          %v2801 = vunpack.c.h.b16 %v2714
          %v2802 = vunpack.c.l.b16 %v2715
          %v2803 = vunpack.c.h.b16 %v2715
          %v2804 = vunpack.c.l.b16 %v2716
          %v2805 = vunpack.c.h.b16 %v2716
          %v2806 = vunpack.c.l.b16 %v2717
          %v2807 = vunpack.c.h.b16 %v2717
          %v2808 = vunpack.c.l.b16 %v2718
          %v2809 = vunpack.c.h.b16 %v2718
          %v2810 = vunpack.c.l.b16 %v2719
          %v2811 = vunpack.c.h.b16 %v2719
          %v2812 = vunpack.c.l.b16 %v2720
          %v2813 = vunpack.c.h.b16 %v2720
          %v2814 = vunpack.c.l.b16 %v2721
          %v2815 = vunpack.c.h.b16 %v2721
          %v2816 = vunpack.c.l.b16 %v2722
          %v2817 = vunpack.c.h.b16 %v2722
          %v2818 = vunpack.c.l.b16 %v2723
          %v2819 = vunpack.c.h.b16 %v2723
          %v2820 = vpack.c.b16 %v2760, %v2756
          %v2821 = vpack.c.b16 %v2761, %v2757
          %v2822 = vpack.c.b16 %v2762, %v2758
          %v2823 = vpack.c.b16 %v2763, %v2759
          %v2824 = vpack.c.b16 %v2768, %v2764
          %v2825 = vpack.c.b16 %v2769, %v2765
          %v2826 = vpack.c.b16 %v2770, %v2766
          %v2827 = vpack.c.b16 %v2771, %v2767
          %v2828 = vpack.c.b16 %v2776, %v2772
          %v2829 = vpack.c.b16 %v2777, %v2773
          %v2830 = vpack.c.b16 %v2778, %v2774
          %v2831 = vpack.c.b16 %v2779, %v2775
          %v2832 = vpack.c.b16 %v2784, %v2780
          %v2833 = vpack.c.b16 %v2785, %v2781
          %v2834 = vpack.c.b16 %v2786, %v2782
          %v2835 = vpack.c.b16 %v2787, %v2783
          %v2836 = vpack.c.b16 %v2792, %v2788
          %v2837 = vpack.c.b16 %v2793, %v2789
          %v2838 = vpack.c.b16 %v2794, %v2790
          %v2839 = vpack.c.b16 %v2795, %v2791
          %v2840 = vpack.c.b16 %v2800, %v2796
          %v2841 = vpack.c.b16 %v2801, %v2797
          %v2842 = vpack.c.b16 %v2802, %v2798
          %v2843 = vpack.c.b16 %v2803, %v2799
          %v2844 = vpack.c.b16 %v2808, %v2804
          %v2845 = vpack.c.b16 %v2809, %v2805
          %v2846 = vpack.c.b16 %v2810, %v2806
          %v2847 = vpack.c.b16 %v2811, %v2807
          %v2848 = vpack.c.b16 %v2816, %v2812
          %v2849 = vpack.c.b16 %v2817, %v2813
          %v2850 = vpack.c.b16 %v2818, %v2814
          %v2851 = vpack.c.b16 %v2819, %v2815
          %2884 = vmatprep.subr.bf16.mxu0 %v2821
          %2885 = vmatpush1.bf16.msra.mxu0 %v2820
          %2886 = vmatprep.subr.bf16.mxu0 %v2825
          %2887 = vmatpush1.bf16.msra.mxu0 %v2824
          %2888 = vmatprep.subr.bf16.mxu0 %v2829
          %2889 = vmatpush1.bf16.msra.mxu0 %v2828
          %2890 = vmatprep.subr.bf16.mxu0 %v2833
          %2891 = vmatpush1.bf16.msra.mxu0 %v2832
          %2892 = vmatprep.subr.bf16.mxu0 %v2837
          %2893 = vmatpush1.bf16.msra.mxu0 %v2836
          %2894 = vmatprep.subr.bf16.mxu0 %v2841
          %2895 = vmatpush1.bf16.msra.mxu0 %v2840
          %2896 = vmatprep.subr.bf16.mxu0 %v2845
          %2897 = vmatpush1.bf16.msra.mxu0 %v2844
          %2898 = vmatprep.subr.bf16.mxu0 %v2849
          %2899 = vmatpush1.bf16.msra.mxu0 %v2848
          %2900 = vmatprep.subr.bf16.mxu0 0
          %2901 = vmatpush1.bf16.msra.mxu0 0
          %2902 = vmatprep.subr.bf16.mxu0 0
          %2903 = vmatpush1.bf16.msra.mxu0 0
          %2904 = vmatprep.subr.bf16.mxu0 0
          %2905 = vmatpush1.bf16.msra.mxu0 0
          %2906 = vmatprep.subr.bf16.mxu0 0
          %2907 = vmatpush1.bf16.msra.mxu0 0
          %2908 = vmatprep.subr.bf16.mxu0 0
          %2909 = vmatpush1.bf16.msra.mxu0 0
          %2910 = vmatprep.subr.bf16.mxu0 0
          %2911 = vmatpush1.bf16.msra.mxu0 0
          %2912 = vmatprep.subr.bf16.mxu0 0
          %2913 = vmatpush1.bf16.msra.mxu0 0
          %2914 = vmatprep.subr.bf16.mxu0 0
          %2915 = vmatpush1.bf16.msra.mxu0 0
          %2916 = vmatprep.mubr.bf16.mxu0 0
          %2917 = vmatmul.mubr.bf16.gmra.mrb[0].mxu0 %v2691
          %v2918 = vpop.f32.mrb[0].mxu0
          %v2919 = vadd.f32 0.0, %v2918
          %v2920 = vpop.f32.mrb[0].mxu0
          %v2921 = vadd.f32 0.0, %v2920
          %v2922 = vpop.f32.mrb[0].mxu0
          %v2923 = vadd.f32 0.0, %v2922
          %v2924 = vpop.f32.mrb[0].mxu0
          %v2925 = vadd.f32 0.0, %v2924
          %2926 = vdwg.mxu0
          %2927 = vmatprep.subr.bf16.mxu0 %v2823
          %2928 = vmatpush1.bf16.msra.mxu0 %v2822
          %2929 = vmatprep.subr.bf16.mxu0 %v2827
          %2930 = vmatpush1.bf16.msra.mxu0 %v2826
          %2931 = vmatprep.subr.bf16.mxu0 %v2831
          %2932 = vmatpush1.bf16.msra.mxu0 %v2830
          %2933 = vmatprep.subr.bf16.mxu0 %v2835
          %2934 = vmatpush1.bf16.msra.mxu0 %v2834
          %2935 = vmatprep.subr.bf16.mxu0 %v2839
          %2936 = vmatpush1.bf16.msra.mxu0 %v2838
          %2937 = vmatprep.subr.bf16.mxu0 %v2843
          %2938 = vmatpush1.bf16.msra.mxu0 %v2842
          %2939 = vmatprep.subr.bf16.mxu0 %v2847
          %2940 = vmatpush1.bf16.msra.mxu0 %v2846
          %2941 = vmatprep.subr.bf16.mxu0 %v2851
          %2942 = vmatpush1.bf16.msra.mxu0 %v2850
          %2943 = vmatprep.subr.bf16.mxu0 0
          %2944 = vmatpush1.bf16.msra.mxu0 0
          %2945 = vmatprep.subr.bf16.mxu0 0
          %2946 = vmatpush1.bf16.msra.mxu0 0
          %2947 = vmatprep.subr.bf16.mxu0 0
          %2948 = vmatpush1.bf16.msra.mxu0 0
          %2949 = vmatprep.subr.bf16.mxu0 0
          %2950 = vmatpush1.bf16.msra.mxu0 0
          %2951 = vmatprep.subr.bf16.mxu0 0
          %2952 = vmatpush1.bf16.msra.mxu0 0
          %2953 = vmatprep.subr.bf16.mxu0 0
          %2954 = vmatpush1.bf16.msra.mxu0 0
          %2955 = vmatprep.subr.bf16.mxu0 0
          %2956 = vmatpush1.bf16.msra.mxu0 0
          %2957 = vmatprep.subr.bf16.mxu0 0
          %2958 = vmatpush1.bf16.msra.mxu0 0
          %2959 = vmatprep.mubr.bf16.mxu0 0
          %2960 = vmatmul.mubr.bf16.gmra.mrb[0].mxu0 %v2691
          %v2961 = vpop.f32.mrb[0].mxu0
          %v2962 = vadd.f32 0.0, %v2961
          %v2963 = vpop.f32.mrb[0].mxu0
          %v2964 = vadd.f32 0.0, %v2963
          %v2965 = vpop.f32.mrb[0].mxu0
          %v2966 = vadd.f32 0.0, %v2965
          %v2967 = vpop.f32.mrb[0].mxu0
          %v2968 = vadd.f32 0.0, %v2967
          %2969 = vdwg.mxu0
          %v2970 = vadd.f32 %v2683, %v2919
          %v2971 = vadd.f32 %v2684, %v2921
          %v2972 = vadd.f32 %v2685, %v2962
          %v2973 = vadd.f32 %v2686, %v2964
          %v2974 = vadd.f32 %v2687, %v2923
          %v2975 = vadd.f32 %v2688, %v2925
          %v2976 = vadd.f32 %v2689, %v2966
          %v2977 = vadd.f32 %v2690, %v2968
          %s2978 = smul.addr %s2680, 8
          %s2979 = scalar_lea.vmem [#allocation7], %s2978
          %v2980 = vld [vmem:[%s2979] sm:$0xff]
          %v2981 = vld [vmem:[%s2979 + $0x8] sm:$0xff]
          %v2982 = vld [vmem:[%s2979 + $0x10] sm:$0xff]
          %v2983 = vld [vmem:[%s2979 + $0x18] sm:$0xff]
          %v2984 = vld [vmem:[%s2979 + $0x20] sm:$0xff]
          %v2985 = vld [vmem:[%s2979 + $0x28] sm:$0xff]
          %v2986 = vld [vmem:[%s2979 + $0x30] sm:$0xff]
          %v2987 = vld [vmem:[%s2979 + $0x38] sm:$0xff]
          %v2988 = vld [vmem:[#allocation4] sm:$0xff]
          %v2989 = vld [vmem:[#allocation19] sm:$0xff]
          %v2990 = vld [vmem:[#allocation19 + $0x8] sm:$0xff]
          %v2991 = vld [vmem:[#allocation19 + $0x10] sm:$0xff]
          %v2992 = vld [vmem:[#allocation19 + $0x18] sm:$0xff]
          %v2993 = vld [vmem:[#allocation19 + $0x20] sm:$0xff]
          %v2994 = vld [vmem:[#allocation19 + $0x28] sm:$0xff]
          %v2995 = vld [vmem:[#allocation19 + $0x30] sm:$0xff]
          %v2996 = vld [vmem:[#allocation19 + $0x38] sm:$0xff]
          %v2997 = vld [vmem:[#allocation19 + $0x40] sm:$0xff]
          %v2998 = vld [vmem:[#allocation19 + $0x48] sm:$0xff]
          %v2999 = vld [vmem:[#allocation19 + $0x50] sm:$0xff]
          %v3000 = vld [vmem:[#allocation19 + $0x58] sm:$0xff]
          %v3001 = vld [vmem:[#allocation19 + $0x60] sm:$0xff]
          %v3002 = vld [vmem:[#allocation19 + $0x68] sm:$0xff]
          %v3003 = vld [vmem:[#allocation19 + $0x70] sm:$0xff]
          %v3004 = vld [vmem:[#allocation19 + $0x78] sm:$0xff]
          %v3005 = vld [vmem:[#allocation19 + $0x80] sm:$0xff]
          %v3006 = vld [vmem:[#allocation19 + $0x88] sm:$0xff]
          %v3007 = vld [vmem:[#allocation19 + $0x90] sm:$0xff]
          %v3008 = vld [vmem:[#allocation19 + $0x98] sm:$0xff]
          %v3009 = vld [vmem:[#allocation19 + $0xa0] sm:$0xff]
          %v3010 = vld [vmem:[#allocation19 + $0xa8] sm:$0xff]
          %v3011 = vld [vmem:[#allocation19 + $0xb0] sm:$0xff]
          %v3012 = vld [vmem:[#allocation19 + $0xb8] sm:$0xff]
          %v3013 = vld [vmem:[#allocation19 + $0xc0] sm:$0xff]
          %v3014 = vld [vmem:[#allocation19 + $0xc8] sm:$0xff]
          %v3015 = vld [vmem:[#allocation19 + $0xd0] sm:$0xff]
          %v3016 = vld [vmem:[#allocation19 + $0xd8] sm:$0xff]
          %v3017 = vld [vmem:[#allocation19 + $0xe0] sm:$0xff]
          %v3018 = vld [vmem:[#allocation19 + $0xe8] sm:$0xff]
          %v3019 = vld [vmem:[#allocation19 + $0xf0] sm:$0xff]
          %v3020 = vld [vmem:[#allocation19 + $0xf8] sm:$0xff]
          %v3053 = vunpack.c.l.b16 %v2989
          %v3054 = vunpack.c.h.b16 %v2989
          %v3055 = vunpack.c.l.b16 %v2990
          %v3056 = vunpack.c.h.b16 %v2990
          %v3057 = vunpack.c.l.b16 %v2991
          %v3058 = vunpack.c.h.b16 %v2991
          %v3059 = vunpack.c.l.b16 %v2992
          %v3060 = vunpack.c.h.b16 %v2992
          %v3061 = vunpack.c.l.b16 %v2993
          %v3062 = vunpack.c.h.b16 %v2993
          %v3063 = vunpack.c.l.b16 %v2994
          %v3064 = vunpack.c.h.b16 %v2994
          %v3065 = vunpack.c.l.b16 %v2995
          %v3066 = vunpack.c.h.b16 %v2995
          %v3067 = vunpack.c.l.b16 %v2996
          %v3068 = vunpack.c.h.b16 %v2996
          %v3069 = vunpack.c.l.b16 %v2997
          %v3070 = vunpack.c.h.b16 %v2997
          %v3071 = vunpack.c.l.b16 %v2998
          %v3072 = vunpack.c.h.b16 %v2998
          %v3073 = vunpack.c.l.b16 %v2999
          %v3074 = vunpack.c.h.b16 %v2999
          %v3075 = vunpack.c.l.b16 %v3000
          %v3076 = vunpack.c.h.b16 %v3000
          %v3077 = vunpack.c.l.b16 %v3001
          %v3078 = vunpack.c.h.b16 %v3001
          %v3079 = vunpack.c.l.b16 %v3002
          %v3080 = vunpack.c.h.b16 %v3002
          %v3081 = vunpack.c.l.b16 %v3003
          %v3082 = vunpack.c.h.b16 %v3003
          %v3083 = vunpack.c.l.b16 %v3004
          %v3084 = vunpack.c.h.b16 %v3004
          %v3085 = vunpack.c.l.b16 %v3005
          %v3086 = vunpack.c.h.b16 %v3005
          %v3087 = vunpack.c.l.b16 %v3006
          %v3088 = vunpack.c.h.b16 %v3006
          %v3089 = vunpack.c.l.b16 %v3007
          %v3090 = vunpack.c.h.b16 %v3007
          %v3091 = vunpack.c.l.b16 %v3008
          %v3092 = vunpack.c.h.b16 %v3008
          %v3093 = vunpack.c.l.b16 %v3009
          %v3094 = vunpack.c.h.b16 %v3009
          %v3095 = vunpack.c.l.b16 %v3010
          %v3096 = vunpack.c.h.b16 %v3010
          %v3097 = vunpack.c.l.b16 %v3011
          %v3098 = vunpack.c.h.b16 %v3011
          %v3099 = vunpack.c.l.b16 %v3012
          %v3100 = vunpack.c.h.b16 %v3012
          %v3101 = vunpack.c.l.b16 %v3013
          %v3102 = vunpack.c.h.b16 %v3013
          %v3103 = vunpack.c.l.b16 %v3014
          %v3104 = vunpack.c.h.b16 %v3014
          %v3105 = vunpack.c.l.b16 %v3015
          %v3106 = vunpack.c.h.b16 %v3015
          %v3107 = vunpack.c.l.b16 %v3016
          %v3108 = vunpack.c.h.b16 %v3016
          %v3109 = vunpack.c.l.b16 %v3017
          %v3110 = vunpack.c.h.b16 %v3017
          %v3111 = vunpack.c.l.b16 %v3018
          %v3112 = vunpack.c.h.b16 %v3018
          %v3113 = vunpack.c.l.b16 %v3019
          %v3114 = vunpack.c.h.b16 %v3019
          %v3115 = vunpack.c.l.b16 %v3020
          %v3116 = vunpack.c.h.b16 %v3020
          %v3117 = vpack.c.b16 %v3057, %v3053
          %v3118 = vpack.c.b16 %v3058, %v3054
          %v3119 = vpack.c.b16 %v3059, %v3055
          %v3120 = vpack.c.b16 %v3060, %v3056
          %v3121 = vpack.c.b16 %v3065, %v3061
          %v3122 = vpack.c.b16 %v3066, %v3062
          %v3123 = vpack.c.b16 %v3067, %v3063
          %v3124 = vpack.c.b16 %v3068, %v3064
          %v3125 = vpack.c.b16 %v3073, %v3069
          %v3126 = vpack.c.b16 %v3074, %v3070
          %v3127 = vpack.c.b16 %v3075, %v3071
          %v3128 = vpack.c.b16 %v3076, %v3072
          %v3129 = vpack.c.b16 %v3081, %v3077
          %v3130 = vpack.c.b16 %v3082, %v3078
          %v3131 = vpack.c.b16 %v3083, %v3079
          %v3132 = vpack.c.b16 %v3084, %v3080
          %v3133 = vpack.c.b16 %v3089, %v3085
          %v3134 = vpack.c.b16 %v3090, %v3086
          %v3135 = vpack.c.b16 %v3091, %v3087
          %v3136 = vpack.c.b16 %v3092, %v3088
          %v3137 = vpack.c.b16 %v3097, %v3093
          %v3138 = vpack.c.b16 %v3098, %v3094
          %v3139 = vpack.c.b16 %v3099, %v3095
          %v3140 = vpack.c.b16 %v3100, %v3096
          %v3141 = vpack.c.b16 %v3105, %v3101
          %v3142 = vpack.c.b16 %v3106, %v3102
          %v3143 = vpack.c.b16 %v3107, %v3103
          %v3144 = vpack.c.b16 %v3108, %v3104
          %v3145 = vpack.c.b16 %v3113, %v3109
          %v3146 = vpack.c.b16 %v3114, %v3110
          %v3147 = vpack.c.b16 %v3115, %v3111
          %v3148 = vpack.c.b16 %v3116, %v3112
          %3181 = vmatprep.subr.bf16.mxu0 %v3118
          %3182 = vmatpush1.bf16.msra.mxu0 %v3117
          %3183 = vmatprep.subr.bf16.mxu0 %v3122
          %3184 = vmatpush1.bf16.msra.mxu0 %v3121
          %3185 = vmatprep.subr.bf16.mxu0 %v3126
          %3186 = vmatpush1.bf16.msra.mxu0 %v3125
          %3187 = vmatprep.subr.bf16.mxu0 %v3130
          %3188 = vmatpush1.bf16.msra.mxu0 %v3129
          %3189 = vmatprep.subr.bf16.mxu0 %v3134
          %3190 = vmatpush1.bf16.msra.mxu0 %v3133
          %3191 = vmatprep.subr.bf16.mxu0 %v3138
          %3192 = vmatpush1.bf16.msra.mxu0 %v3137
          %3193 = vmatprep.subr.bf16.mxu0 %v3142
          %3194 = vmatpush1.bf16.msra.mxu0 %v3141
          %3195 = vmatprep.subr.bf16.mxu0 %v3146
          %3196 = vmatpush1.bf16.msra.mxu0 %v3145
          %3197 = vmatprep.subr.bf16.mxu0 0
          %3198 = vmatpush1.bf16.msra.mxu0 0
          %3199 = vmatprep.subr.bf16.mxu0 0
          %3200 = vmatpush1.bf16.msra.mxu0 0
          %3201 = vmatprep.subr.bf16.mxu0 0
          %3202 = vmatpush1.bf16.msra.mxu0 0
          %3203 = vmatprep.subr.bf16.mxu0 0
          %3204 = vmatpush1.bf16.msra.mxu0 0
          %3205 = vmatprep.subr.bf16.mxu0 0
          %3206 = vmatpush1.bf16.msra.mxu0 0
          %3207 = vmatprep.subr.bf16.mxu0 0
          %3208 = vmatpush1.bf16.msra.mxu0 0
          %3209 = vmatprep.subr.bf16.mxu0 0
          %3210 = vmatpush1.bf16.msra.mxu0 0
          %3211 = vmatprep.subr.bf16.mxu0 0
          %3212 = vmatpush1.bf16.msra.mxu0 0
          %3213 = vmatprep.mubr.bf16.mxu0 0
          %3214 = vmatmul.mubr.bf16.gmra.mrb[0].mxu0 %v2988
          %v3215 = vpop.f32.mrb[0].mxu0
          %v3216 = vadd.f32 0.0, %v3215
          %v3217 = vpop.f32.mrb[0].mxu0
          %v3218 = vadd.f32 0.0, %v3217
          %v3219 = vpop.f32.mrb[0].mxu0
          %v3220 = vadd.f32 0.0, %v3219
          %v3221 = vpop.f32.mrb[0].mxu0
          %v3222 = vadd.f32 0.0, %v3221
          %3223 = vdwg.mxu0
          %3224 = vmatprep.subr.bf16.mxu0 %v3120
          %3225 = vmatpush1.bf16.msra.mxu0 %v3119
          %3226 = vmatprep.subr.bf16.mxu0 %v3124
          %3227 = vmatpush1.bf16.msra.mxu0 %v3123
          %3228 = vmatprep.subr.bf16.mxu0 %v3128
          %3229 = vmatpush1.bf16.msra.mxu0 %v3127
          %3230 = vmatprep.subr.bf16.mxu0 %v3132
          %3231 = vmatpush1.bf16.msra.mxu0 %v3131
          %3232 = vmatprep.subr.bf16.mxu0 %v3136
          %3233 = vmatpush1.bf16.msra.mxu0 %v3135
          %3234 = vmatprep.subr.bf16.mxu0 %v3140
          %3235 = vmatpush1.bf16.msra.mxu0 %v3139
          %3236 = vmatprep.subr.bf16.mxu0 %v3144
          %3237 = vmatpush1.bf16.msra.mxu0 %v3143
          %3238 = vmatprep.subr.bf16.mxu0 %v3148
          %3239 = vmatpush1.bf16.msra.mxu0 %v3147
          %3240 = vmatprep.subr.bf16.mxu0 0
          %3241 = vmatpush1.bf16.msra.mxu0 0
          %3242 = vmatprep.subr.bf16.mxu0 0
          %3243 = vmatpush1.bf16.msra.mxu0 0
          %3244 = vmatprep.subr.bf16.mxu0 0
          %3245 = vmatpush1.bf16.msra.mxu0 0
          %3246 = vmatprep.subr.bf16.mxu0 0
          %3247 = vmatpush1.bf16.msra.mxu0 0
          %3248 = vmatprep.subr.bf16.mxu0 0
          %3249 = vmatpush1.bf16.msra.mxu0 0
          %3250 = vmatprep.subr.bf16.mxu0 0
          %3251 = vmatpush1.bf16.msra.mxu0 0
          %3252 = vmatprep.subr.bf16.mxu0 0
          %3253 = vmatpush1.bf16.msra.mxu0 0
          %3254 = vmatprep.subr.bf16.mxu0 0
          %3255 = vmatpush1.bf16.msra.mxu0 0
          %3256 = vmatprep.mubr.bf16.mxu0 0
          %3257 = vmatmul.mubr.bf16.gmra.mrb[0].mxu0 %v2988
          %v3258 = vpop.f32.mrb[0].mxu0
          %v3259 = vadd.f32 0.0, %v3258
          %v3260 = vpop.f32.mrb[0].mxu0
          %v3261 = vadd.f32 0.0, %v3260
          %v3262 = vpop.f32.mrb[0].mxu0
          %v3263 = vadd.f32 0.0, %v3262
          %v3264 = vpop.f32.mrb[0].mxu0
          %v3265 = vadd.f32 0.0, %v3264
          %3266 = vdwg.mxu0
          %v3267 = vadd.f32 %v2980, %v3216
          %v3268 = vadd.f32 %v2981, %v3218
          %v3269 = vadd.f32 %v2982, %v3259
          %v3270 = vadd.f32 %v2983, %v3261
          %v3271 = vadd.f32 %v2984, %v3220
          %v3272 = vadd.f32 %v2985, %v3222
          %v3273 = vadd.f32 %v2986, %v3263
          %v3274 = vadd.f32 %v2987, %v3265
          %v3275 = vld [vmem:[#allocation3] sm:$0xff]
          %v3276 = vld [vmem:[#allocation3 + $0x8] sm:$0xff]
          %v3277 = vxor.u32 %v2970, 2147483648
          %v3278 = vxor.u32 %v2974, 2147483648
          %v3279 = vmul.f32 %v3277, 1.442695
          %v3280 = vpow.pop %v3279
          %v3281 = vmul.f32 %v3278, 1.442695
          %v3282 = vpow.pop %v3281
          %v3283 = vadd.f32 %v3280, 1.0
          %v3284 = vadd.f32 %v3282, 1.0
          %v3285 = vrcp.pop %v3283
          %v3286 = vmul.f32 1.0, %v3285
          %v3287 = vrcp.pop %v3284
          %v3288 = vmul.f32 1.0, %v3287
          %v3289 = vxor.u32 %v2971, 2147483648
          %v3290 = vxor.u32 %v2975, 2147483648
          %v3291 = vmul.f32 %v3289, 1.442695
          %v3292 = vpow.pop %v3291
          %v3293 = vmul.f32 %v3290, 1.442695
          %v3294 = vpow.pop %v3293
          %v3295 = vadd.f32 %v3292, 1.0
          %v3296 = vadd.f32 %v3294, 1.0
          %v3297 = vrcp.pop %v3295
          %v3298 = vmul.f32 1.0, %v3297
          %v3299 = vrcp.pop %v3296
          %v3300 = vmul.f32 1.0, %v3299
          %v3301 = vtanh.pop %v2972
          %v3302 = vtanh.pop %v2976
          %v3303 = vxor.u32 %v2973, 2147483648
          %v3304 = vxor.u32 %v2977, 2147483648
          %v3305 = vmul.f32 %v3303, 1.442695
          %v3306 = vpow.pop %v3305
          %v3307 = vmul.f32 %v3304, 1.442695
          %v3308 = vpow.pop %v3307
          %v3309 = vadd.f32 %v3306, 1.0
          %v3310 = vadd.f32 %v3308, 1.0
          %v3311 = vrcp.pop %v3309
          %v3312 = vmul.f32 1.0, %v3311
          %v3313 = vrcp.pop %v3310
          %v3314 = vmul.f32 1.0, %v3313
          %v3315 = vmul.f32 %v3298, %v3275
          %v3316 = vmul.f32 %v3300, %v3276
          %v3317 = vmul.f32 %v3286, %v3301
          %v3318 = vmul.f32 %v3288, %v3302
          %v3319 = vadd.f32 %v3315, %v3317
          %v3320 = vadd.f32 %v3316, %v3318
          %v3321 = vtanh.pop %v3319
          %v3322 = vtanh.pop %v3320
          %v3323 = vmul.f32 %v3312, %v3321
          %v3324 = vmul.f32 %v3314, %v3322
          %v3325 = vld [vmem:[#allocation5] sm:$0xff]
          %v3326 = vld [vmem:[#allocation5 + $0x8] sm:$0xff]
          %v3327 = vxor.u32 %v3267, 2147483648
          %v3328 = vxor.u32 %v3271, 2147483648
          %v3329 = vmul.f32 %v3327, 1.442695
          %v3330 = vpow.pop %v3329
          %v3331 = vmul.f32 %v3328, 1.442695
          %v3332 = vpow.pop %v3331
          %v3333 = vadd.f32 %v3330, 1.0
          %v3334 = vadd.f32 %v3332, 1.0
          %v3335 = vrcp.pop %v3333
          %v3336 = vmul.f32 1.0, %v3335
          %v3337 = vrcp.pop %v3334
          %v3338 = vmul.f32 1.0, %v3337
          %v3339 = vxor.u32 %v3268, 2147483648
          %v3340 = vxor.u32 %v3272, 2147483648
          %v3341 = vmul.f32 %v3339, 1.442695
          %v3342 = vpow.pop %v3341
          %v3343 = vmul.f32 %v3340, 1.442695
          %v3344 = vpow.pop %v3343
          %v3345 = vadd.f32 %v3342, 1.0
          %v3346 = vadd.f32 %v3344, 1.0
          %v3347 = vrcp.pop %v3345
          %v3348 = vmul.f32 1.0, %v3347
          %v3349 = vrcp.pop %v3346
          %v3350 = vmul.f32 1.0, %v3349
          %v3351 = vtanh.pop %v3269
          %v3352 = vtanh.pop %v3273
          %v3353 = vxor.u32 %v3270, 2147483648
          %v3354 = vxor.u32 %v3274, 2147483648
          %v3355 = vmul.f32 %v3353, 1.442695
          %v3356 = vpow.pop %v3355
          %v3357 = vmul.f32 %v3354, 1.442695
          %v3358 = vpow.pop %v3357
          %v3359 = vadd.f32 %v3356, 1.0
          %v3360 = vadd.f32 %v3358, 1.0
          %v3361 = vrcp.pop %v3359
          %v3362 = vmul.f32 1.0, %v3361
          %v3363 = vrcp.pop %v3360
          %v3364 = vmul.f32 1.0, %v3363
          %v3365 = vmul.f32 %v3348, %v3325
          %v3366 = vmul.f32 %v3350, %v3326
          %v3367 = vmul.f32 %v3336, %v3351
          %v3368 = vmul.f32 %v3338, %v3352
          %v3369 = vadd.f32 %v3365, %v3367
          %v3370 = vadd.f32 %v3366, %v3368
          %v3371 = vtanh.pop %v3369
          %v3372 = vtanh.pop %v3370
          %v3373 = vmul.f32 %v3362, %v3371
          %v3374 = vmul.f32 %v3364, %v3372
          %v3375 = vstv %s2678
          %vm3376 = vcmp.gt.s32.totalorder %v584, %v3375
          %vm3377 = vcmp.gt.s32.totalorder %v585, %v3375
          %v3378 = vstv %s2679
          %vm3379 = vcmp.gt.s32.totalorder %v584, %v3378
          %vm3380 = vcmp.gt.s32.totalorder %v585, %v3378
          %v3381 = vpack.c.bf16 %v3324, %v3323
          %v3382 = vsel %vm3376, 1, 0
          %v3383 = vsel %vm3377, 1, 0
          %3384 = vset.pattern.permute.xlu0 0
          %3385 = vperm.xlu0 %3384, %v3382
          %v3386 = vpop.permute.xlu0 %3385
          %3387 = vset.pattern.permute.xlu0 0
          %3388 = vperm.xlu0 %3387, %v3383
          %v3389 = vpop.permute.xlu0 %3388
          %vm3390 = vcmp.eq.s32.totalorder %v3386, 1
          %vm3391 = vcmp.eq.s32.totalorder %v3389, 1
          %vm3392 = vmpackc.low %vm3390, %vm3390
          %vm3393 = vmpackc.low %vm3391, %vm3391
          %v3394 = vsel %vm3392, 65537, 0
          %v3395 = vsel %vm3393, 65537, 0
          %v3396 = vunpack.c.l.b16 %v3394
          %v3397 = vunpack.c.l.b16 %v3395
          %v3398 = vpack.c.b16 %v3397, %v3396
          %vm3399 = vcmp.ne.s16.totalorder %v3398, 0
          %v3400 = vsel %vm3399, %v3381, %v2691
          %3401 = vst [vmem:[#allocation2] sm:$0xff] %v3400
          %v3402 = vld [vmem:[#allocation3] sm:$0xff]
          %v3403 = vld [vmem:[#allocation3 + $0x8] sm:$0xff]
          %v3404 = vsel %vm3390, %v3319, %v3402
          %v3405 = vsel %vm3391, %v3320, %v3403
          %3406 = vst [vmem:[#allocation3] sm:$0xff] %v3404
          %3407 = vst [vmem:[#allocation3 + $0x8] sm:$0xff] %v3405
          %v3408 = vpack.c.bf16 %v3374, %v3373
          %v3409 = vld [vmem:[#allocation4] sm:$0xff]
          %v3410 = vsel %vm3379, 1, 0
          %v3411 = vsel %vm3380, 1, 0
          %3412 = vset.pattern.permute.xlu0 0
          %3413 = vperm.xlu0 %3412, %v3410
          %v3414 = vpop.permute.xlu0 %3413
          %3415 = vset.pattern.permute.xlu0 0
          %3416 = vperm.xlu0 %3415, %v3411
          %v3417 = vpop.permute.xlu0 %3416
          %vm3418 = vcmp.eq.s32.totalorder %v3414, 1
          %vm3419 = vcmp.eq.s32.totalorder %v3417, 1
          %vm3420 = vmpackc.low %vm3418, %vm3418
          %vm3421 = vmpackc.low %vm3419, %vm3419
          %v3422 = vsel %vm3420, 65537, 0
          %v3423 = vsel %vm3421, 65537, 0
          %v3424 = vunpack.c.l.b16 %v3422
          %v3425 = vunpack.c.l.b16 %v3423
          %v3426 = vpack.c.b16 %v3425, %v3424
          %vm3427 = vcmp.ne.s16.totalorder %v3426, 0
          %v3428 = vsel %vm3427, %v3408, %v3409
          %3429 = vst [vmem:[#allocation4] sm:$0xff] %v3428
          %v3430 = vld [vmem:[#allocation5] sm:$0xff]
          %v3431 = vld [vmem:[#allocation5 + $0x8] sm:$0xff]
          %v3432 = vsel %vm3418, %v3369, %v3430
          %v3433 = vsel %vm3419, %v3370, %v3431
          %3434 = vst [vmem:[#allocation5] sm:$0xff] %v3432
          %3435 = vst [vmem:[#allocation5 + $0x8] sm:$0xff] %v3433
          %s3436 = sadd.s32 %s575, 3
          %s3437 = smul.u32 6, 4
          %s3438 = smul.addr %s3437, 8
          %s3439 = scalar_lea.vmem [#allocation6], %s3438
          %v3440 = vld [vmem:[%s3439] sm:$0xff]
          %v3441 = vld [vmem:[%s3439 + $0x8] sm:$0xff]
          %v3442 = vld [vmem:[%s3439 + $0x10] sm:$0xff]
          %v3443 = vld [vmem:[%s3439 + $0x18] sm:$0xff]
          %v3444 = vld [vmem:[%s3439 + $0x20] sm:$0xff]
          %v3445 = vld [vmem:[%s3439 + $0x28] sm:$0xff]
          %v3446 = vld [vmem:[%s3439 + $0x30] sm:$0xff]
          %v3447 = vld [vmem:[%s3439 + $0x38] sm:$0xff]
          %v3448 = vld [vmem:[#allocation2] sm:$0xff]
          %v3449 = vld [vmem:[#allocation18] sm:$0xff]
          %v3450 = vld [vmem:[#allocation18 + $0x8] sm:$0xff]
          %v3451 = vld [vmem:[#allocation18 + $0x10] sm:$0xff]
          %v3452 = vld [vmem:[#allocation18 + $0x18] sm:$0xff]
          %v3453 = vld [vmem:[#allocation18 + $0x20] sm:$0xff]
          %v3454 = vld [vmem:[#allocation18 + $0x28] sm:$0xff]
          %v3455 = vld [vmem:[#allocation18 + $0x30] sm:$0xff]
          %v3456 = vld [vmem:[#allocation18 + $0x38] sm:$0xff]
          %v3457 = vld [vmem:[#allocation18 + $0x40] sm:$0xff]
          %v3458 = vld [vmem:[#allocation18 + $0x48] sm:$0xff]
          %v3459 = vld [vmem:[#allocation18 + $0x50] sm:$0xff]
          %v3460 = vld [vmem:[#allocation18 + $0x58] sm:$0xff]
          %v3461 = vld [vmem:[#allocation18 + $0x60] sm:$0xff]
          %v3462 = vld [vmem:[#allocation18 + $0x68] sm:$0xff]
          %v3463 = vld [vmem:[#allocation18 + $0x70] sm:$0xff]
          %v3464 = vld [vmem:[#allocation18 + $0x78] sm:$0xff]
          %v3465 = vld [vmem:[#allocation18 + $0x80] sm:$0xff]
          %v3466 = vld [vmem:[#allocation18 + $0x88] sm:$0xff]
          %v3467 = vld [vmem:[#allocation18 + $0x90] sm:$0xff]
          %v3468 = vld [vmem:[#allocation18 + $0x98] sm:$0xff]
          %v3469 = vld [vmem:[#allocation18 + $0xa0] sm:$0xff]
          %v3470 = vld [vmem:[#allocation18 + $0xa8] sm:$0xff]
          %v3471 = vld [vmem:[#allocation18 + $0xb0] sm:$0xff]
          %v3472 = vld [vmem:[#allocation18 + $0xb8] sm:$0xff]
          %v3473 = vld [vmem:[#allocation18 + $0xc0] sm:$0xff]
          %v3474 = vld [vmem:[#allocation18 + $0xc8] sm:$0xff]
          %v3475 = vld [vmem:[#allocation18 + $0xd0] sm:$0xff]
          %v3476 = vld [vmem:[#allocation18 + $0xd8] sm:$0xff]
          %v3477 = vld [vmem:[#allocation18 + $0xe0] sm:$0xff]
          %v3478 = vld [vmem:[#allocation18 + $0xe8] sm:$0xff]
          %v3479 = vld [vmem:[#allocation18 + $0xf0] sm:$0xff]
          %v3480 = vld [vmem:[#allocation18 + $0xf8] sm:$0xff]
          %v3513 = vunpack.c.l.b16 %v3449
          %v3514 = vunpack.c.h.b16 %v3449
          %v3515 = vunpack.c.l.b16 %v3450
          %v3516 = vunpack.c.h.b16 %v3450
          %v3517 = vunpack.c.l.b16 %v3451
          %v3518 = vunpack.c.h.b16 %v3451
          %v3519 = vunpack.c.l.b16 %v3452
          %v3520 = vunpack.c.h.b16 %v3452
          %v3521 = vunpack.c.l.b16 %v3453
          %v3522 = vunpack.c.h.b16 %v3453
          %v3523 = vunpack.c.l.b16 %v3454
          %v3524 = vunpack.c.h.b16 %v3454
          %v3525 = vunpack.c.l.b16 %v3455
          %v3526 = vunpack.c.h.b16 %v3455
          %v3527 = vunpack.c.l.b16 %v3456
          %v3528 = vunpack.c.h.b16 %v3456
          %v3529 = vunpack.c.l.b16 %v3457
          %v3530 = vunpack.c.h.b16 %v3457
          %v3531 = vunpack.c.l.b16 %v3458
          %v3532 = vunpack.c.h.b16 %v3458
          %v3533 = vunpack.c.l.b16 %v3459
          %v3534 = vunpack.c.h.b16 %v3459
          %v3535 = vunpack.c.l.b16 %v3460
          %v3536 = vunpack.c.h.b16 %v3460
          %v3537 = vunpack.c.l.b16 %v3461
          %v3538 = vunpack.c.h.b16 %v3461
          %v3539 = vunpack.c.l.b16 %v3462
          %v3540 = vunpack.c.h.b16 %v3462
          %v3541 = vunpack.c.l.b16 %v3463
          %v3542 = vunpack.c.h.b16 %v3463
          %v3543 = vunpack.c.l.b16 %v3464
          %v3544 = vunpack.c.h.b16 %v3464
          %v3545 = vunpack.c.l.b16 %v3465
          %v3546 = vunpack.c.h.b16 %v3465
          %v3547 = vunpack.c.l.b16 %v3466
          %v3548 = vunpack.c.h.b16 %v3466
          %v3549 = vunpack.c.l.b16 %v3467
          %v3550 = vunpack.c.h.b16 %v3467
          %v3551 = vunpack.c.l.b16 %v3468
          %v3552 = vunpack.c.h.b16 %v3468
          %v3553 = vunpack.c.l.b16 %v3469
          %v3554 = vunpack.c.h.b16 %v3469
          %v3555 = vunpack.c.l.b16 %v3470
          %v3556 = vunpack.c.h.b16 %v3470
          %v3557 = vunpack.c.l.b16 %v3471
          %v3558 = vunpack.c.h.b16 %v3471
          %v3559 = vunpack.c.l.b16 %v3472
          %v3560 = vunpack.c.h.b16 %v3472
          %v3561 = vunpack.c.l.b16 %v3473
          %v3562 = vunpack.c.h.b16 %v3473
          %v3563 = vunpack.c.l.b16 %v3474
          %v3564 = vunpack.c.h.b16 %v3474
          %v3565 = vunpack.c.l.b16 %v3475
          %v3566 = vunpack.c.h.b16 %v3475
          %v3567 = vunpack.c.l.b16 %v3476
          %v3568 = vunpack.c.h.b16 %v3476
          %v3569 = vunpack.c.l.b16 %v3477
          %v3570 = vunpack.c.h.b16 %v3477
          %v3571 = vunpack.c.l.b16 %v3478
          %v3572 = vunpack.c.h.b16 %v3478
          %v3573 = vunpack.c.l.b16 %v3479
          %v3574 = vunpack.c.h.b16 %v3479
          %v3575 = vunpack.c.l.b16 %v3480
          %v3576 = vunpack.c.h.b16 %v3480
          %v3577 = vpack.c.b16 %v3517, %v3513
          %v3578 = vpack.c.b16 %v3518, %v3514
          %v3579 = vpack.c.b16 %v3519, %v3515
          %v3580 = vpack.c.b16 %v3520, %v3516
          %v3581 = vpack.c.b16 %v3525, %v3521
          %v3582 = vpack.c.b16 %v3526, %v3522
          %v3583 = vpack.c.b16 %v3527, %v3523
          %v3584 = vpack.c.b16 %v3528, %v3524
          %v3585 = vpack.c.b16 %v3533, %v3529
          %v3586 = vpack.c.b16 %v3534, %v3530
          %v3587 = vpack.c.b16 %v3535, %v3531
          %v3588 = vpack.c.b16 %v3536, %v3532
          %v3589 = vpack.c.b16 %v3541, %v3537
          %v3590 = vpack.c.b16 %v3542, %v3538
          %v3591 = vpack.c.b16 %v3543, %v3539
          %v3592 = vpack.c.b16 %v3544, %v3540
          %v3593 = vpack.c.b16 %v3549, %v3545
          %v3594 = vpack.c.b16 %v3550, %v3546
          %v3595 = vpack.c.b16 %v3551, %v3547
          %v3596 = vpack.c.b16 %v3552, %v3548
          %v3597 = vpack.c.b16 %v3557, %v3553
          %v3598 = vpack.c.b16 %v3558, %v3554
          %v3599 = vpack.c.b16 %v3559, %v3555
          %v3600 = vpack.c.b16 %v3560, %v3556
          %v3601 = vpack.c.b16 %v3565, %v3561
          %v3602 = vpack.c.b16 %v3566, %v3562
          %v3603 = vpack.c.b16 %v3567, %v3563
          %v3604 = vpack.c.b16 %v3568, %v3564
          %v3605 = vpack.c.b16 %v3573, %v3569
          %v3606 = vpack.c.b16 %v3574, %v3570
          %v3607 = vpack.c.b16 %v3575, %v3571
          %v3608 = vpack.c.b16 %v3576, %v3572
          %3641 = vmatprep.subr.bf16.mxu0 %v3578
          %3642 = vmatpush1.bf16.msra.mxu0 %v3577
          %3643 = vmatprep.subr.bf16.mxu0 %v3582
          %3644 = vmatpush1.bf16.msra.mxu0 %v3581
          %3645 = vmatprep.subr.bf16.mxu0 %v3586
          %3646 = vmatpush1.bf16.msra.mxu0 %v3585
          %3647 = vmatprep.subr.bf16.mxu0 %v3590
          %3648 = vmatpush1.bf16.msra.mxu0 %v3589
          %3649 = vmatprep.subr.bf16.mxu0 %v3594
          %3650 = vmatpush1.bf16.msra.mxu0 %v3593
          %3651 = vmatprep.subr.bf16.mxu0 %v3598
          %3652 = vmatpush1.bf16.msra.mxu0 %v3597
          %3653 = vmatprep.subr.bf16.mxu0 %v3602
          %3654 = vmatpush1.bf16.msra.mxu0 %v3601
          %3655 = vmatprep.subr.bf16.mxu0 %v3606
          %3656 = vmatpush1.bf16.msra.mxu0 %v3605
          %3657 = vmatprep.subr.bf16.mxu0 0
          %3658 = vmatpush1.bf16.msra.mxu0 0
          %3659 = vmatprep.subr.bf16.mxu0 0
          %3660 = vmatpush1.bf16.msra.mxu0 0
          %3661 = vmatprep.subr.bf16.mxu0 0
          %3662 = vmatpush1.bf16.msra.mxu0 0
          %3663 = vmatprep.subr.bf16.mxu0 0
          %3664 = vmatpush1.bf16.msra.mxu0 0
          %3665 = vmatprep.subr.bf16.mxu0 0
          %3666 = vmatpush1.bf16.msra.mxu0 0
          %3667 = vmatprep.subr.bf16.mxu0 0
          %3668 = vmatpush1.bf16.msra.mxu0 0
          %3669 = vmatprep.subr.bf16.mxu0 0
          %3670 = vmatpush1.bf16.msra.mxu0 0
          %3671 = vmatprep.subr.bf16.mxu0 0
          %3672 = vmatpush1.bf16.msra.mxu0 0
          %3673 = vmatprep.mubr.bf16.mxu0 0
          %3674 = vmatmul.mubr.bf16.gmra.mrb[0].mxu0 %v3448
          %v3675 = vpop.f32.mrb[0].mxu0
          %v3676 = vadd.f32 0.0, %v3675
          %v3677 = vpop.f32.mrb[0].mxu0
          %v3678 = vadd.f32 0.0, %v3677
          %v3679 = vpop.f32.mrb[0].mxu0
          %v3680 = vadd.f32 0.0, %v3679
          %v3681 = vpop.f32.mrb[0].mxu0
          %v3682 = vadd.f32 0.0, %v3681
          %3683 = vdwg.mxu0
          %3684 = vmatprep.subr.bf16.mxu0 %v3580
          %3685 = vmatpush1.bf16.msra.mxu0 %v3579
          %3686 = vmatprep.subr.bf16.mxu0 %v3584
          %3687 = vmatpush1.bf16.msra.mxu0 %v3583
          %3688 = vmatprep.subr.bf16.mxu0 %v3588
          %3689 = vmatpush1.bf16.msra.mxu0 %v3587
          %3690 = vmatprep.subr.bf16.mxu0 %v3592
          %3691 = vmatpush1.bf16.msra.mxu0 %v3591
          %3692 = vmatprep.subr.bf16.mxu0 %v3596
          %3693 = vmatpush1.bf16.msra.mxu0 %v3595
          %3694 = vmatprep.subr.bf16.mxu0 %v3600
          %3695 = vmatpush1.bf16.msra.mxu0 %v3599
          %3696 = vmatprep.subr.bf16.mxu0 %v3604
          %3697 = vmatpush1.bf16.msra.mxu0 %v3603
          %3698 = vmatprep.subr.bf16.mxu0 %v3608
          %3699 = vmatpush1.bf16.msra.mxu0 %v3607
          %3700 = vmatprep.subr.bf16.mxu0 0
          %3701 = vmatpush1.bf16.msra.mxu0 0
          %3702 = vmatprep.subr.bf16.mxu0 0
          %3703 = vmatpush1.bf16.msra.mxu0 0
          %3704 = vmatprep.subr.bf16.mxu0 0
          %3705 = vmatpush1.bf16.msra.mxu0 0
          %3706 = vmatprep.subr.bf16.mxu0 0
          %3707 = vmatpush1.bf16.msra.mxu0 0
          %3708 = vmatprep.subr.bf16.mxu0 0
          %3709 = vmatpush1.bf16.msra.mxu0 0
          %3710 = vmatprep.subr.bf16.mxu0 0
          %3711 = vmatpush1.bf16.msra.mxu0 0
          %3712 = vmatprep.subr.bf16.mxu0 0
          %3713 = vmatpush1.bf16.msra.mxu0 0
          %3714 = vmatprep.subr.bf16.mxu0 0
          %3715 = vmatpush1.bf16.msra.mxu0 0
          %3716 = vmatprep.mubr.bf16.mxu0 0
          %3717 = vmatmul.mubr.bf16.gmra.mrb[0].mxu0 %v3448
          %v3718 = vpop.f32.mrb[0].mxu0
          %v3719 = vadd.f32 0.0, %v3718
          %v3720 = vpop.f32.mrb[0].mxu0
          %v3721 = vadd.f32 0.0, %v3720
          %v3722 = vpop.f32.mrb[0].mxu0
          %v3723 = vadd.f32 0.0, %v3722
          %v3724 = vpop.f32.mrb[0].mxu0
          %v3725 = vadd.f32 0.0, %v3724
          %3726 = vdwg.mxu0
          %v3727 = vadd.f32 %v3440, %v3676
          %v3728 = vadd.f32 %v3441, %v3678
          %v3729 = vadd.f32 %v3442, %v3719
          %v3730 = vadd.f32 %v3443, %v3721
          %v3731 = vadd.f32 %v3444, %v3680
          %v3732 = vadd.f32 %v3445, %v3682
          %v3733 = vadd.f32 %v3446, %v3723
          %v3734 = vadd.f32 %v3447, %v3725
          %s3735 = smul.addr %s3437, 8
          %s3736 = scalar_lea.vmem [#allocation7], %s3735
          %v3737 = vld [vmem:[%s3736] sm:$0xff]
          %v3738 = vld [vmem:[%s3736 + $0x8] sm:$0xff]
          %v3739 = vld [vmem:[%s3736 + $0x10] sm:$0xff]
          %v3740 = vld [vmem:[%s3736 + $0x18] sm:$0xff]
          %v3741 = vld [vmem:[%s3736 + $0x20] sm:$0xff]
          %v3742 = vld [vmem:[%s3736 + $0x28] sm:$0xff]
          %v3743 = vld [vmem:[%s3736 + $0x30] sm:$0xff]
          %v3744 = vld [vmem:[%s3736 + $0x38] sm:$0xff]
          %v3745 = vld [vmem:[#allocation4] sm:$0xff]
          %v3746 = vld [vmem:[#allocation19] sm:$0xff]
          %v3747 = vld [vmem:[#allocation19 + $0x8] sm:$0xff]
          %v3748 = vld [vmem:[#allocation19 + $0x10] sm:$0xff]
          %v3749 = vld [vmem:[#allocation19 + $0x18] sm:$0xff]
          %v3750 = vld [vmem:[#allocation19 + $0x20] sm:$0xff]
          %v3751 = vld [vmem:[#allocation19 + $0x28] sm:$0xff]
          %v3752 = vld [vmem:[#allocation19 + $0x30] sm:$0xff]
          %v3753 = vld [vmem:[#allocation19 + $0x38] sm:$0xff]
          %v3754 = vld [vmem:[#allocation19 + $0x40] sm:$0xff]
          %v3755 = vld [vmem:[#allocation19 + $0x48] sm:$0xff]
          %v3756 = vld [vmem:[#allocation19 + $0x50] sm:$0xff]
          %v3757 = vld [vmem:[#allocation19 + $0x58] sm:$0xff]
          %v3758 = vld [vmem:[#allocation19 + $0x60] sm:$0xff]
          %v3759 = vld [vmem:[#allocation19 + $0x68] sm:$0xff]
          %v3760 = vld [vmem:[#allocation19 + $0x70] sm:$0xff]
          %v3761 = vld [vmem:[#allocation19 + $0x78] sm:$0xff]
          %v3762 = vld [vmem:[#allocation19 + $0x80] sm:$0xff]
          %v3763 = vld [vmem:[#allocation19 + $0x88] sm:$0xff]
          %v3764 = vld [vmem:[#allocation19 + $0x90] sm:$0xff]
          %v3765 = vld [vmem:[#allocation19 + $0x98] sm:$0xff]
          %v3766 = vld [vmem:[#allocation19 + $0xa0] sm:$0xff]
          %v3767 = vld [vmem:[#allocation19 + $0xa8] sm:$0xff]
          %v3768 = vld [vmem:[#allocation19 + $0xb0] sm:$0xff]
          %v3769 = vld [vmem:[#allocation19 + $0xb8] sm:$0xff]
          %v3770 = vld [vmem:[#allocation19 + $0xc0] sm:$0xff]
          %v3771 = vld [vmem:[#allocation19 + $0xc8] sm:$0xff]
          %v3772 = vld [vmem:[#allocation19 + $0xd0] sm:$0xff]
          %v3773 = vld [vmem:[#allocation19 + $0xd8] sm:$0xff]
          %v3774 = vld [vmem:[#allocation19 + $0xe0] sm:$0xff]
          %v3775 = vld [vmem:[#allocation19 + $0xe8] sm:$0xff]
          %v3776 = vld [vmem:[#allocation19 + $0xf0] sm:$0xff]
          %v3777 = vld [vmem:[#allocation19 + $0xf8] sm:$0xff]
          %v3810 = vunpack.c.l.b16 %v3746
          %v3811 = vunpack.c.h.b16 %v3746
          %v3812 = vunpack.c.l.b16 %v3747
          %v3813 = vunpack.c.h.b16 %v3747
          %v3814 = vunpack.c.l.b16 %v3748
          %v3815 = vunpack.c.h.b16 %v3748
          %v3816 = vunpack.c.l.b16 %v3749
          %v3817 = vunpack.c.h.b16 %v3749
          %v3818 = vunpack.c.l.b16 %v3750
          %v3819 = vunpack.c.h.b16 %v3750
          %v3820 = vunpack.c.l.b16 %v3751
          %v3821 = vunpack.c.h.b16 %v3751
          %v3822 = vunpack.c.l.b16 %v3752
          %v3823 = vunpack.c.h.b16 %v3752
          %v3824 = vunpack.c.l.b16 %v3753
          %v3825 = vunpack.c.h.b16 %v3753
          %v3826 = vunpack.c.l.b16 %v3754
          %v3827 = vunpack.c.h.b16 %v3754
          %v3828 = vunpack.c.l.b16 %v3755
          %v3829 = vunpack.c.h.b16 %v3755
          %v3830 = vunpack.c.l.b16 %v3756
          %v3831 = vunpack.c.h.b16 %v3756
          %v3832 = vunpack.c.l.b16 %v3757
          %v3833 = vunpack.c.h.b16 %v3757
          %v3834 = vunpack.c.l.b16 %v3758
          %v3835 = vunpack.c.h.b16 %v3758
          %v3836 = vunpack.c.l.b16 %v3759
          %v3837 = vunpack.c.h.b16 %v3759
          %v3838 = vunpack.c.l.b16 %v3760
          %v3839 = vunpack.c.h.b16 %v3760
          %v3840 = vunpack.c.l.b16 %v3761
          %v3841 = vunpack.c.h.b16 %v3761
          %v3842 = vunpack.c.l.b16 %v3762
          %v3843 = vunpack.c.h.b16 %v3762
          %v3844 = vunpack.c.l.b16 %v3763
          %v3845 = vunpack.c.h.b16 %v3763
          %v3846 = vunpack.c.l.b16 %v3764
          %v3847 = vunpack.c.h.b16 %v3764
          %v3848 = vunpack.c.l.b16 %v3765
          %v3849 = vunpack.c.h.b16 %v3765
          %v3850 = vunpack.c.l.b16 %v3766
          %v3851 = vunpack.c.h.b16 %v3766
          %v3852 = vunpack.c.l.b16 %v3767
          %v3853 = vunpack.c.h.b16 %v3767
          %v3854 = vunpack.c.l.b16 %v3768
          %v3855 = vunpack.c.h.b16 %v3768
          %v3856 = vunpack.c.l.b16 %v3769
          %v3857 = vunpack.c.h.b16 %v3769
          %v3858 = vunpack.c.l.b16 %v3770
          %v3859 = vunpack.c.h.b16 %v3770
          %v3860 = vunpack.c.l.b16 %v3771
          %v3861 = vunpack.c.h.b16 %v3771
          %v3862 = vunpack.c.l.b16 %v3772
          %v3863 = vunpack.c.h.b16 %v3772
          %v3864 = vunpack.c.l.b16 %v3773
          %v3865 = vunpack.c.h.b16 %v3773
          %v3866 = vunpack.c.l.b16 %v3774
          %v3867 = vunpack.c.h.b16 %v3774
          %v3868 = vunpack.c.l.b16 %v3775
          %v3869 = vunpack.c.h.b16 %v3775
          %v3870 = vunpack.c.l.b16 %v3776
          %v3871 = vunpack.c.h.b16 %v3776
          %v3872 = vunpack.c.l.b16 %v3777
          %v3873 = vunpack.c.h.b16 %v3777
          %v3874 = vpack.c.b16 %v3814, %v3810
          %v3875 = vpack.c.b16 %v3815, %v3811
          %v3876 = vpack.c.b16 %v3816, %v3812
          %v3877 = vpack.c.b16 %v3817, %v3813
          %v3878 = vpack.c.b16 %v3822, %v3818
          %v3879 = vpack.c.b16 %v3823, %v3819
          %v3880 = vpack.c.b16 %v3824, %v3820
          %v3881 = vpack.c.b16 %v3825, %v3821
          %v3882 = vpack.c.b16 %v3830, %v3826
          %v3883 = vpack.c.b16 %v3831, %v3827
          %v3884 = vpack.c.b16 %v3832, %v3828
          %v3885 = vpack.c.b16 %v3833, %v3829
          %v3886 = vpack.c.b16 %v3838, %v3834
          %v3887 = vpack.c.b16 %v3839, %v3835
          %v3888 = vpack.c.b16 %v3840, %v3836
          %v3889 = vpack.c.b16 %v3841, %v3837
          %v3890 = vpack.c.b16 %v3846, %v3842
          %v3891 = vpack.c.b16 %v3847, %v3843
          %v3892 = vpack.c.b16 %v3848, %v3844
          %v3893 = vpack.c.b16 %v3849, %v3845
          %v3894 = vpack.c.b16 %v3854, %v3850
          %v3895 = vpack.c.b16 %v3855, %v3851
          %v3896 = vpack.c.b16 %v3856, %v3852
          %v3897 = vpack.c.b16 %v3857, %v3853
          %v3898 = vpack.c.b16 %v3862, %v3858
          %v3899 = vpack.c.b16 %v3863, %v3859
          %v3900 = vpack.c.b16 %v3864, %v3860
          %v3901 = vpack.c.b16 %v3865, %v3861
          %v3902 = vpack.c.b16 %v3870, %v3866
          %v3903 = vpack.c.b16 %v3871, %v3867
          %v3904 = vpack.c.b16 %v3872, %v3868
          %v3905 = vpack.c.b16 %v3873, %v3869
          %3938 = vmatprep.subr.bf16.mxu0 %v3875
          %3939 = vmatpush1.bf16.msra.mxu0 %v3874
          %3940 = vmatprep.subr.bf16.mxu0 %v3879
          %3941 = vmatpush1.bf16.msra.mxu0 %v3878
          %3942 = vmatprep.subr.bf16.mxu0 %v3883
          %3943 = vmatpush1.bf16.msra.mxu0 %v3882
          %3944 = vmatprep.subr.bf16.mxu0 %v3887
          %3945 = vmatpush1.bf16.msra.mxu0 %v3886
          %3946 = vmatprep.subr.bf16.mxu0 %v3891
          %3947 = vmatpush1.bf16.msra.mxu0 %v3890
          %3948 = vmatprep.subr.bf16.mxu0 %v3895
          %3949 = vmatpush1.bf16.msra.mxu0 %v3894
          %3950 = vmatprep.subr.bf16.mxu0 %v3899
          %3951 = vmatpush1.bf16.msra.mxu0 %v3898
          %3952 = vmatprep.subr.bf16.mxu0 %v3903
          %3953 = vmatpush1.bf16.msra.mxu0 %v3902
          %3954 = vmatprep.subr.bf16.mxu0 0
          %3955 = vmatpush1.bf16.msra.mxu0 0
          %3956 = vmatprep.subr.bf16.mxu0 0
          %3957 = vmatpush1.bf16.msra.mxu0 0
          %3958 = vmatprep.subr.bf16.mxu0 0
          %3959 = vmatpush1.bf16.msra.mxu0 0
          %3960 = vmatprep.subr.bf16.mxu0 0
          %3961 = vmatpush1.bf16.msra.mxu0 0
          %3962 = vmatprep.subr.bf16.mxu0 0
          %3963 = vmatpush1.bf16.msra.mxu0 0
          %3964 = vmatprep.subr.bf16.mxu0 0
          %3965 = vmatpush1.bf16.msra.mxu0 0
          %3966 = vmatprep.subr.bf16.mxu0 0
          %3967 = vmatpush1.bf16.msra.mxu0 0
          %3968 = vmatprep.subr.bf16.mxu0 0
          %3969 = vmatpush1.bf16.msra.mxu0 0
          %3970 = vmatprep.mubr.bf16.mxu0 0
          %3971 = vmatmul.mubr.bf16.gmra.mrb[0].mxu0 %v3745
          %v3972 = vpop.f32.mrb[0].mxu0
          %v3973 = vadd.f32 0.0, %v3972
          %v3974 = vpop.f32.mrb[0].mxu0
          %v3975 = vadd.f32 0.0, %v3974
          %v3976 = vpop.f32.mrb[0].mxu0
          %v3977 = vadd.f32 0.0, %v3976
          %v3978 = vpop.f32.mrb[0].mxu0
          %v3979 = vadd.f32 0.0, %v3978
          %3980 = vdwg.mxu0
          %3981 = vmatprep.subr.bf16.mxu0 %v3877
          %3982 = vmatpush1.bf16.msra.mxu0 %v3876
          %3983 = vmatprep.subr.bf16.mxu0 %v3881
          %3984 = vmatpush1.bf16.msra.mxu0 %v3880
          %3985 = vmatprep.subr.bf16.mxu0 %v3885
          %3986 = vmatpush1.bf16.msra.mxu0 %v3884
          %3987 = vmatprep.subr.bf16.mxu0 %v3889
          %3988 = vmatpush1.bf16.msra.mxu0 %v3888
          %3989 = vmatprep.subr.bf16.mxu0 %v3893
          %3990 = vmatpush1.bf16.msra.mxu0 %v3892
          %3991 = vmatprep.subr.bf16.mxu0 %v3897
          %3992 = vmatpush1.bf16.msra.mxu0 %v3896
          %3993 = vmatprep.subr.bf16.mxu0 %v3901
          %3994 = vmatpush1.bf16.msra.mxu0 %v3900
          %3995 = vmatprep.subr.bf16.mxu0 %v3905
          %3996 = vmatpush1.bf16.msra.mxu0 %v3904
          %3997 = vmatprep.subr.bf16.mxu0 0
          %3998 = vmatpush1.bf16.msra.mxu0 0
          %3999 = vmatprep.subr.bf16.mxu0 0
          %4000 = vmatpush1.bf16.msra.mxu0 0
          %4001 = vmatprep.subr.bf16.mxu0 0
          %4002 = vmatpush1.bf16.msra.mxu0 0
          %4003 = vmatprep.subr.bf16.mxu0 0
          %4004 = vmatpush1.bf16.msra.mxu0 0
          %4005 = vmatprep.subr.bf16.mxu0 0
          %4006 = vmatpush1.bf16.msra.mxu0 0
          %4007 = vmatprep.subr.bf16.mxu0 0
          %4008 = vmatpush1.bf16.msra.mxu0 0
          %4009 = vmatprep.subr.bf16.mxu0 0
          %4010 = vmatpush1.bf16.msra.mxu0 0
          %4011 = vmatprep.subr.bf16.mxu0 0
          %4012 = vmatpush1.bf16.msra.mxu0 0
          %4013 = vmatprep.mubr.bf16.mxu0 0
          %4014 = vmatmul.mubr.bf16.gmra.mrb[0].mxu0 %v3745
          %v4015 = vpop.f32.mrb[0].mxu0
          %v4016 = vadd.f32 0.0, %v4015
          %v4017 = vpop.f32.mrb[0].mxu0
          %v4018 = vadd.f32 0.0, %v4017
          %v4019 = vpop.f32.mrb[0].mxu0
          %v4020 = vadd.f32 0.0, %v4019
          %v4021 = vpop.f32.mrb[0].mxu0
          %v4022 = vadd.f32 0.0, %v4021
          %4023 = vdwg.mxu0
          %v4024 = vadd.f32 %v3737, %v3973
          %v4025 = vadd.f32 %v3738, %v3975
          %v4026 = vadd.f32 %v3739, %v4016
          %v4027 = vadd.f32 %v3740, %v4018
          %v4028 = vadd.f32 %v3741, %v3977
          %v4029 = vadd.f32 %v3742, %v3979
          %v4030 = vadd.f32 %v3743, %v4020
          %v4031 = vadd.f32 %v3744, %v4022
          %v4032 = vld [vmem:[#allocation3] sm:$0xff]
          %v4033 = vld [vmem:[#allocation3 + $0x8] sm:$0xff]
          %v4034 = vxor.u32 %v3727, 2147483648
          %v4035 = vxor.u32 %v3731, 2147483648
          %v4036 = vmul.f32 %v4034, 1.442695
          %v4037 = vpow.pop %v4036
          %v4038 = vmul.f32 %v4035, 1.442695
          %v4039 = vpow.pop %v4038
          %v4040 = vadd.f32 %v4037, 1.0
          %v4041 = vadd.f32 %v4039, 1.0
          %v4042 = vrcp.pop %v4040
          %v4043 = vmul.f32 1.0, %v4042
          %v4044 = vrcp.pop %v4041
          %v4045 = vmul.f32 1.0, %v4044
          %v4046 = vxor.u32 %v3728, 2147483648
          %v4047 = vxor.u32 %v3732, 2147483648
          %v4048 = vmul.f32 %v4046, 1.442695
          %v4049 = vpow.pop %v4048
          %v4050 = vmul.f32 %v4047, 1.442695
          %v4051 = vpow.pop %v4050
          %v4052 = vadd.f32 %v4049, 1.0
          %v4053 = vadd.f32 %v4051, 1.0
          %v4054 = vrcp.pop %v4052
          %v4055 = vmul.f32 1.0, %v4054
          %v4056 = vrcp.pop %v4053
          %v4057 = vmul.f32 1.0, %v4056
          %v4058 = vtanh.pop %v3729
          %v4059 = vtanh.pop %v3733
          %v4060 = vxor.u32 %v3730, 2147483648
          %v4061 = vxor.u32 %v3734, 2147483648
          %v4062 = vmul.f32 %v4060, 1.442695
          %v4063 = vpow.pop %v4062
          %v4064 = vmul.f32 %v4061, 1.442695
          %v4065 = vpow.pop %v4064
          %v4066 = vadd.f32 %v4063, 1.0
          %v4067 = vadd.f32 %v4065, 1.0
          %v4068 = vrcp.pop %v4066
          %v4069 = vmul.f32 1.0, %v4068
          %v4070 = vrcp.pop %v4067
          %v4071 = vmul.f32 1.0, %v4070
          %v4072 = vmul.f32 %v4055, %v4032
          %v4073 = vmul.f32 %v4057, %v4033
          %v4074 = vmul.f32 %v4043, %v4058
          %v4075 = vmul.f32 %v4045, %v4059
          %v4076 = vadd.f32 %v4072, %v4074
          %v4077 = vadd.f32 %v4073, %v4075
          %v4078 = vtanh.pop %v4076
          %v4079 = vtanh.pop %v4077
          %v4080 = vmul.f32 %v4069, %v4078
          %v4081 = vmul.f32 %v4071, %v4079
          %v4082 = vld [vmem:[#allocation5] sm:$0xff]
          %v4083 = vld [vmem:[#allocation5 + $0x8] sm:$0xff]
          %v4084 = vxor.u32 %v4024, 2147483648
          %v4085 = vxor.u32 %v4028, 2147483648
          %v4086 = vmul.f32 %v4084, 1.442695
          %v4087 = vpow.pop %v4086
          %v4088 = vmul.f32 %v4085, 1.442695
          %v4089 = vpow.pop %v4088
          %v4090 = vadd.f32 %v4087, 1.0
          %v4091 = vadd.f32 %v4089, 1.0
          %v4092 = vrcp.pop %v4090
          %v4093 = vmul.f32 1.0, %v4092
          %v4094 = vrcp.pop %v4091
          %v4095 = vmul.f32 1.0, %v4094
          %v4096 = vxor.u32 %v4025, 2147483648
          %v4097 = vxor.u32 %v4029, 2147483648
          %v4098 = vmul.f32 %v4096, 1.442695
          %v4099 = vpow.pop %v4098
          %v4100 = vmul.f32 %v4097, 1.442695
          %v4101 = vpow.pop %v4100
          %v4102 = vadd.f32 %v4099, 1.0
          %v4103 = vadd.f32 %v4101, 1.0
          %v4104 = vrcp.pop %v4102
          %v4105 = vmul.f32 1.0, %v4104
          %v4106 = vrcp.pop %v4103
          %v4107 = vmul.f32 1.0, %v4106
          %v4108 = vtanh.pop %v4026
          %v4109 = vtanh.pop %v4030
          %v4110 = vxor.u32 %v4027, 2147483648
          %v4111 = vxor.u32 %v4031, 2147483648
          %v4112 = vmul.f32 %v4110, 1.442695
          %v4113 = vpow.pop %v4112
          %v4114 = vmul.f32 %v4111, 1.442695
          %v4115 = vpow.pop %v4114
          %v4116 = vadd.f32 %v4113, 1.0
          %v4117 = vadd.f32 %v4115, 1.0
          %v4118 = vrcp.pop %v4116
          %v4119 = vmul.f32 1.0, %v4118
          %v4120 = vrcp.pop %v4117
          %v4121 = vmul.f32 1.0, %v4120
          %v4122 = vmul.f32 %v4105, %v4082
          %v4123 = vmul.f32 %v4107, %v4083
          %v4124 = vmul.f32 %v4093, %v4108
          %v4125 = vmul.f32 %v4095, %v4109
          %v4126 = vadd.f32 %v4122, %v4124
          %v4127 = vadd.f32 %v4123, %v4125
          %v4128 = vtanh.pop %v4126
          %v4129 = vtanh.pop %v4127
          %v4130 = vmul.f32 %v4119, %v4128
          %v4131 = vmul.f32 %v4121, %v4129
          %v4132 = vstv %s3436
          %vm4133 = vcmp.gt.s32.totalorder %v584, %v4132
          %vm4134 = vcmp.gt.s32.totalorder %v585, %v4132
          %v4135 = vstv %s577
          %vm4136 = vcmp.gt.s32.totalorder %v584, %v4135
          %vm4137 = vcmp.gt.s32.totalorder %v585, %v4135
          %v4138 = vpack.c.bf16 %v4081, %v4080
          %v4139 = vsel %vm4133, 1, 0
          %v4140 = vsel %vm4134, 1, 0
          %4141 = vset.pattern.permute.xlu0 0
          %4142 = vperm.xlu0 %4141, %v4139
          %v4143 = vpop.permute.xlu0 %4142
          %4144 = vset.pattern.permute.xlu0 0
          %4145 = vperm.xlu0 %4144, %v4140
          %v4146 = vpop.permute.xlu0 %4145
          %vm4147 = vcmp.eq.s32.totalorder %v4143, 1
          %vm4148 = vcmp.eq.s32.totalorder %v4146, 1
          %vm4149 = vmpackc.low %vm4147, %vm4147
          %vm4150 = vmpackc.low %vm4148, %vm4148
          %v4151 = vsel %vm4149, 65537, 0
          %v4152 = vsel %vm4150, 65537, 0
          %v4153 = vunpack.c.l.b16 %v4151
          %v4154 = vunpack.c.l.b16 %v4152
          %v4155 = vpack.c.b16 %v4154, %v4153
          %vm4156 = vcmp.ne.s16.totalorder %v4155, 0
          %v4157 = vsel %vm4156, %v4138, %v3448
          %4158 = vst [vmem:[#allocation2] sm:$0xff] %v4157
          %v4159 = vld [vmem:[#allocation3] sm:$0xff]
          %v4160 = vld [vmem:[#allocation3 + $0x8] sm:$0xff]
          %v4161 = vsel %vm4147, %v4076, %v4159
          %v4162 = vsel %vm4148, %v4077, %v4160
          %4163 = vst [vmem:[#allocation3] sm:$0xff] %v4161
          %4164 = vst [vmem:[#allocation3 + $0x8] sm:$0xff] %v4162
          %v4165 = vpack.c.bf16 %v4131, %v4130
          %v4166 = vld [vmem:[#allocation4] sm:$0xff]
          %v4167 = vsel %vm4136, 1, 0
          %v4168 = vsel %vm4137, 1, 0
          %4169 = vset.pattern.permute.xlu0 0
          %4170 = vperm.xlu0 %4169, %v4167
          %v4171 = vpop.permute.xlu0 %4170
          %4172 = vset.pattern.permute.xlu0 0
          %4173 = vperm.xlu0 %4172, %v4168
          %v4174 = vpop.permute.xlu0 %4173
          %vm4175 = vcmp.eq.s32.totalorder %v4171, 1
          %vm4176 = vcmp.eq.s32.totalorder %v4174, 1
          %vm4177 = vmpackc.low %vm4175, %vm4175
          %vm4178 = vmpackc.low %vm4176, %vm4176
          %v4179 = vsel %vm4177, 65537, 0
          %v4180 = vsel %vm4178, 65537, 0
          %v4181 = vunpack.c.l.b16 %v4179
          %v4182 = vunpack.c.l.b16 %v4180
          %v4183 = vpack.c.b16 %v4182, %v4181
          %vm4184 = vcmp.ne.s16.totalorder %v4183, 0
          %v4185 = vsel %vm4184, %v4165, %v4166
          %4186 = vst [vmem:[#allocation4] sm:$0xff] %v4185
          %v4187 = vld [vmem:[#allocation5] sm:$0xff]
          %v4188 = vld [vmem:[#allocation5 + $0x8] sm:$0xff]
          %v4189 = vsel %vm4175, %v4126, %v4187
          %v4190 = vsel %vm4176, %v4127, %v4188
          %4191 = vst [vmem:[#allocation5] sm:$0xff] %v4189
          %4192 = vst [vmem:[#allocation5 + $0x8] sm:$0xff] %v4190
        $region100: #{tpu_custom_call.1} parent=63 // pred_fallthru
          _
        %p4193 = scmp.eq.s32.totalorder %s38, 1
        // Predicated region
        $region101: #{tpu_custom_call.1} parent=63 // pred_check
          %p4194 = pneg %p4193
        $region102: #{tpu_custom_call.1} parent=63 // pred_check_branch
          %4196 = sbr.rel (%p4194) target = $region104
        $region103: #{tpu_custom_call.1} parent=63 // pred_region
          %v4197 = vld [vmem:[#allocation2] sm:$0xff]
          %v4198 = vld [vmem:[#allocation4] sm:$0xff]
          %v4199 = vld [vmem:[#allocation21] sm:$0xff]
          %v4200 = vld [vmem:[#allocation21 + $0x8] sm:$0xff]
          %v4201 = vld [vmem:[#allocation21 + $0x10] sm:$0xff]
          %v4202 = vld [vmem:[#allocation21 + $0x18] sm:$0xff]
          %v4203 = vld [vmem:[#allocation21 + $0x20] sm:$0xff]
          %v4204 = vld [vmem:[#allocation21 + $0x28] sm:$0xff]
          %v4205 = vld [vmem:[#allocation21 + $0x30] sm:$0xff]
          %v4206 = vld [vmem:[#allocation21 + $0x38] sm:$0xff]
          %v4207 = vld [vmem:[#allocation21 + $0x40] sm:$0xff]
          %v4208 = vld [vmem:[#allocation21 + $0x48] sm:$0xff]
          %v4209 = vld [vmem:[#allocation21 + $0x50] sm:$0xff]
          %v4210 = vld [vmem:[#allocation21 + $0x58] sm:$0xff]
          %v4211 = vld [vmem:[#allocation21 + $0x60] sm:$0xff]
          %v4212 = vld [vmem:[#allocation21 + $0x68] sm:$0xff]
          %v4213 = vld [vmem:[#allocation21 + $0x70] sm:$0xff]
          %v4214 = vld [vmem:[#allocation21 + $0x78] sm:$0xff]
          %v4215 = vld [vmem:[#allocation21 + $0x80] sm:$0xff]
          %v4216 = vld [vmem:[#allocation21 + $0x88] sm:$0xff]
          %v4217 = vld [vmem:[#allocation21 + $0x90] sm:$0xff]
          %v4218 = vld [vmem:[#allocation21 + $0x98] sm:$0xff]
          %v4219 = vld [vmem:[#allocation21 + $0xa0] sm:$0xff]
          %v4220 = vld [vmem:[#allocation21 + $0xa8] sm:$0xff]
          %v4221 = vld [vmem:[#allocation21 + $0xb0] sm:$0xff]
          %v4222 = vld [vmem:[#allocation21 + $0xb8] sm:$0xff]
          %v4223 = vld [vmem:[#allocation21 + $0xc0] sm:$0xff]
          %v4224 = vld [vmem:[#allocation21 + $0xc8] sm:$0xff]
          %v4225 = vld [vmem:[#allocation21 + $0xd0] sm:$0xff]
          %v4226 = vld [vmem:[#allocation21 + $0xd8] sm:$0xff]
          %v4227 = vld [vmem:[#allocation21 + $0xe0] sm:$0xff]
          %v4228 = vld [vmem:[#allocation21 + $0xe8] sm:$0xff]
          %v4229 = vld [vmem:[#allocation21 + $0xf0] sm:$0xff]
          %v4230 = vld [vmem:[#allocation21 + $0xf8] sm:$0xff]
          %v4231 = vld [vmem:[%s11] sm:$0x3]
          %v4233 = vlaneseq
          %v4234 = vshrl.u32 %v4233, 7
          %v4235 = vsub.s32 0, %v4234
          %v4236 = vrot.slane %v4231, %v4235
          %v4237 = vlaneseq
          %v4238 = vshrl.u32 %v4237, 7
          %v4239 = vsub.s32 1, %v4238
          %v4240 = vrot.slane %v4231, %v4239
          %v4275 = vunpack.c.l.b16 %v4199
          %v4276 = vunpack.c.h.b16 %v4199
          %v4277 = vunpack.c.l.b16 %v4200
          %v4278 = vunpack.c.h.b16 %v4200
          %v4279 = vunpack.c.l.b16 %v4201
          %v4280 = vunpack.c.h.b16 %v4201
          %v4281 = vunpack.c.l.b16 %v4202
          %v4282 = vunpack.c.h.b16 %v4202
          %v4283 = vunpack.c.l.b16 %v4203
          %v4284 = vunpack.c.h.b16 %v4203
          %v4285 = vunpack.c.l.b16 %v4204
          %v4286 = vunpack.c.h.b16 %v4204
          %v4287 = vunpack.c.l.b16 %v4205
          %v4288 = vunpack.c.h.b16 %v4205
          %v4289 = vunpack.c.l.b16 %v4206
          %v4290 = vunpack.c.h.b16 %v4206
          %v4291 = vunpack.c.l.b16 %v4207
          %v4292 = vunpack.c.h.b16 %v4207
          %v4293 = vunpack.c.l.b16 %v4208
          %v4294 = vunpack.c.h.b16 %v4208
          %v4295 = vunpack.c.l.b16 %v4209
          %v4296 = vunpack.c.h.b16 %v4209
          %v4297 = vunpack.c.l.b16 %v4210
          %v4298 = vunpack.c.h.b16 %v4210
          %v4299 = vunpack.c.l.b16 %v4211
          %v4300 = vunpack.c.h.b16 %v4211
          %v4301 = vunpack.c.l.b16 %v4212
          %v4302 = vunpack.c.h.b16 %v4212
          %v4303 = vunpack.c.l.b16 %v4213
          %v4304 = vunpack.c.h.b16 %v4213
          %v4305 = vunpack.c.l.b16 %v4214
          %v4306 = vunpack.c.h.b16 %v4214
          %v4307 = vunpack.c.l.b16 %v4215
          %v4308 = vunpack.c.h.b16 %v4215
          %v4309 = vunpack.c.l.b16 %v4216
          %v4310 = vunpack.c.h.b16 %v4216
          %v4311 = vunpack.c.l.b16 %v4217
          %v4312 = vunpack.c.h.b16 %v4217
          %v4313 = vunpack.c.l.b16 %v4218
          %v4314 = vunpack.c.h.b16 %v4218
          %v4315 = vunpack.c.l.b16 %v4219
          %v4316 = vunpack.c.h.b16 %v4219
          %v4317 = vunpack.c.l.b16 %v4220
          %v4318 = vunpack.c.h.b16 %v4220
          %v4319 = vunpack.c.l.b16 %v4221
          %v4320 = vunpack.c.h.b16 %v4221
          %v4321 = vunpack.c.l.b16 %v4222
          %v4322 = vunpack.c.h.b16 %v4222
          %v4323 = vunpack.c.l.b16 %v4223
          %v4324 = vunpack.c.h.b16 %v4223
          %v4325 = vunpack.c.l.b16 %v4224
          %v4326 = vunpack.c.h.b16 %v4224
          %v4327 = vunpack.c.l.b16 %v4225
          %v4328 = vunpack.c.h.b16 %v4225
          %v4329 = vunpack.c.l.b16 %v4226
          %v4330 = vunpack.c.h.b16 %v4226
          %v4331 = vunpack.c.l.b16 %v4227
          %v4332 = vunpack.c.h.b16 %v4227
          %v4333 = vunpack.c.l.b16 %v4228
          %v4334 = vunpack.c.h.b16 %v4228
          %v4335 = vunpack.c.l.b16 %v4229
          %v4336 = vunpack.c.h.b16 %v4229
          %v4337 = vunpack.c.l.b16 %v4230
          %v4338 = vunpack.c.h.b16 %v4230
          %v4339 = vpack.c.b16 %v4277, %v4275
          %v4340 = vpack.c.b16 %v4278, %v4276
          %v4341 = vpack.c.b16 %v4281, %v4279
          %v4342 = vpack.c.b16 %v4282, %v4280
          %v4343 = vpack.c.b16 %v4285, %v4283
          %v4344 = vpack.c.b16 %v4286, %v4284
          %v4345 = vpack.c.b16 %v4289, %v4287
          %v4346 = vpack.c.b16 %v4290, %v4288
          %v4347 = vpack.c.b16 %v4293, %v4291
          %v4348 = vpack.c.b16 %v4294, %v4292
          %v4349 = vpack.c.b16 %v4297, %v4295
          %v4350 = vpack.c.b16 %v4298, %v4296
          %v4351 = vpack.c.b16 %v4301, %v4299
          %v4352 = vpack.c.b16 %v4302, %v4300
          %v4353 = vpack.c.b16 %v4305, %v4303
          %v4354 = vpack.c.b16 %v4306, %v4304
          %v4355 = vpack.c.b16 %v4309, %v4307
          %v4356 = vpack.c.b16 %v4310, %v4308
          %v4357 = vpack.c.b16 %v4313, %v4311
          %v4358 = vpack.c.b16 %v4314, %v4312
          %v4359 = vpack.c.b16 %v4317, %v4315
          %v4360 = vpack.c.b16 %v4318, %v4316
          %v4361 = vpack.c.b16 %v4321, %v4319
          %v4362 = vpack.c.b16 %v4322, %v4320
          %v4363 = vpack.c.b16 %v4325, %v4323
          %v4364 = vpack.c.b16 %v4326, %v4324
          %v4365 = vpack.c.b16 %v4329, %v4327
          %v4366 = vpack.c.b16 %v4330, %v4328
          %v4367 = vpack.c.b16 %v4333, %v4331
          %v4368 = vpack.c.b16 %v4334, %v4332
          %v4369 = vpack.c.b16 %v4337, %v4335
          %v4370 = vpack.c.b16 %v4338, %v4336
          %4403 = vmatprep.subr.bf16.mxu0 %v4340
          %4404 = vmatpush1.bf16.msra.mxu0 %v4339
          %4405 = vmatprep.subr.bf16.mxu0 %v4342
          %4406 = vmatpush1.bf16.msra.mxu0 %v4341
          %4407 = vmatprep.subr.bf16.mxu0 %v4344
          %4408 = vmatpush1.bf16.msra.mxu0 %v4343
          %4409 = vmatprep.subr.bf16.mxu0 %v4346
          %4410 = vmatpush1.bf16.msra.mxu0 %v4345
          %4411 = vmatprep.subr.bf16.mxu0 %v4348
          %4412 = vmatpush1.bf16.msra.mxu0 %v4347
          %4413 = vmatprep.subr.bf16.mxu0 %v4350
          %4414 = vmatpush1.bf16.msra.mxu0 %v4349
          %4415 = vmatprep.subr.bf16.mxu0 %v4352
          %4416 = vmatpush1.bf16.msra.mxu0 %v4351
          %4417 = vmatprep.subr.bf16.mxu0 %v4354
          %4418 = vmatpush1.bf16.msra.mxu0 %v4353
          %4419 = vmatprep.subr.bf16.mxu0 %v4356
          %4420 = vmatpush1.bf16.msra.mxu0 %v4355
          %4421 = vmatprep.subr.bf16.mxu0 %v4358
          %4422 = vmatpush1.bf16.msra.mxu0 %v4357
          %4423 = vmatprep.subr.bf16.mxu0 %v4360
          %4424 = vmatpush1.bf16.msra.mxu0 %v4359
          %4425 = vmatprep.subr.bf16.mxu0 %v4362
          %4426 = vmatpush1.bf16.msra.mxu0 %v4361
          %4427 = vmatprep.subr.bf16.mxu0 %v4364
          %4428 = vmatpush1.bf16.msra.mxu0 %v4363
          %4429 = vmatprep.subr.bf16.mxu0 %v4366
          %4430 = vmatpush1.bf16.msra.mxu0 %v4365
          %4431 = vmatprep.subr.bf16.mxu0 %v4368
          %4432 = vmatpush1.bf16.msra.mxu0 %v4367
          %4433 = vmatprep.subr.bf16.mxu0 %v4370
          %4434 = vmatpush1.bf16.msra.mxu0 %v4369
          %4435 = vmatprep.mubr.bf16.mxu0 %v4198
          %4436 = vmatmul.mubr.bf16.gmra.mrb[0].mxu0 %v4197
          %v4437 = vpop.f32.mrb[0].mxu0
          %v4438 = vadd.f32 %v4236, %v4437
          %v4439 = vpop.f32.mrb[0].mxu0
          %v4440 = vadd.f32 %v4240, %v4439
          %v4441 = vpop.f32.mrb[0].mxu0
          %v4442 = vadd.f32 %v4236, %v4441
          %v4443 = vpop.f32.mrb[0].mxu0
          %v4444 = vadd.f32 %v4240, %v4443
          %4445 = vdwg.mxu0
          %4446 = vst [vmem:[#allocation22] sm:$0xff] %v4438
          %4447 = vst [vmem:[#allocation22 + $0x8] sm:$0xff] %v4440
          %4448 = vst [vmem:[#allocation22 + $0x10] sm:$0xff] %v4442
          %4449 = vst [vmem:[#allocation22 + $0x18] sm:$0xff] %v4444
        $region104: #{tpu_custom_call.1} parent=63 // pred_fallthru
          _
        // Predicated region
        $region105: #{tpu_custom_call.1} parent=63 // pred_check
          %p4450 = pneg %p313
        $region106: #{tpu_custom_call.1} parent=63 // pred_check_branch
          %4452 = sbr.rel (%p4450) target = $region108
        $region107: #{tpu_custom_call.1} parent=63 // pred_region
          %s4453 = smul.u32 2, %s37
          %s4455 = ssub.s32 512, 512
          %4456 = vsyncadd [#allocation12], %s4455
          %s4457 = smul.addr %s4453, 2
          %s4458 = smul.addr %s4457, 128
          %s4459 = scalar_lea.hbm %s12, %s4458
          %s4460 = sshll.u32 [#allocation22], 4
          %s4461 = int_to_ptr.vmem [resolvable:$true] %s4460
          %4466 = dma.vmem_to_hbm [thread:$0]  %s4461, 512, %s4459, [#allocation12], 256, 256, 16
        $region108: #{tpu_custom_call.1} parent=63 // pred_fallthru
          _
        // Predicated region
        $region109: #{tpu_custom_call.1} parent=63 // pred_check
          %p4467 = pneg %p313
        $region110: #{tpu_custom_call.1} parent=63 // pred_check_branch
          %4469 = sbr.rel (%p4467) target = $region112
        $region111: #{tpu_custom_call.1} parent=63 // pred_region
          %4470 = dma.done [#allocation12], 512
        $region112: #{tpu_custom_call.1} parent=63 // pred_fallthru
          _
      $region64: #{tpu_custom_call.1} parent=5 // pred_fallthru
        _
      %p4471 = scmp.le.s32.totalorder 2, %s28
      // Predicated region
      $region113: #{tpu_custom_call.1} parent=5 // pred_check
        %p4472 = pneg %p4471
      $region114: #{tpu_custom_call.1} parent=5 // pred_check_branch
        %4474 = sbr.rel (%p4472) target = $region116
      $region115: #{tpu_custom_call.1} parent=5 // pred_region
        %s4475 = ssub.s32 %s28, 2
      $region116: #{tpu_custom_call.1} parent=5 // pred_fallthru
        _
    $region6: #{tpu_custom_call.1} parent=1 // loop_footer
      %s32 = sadd.s32 1, %s28
    $region7: #{tpu_custom_call.1} parent=1 // loop_footer_branch
      %27 = sbr.rel target = $region3
    $region8: #{tpu_custom_call.1} parent=1 // loop_exit
      _
    %4476 = vsyncpa [#allocation11], 1
    %s4477 = scalar_lea.sflag [#allocation11], 1
    %4478 = vsyncpa %s4477, 1
    %4479 = vsyncpa [#allocation14], 1
    %s4480 = scalar_lea.sflag [#allocation14], 1
    %4481 = vsyncpa %s4480, 1
    %4482 = vsyncpa [#allocation17], 1
    %4483 = vsyncpa [#allocation20], 1
    %4484 = vsyncpa [#allocation12], 1
    %s4485 = scalar_lea.sflag [#allocation12], 1
    %4486 = vsyncpa %s4485, 1

</llo_original>
